<compile_context>
chip_gen: v7x
topology: tpu7x:2x2x1
jax: 0.10.0
libtpu: 0.0.40
codegen_flags: <defaults>
</compile_context>

<pallas_src>
import functools
import math

import numpy as np

import jax
import jax.numpy as jnp
from jax.experimental import pallas as pl
from jax.experimental.pallas import tpu as pltpu


H = 10  # hidden width of every MLP in the module


def _tree_sum(terms):
    # balanced pairwise add (shorter dependency chain than a linear sum)
    while len(terms) > 1:
        nxt = [terms[i] + terms[i + 1] for i in range(0, len(terms) - 1, 2)]
        if len(terms) % 2:
            nxt.append(terms[-1])
        terms = nxt
    return terms[0]


# ----------------------------------------------------------------------------
# Pallas kernel: the whole Nc-iteration message-passing loop + final readout.
# ----------------------------------------------------------------------------
def gnni_kernel(Nc,
                g0_ref, g1_hbm, a0_hbm, a1_hbm,          # Gram / incidence
                x_ref, xg0_ref, xg1_ref,                 # node feats / edge gathers
                mlp1_ref, mlp2_ref, mlpf_ref,            # packed MLP params (SMEM)
                gru1_ref, gru2_ref,                      # packed GRU params (SMEM)
                out1_ref, out2_ref,
                g1_vmem, a0_vmem, a1_vmem, dma_sems):
    # --- kick off DMAs for inputs that are not needed immediately ------------
    cp_g1 = pltpu.make_async_copy(g1_hbm, g1_vmem, dma_sems.at[0])
    cp_a0 = pltpu.make_async_copy(a0_hbm, a0_vmem, dma_sems.at[1])
    cp_a1 = pltpu.make_async_copy(a1_hbm, a1_vmem, dma_sems.at[2])
    cp_g1.start()
    cp_a0.start()
    cp_a1.start()

    xg0 = xg0_ref[...]                 # (B_pad, Eg_pad)  x[edge_index[0]] per graph
    xg1 = xg1_ref[...]                 # (B_pad, Eg_pad)  x[edge_index[1]] per graph
    B, E = xg0.shape

    # --- SMEM scalar reads (done before any DMA wait) -------------------------
    def rd(ref, off, n):
        return [ref[off + j] for j in range(n)]

    e1_w1a, e1_w1b = rd(mlp1_ref, 0, H), rd(mlp1_ref, H, H)
    e1_b1, e1_w2 = rd(mlp1_ref, 2 * H, H), rd(mlp1_ref, 3 * H, H)
    e1_b2 = mlp1_ref[4 * H]
    e2_w1a, e2_w1b = rd(mlp2_ref, 0, H), rd(mlp2_ref, H, H)
    e2_b1, e2_w2 = rd(mlp2_ref, 2 * H, H), rd(mlp2_ref, 3 * H, H)
    e2_b2 = mlp2_ref[4 * H]
    f_w1, f_b1, f_w2 = rd(mlpf_ref, 0, H), rd(mlpf_ref, H, H), rd(mlpf_ref, 2 * H, H)
    f_b2 = mlpf_ref[3 * H]
    gA = rd(gru1_ref, 0, 10)
    gB = rd(gru2_ref, 0, 10)

    # --- loop-invariant hoists: xg-dependent half of each edge-MLP hidden unit
    e1_c = [e1_w1b[j] * xg0 + e1_b1[j] for j in range(H)]
    e2_c = [e2_w1b[j] * xg1 + e2_b1[j] for j in range(H)]

    def edge_mlp(agg, w1a, c, w2, b2):
        # Linear(2,H) -> ReLU -> Linear(H,1); hidden units unrolled on the VPU.
        terms = [w2[j] * jnp.maximum(w1a[j] * agg + c[j], 0.0) for j in range(H)]
        return _tree_sum(terms) + b2

    def gru_cell(g, inp, h):
        # torch.nn.GRUCell(1, 1): input = previous message m, hidden = mes.
        wi_r, wi_z, wi_n, wh_r, wh_z, wh_n, br, bz, bi_n, bh_n = g
        r = jax.nn.sigmoid(wi_r * inp + wh_r * h + br)
        z = jax.nn.sigmoid(wi_z * inp + wh_z * h + bz)
        n = jnp.tanh(wi_n * inp + bi_n + r * (wh_n * h + bh_n))
        return (1.0 - z) * n + z * h

    def ggc1(m):
        # fused scatter-add -> gather-back -> subtract-self: one MXU pass.
        agg = jnp.dot(m, g0_ref[...], preferred_element_type=jnp.float32)
        return gru_cell(gA, m, edge_mlp(agg, e1_w1a, e1_c, e1_w2, e1_b2))

    def ggc2(m):
        agg = jnp.dot(m, g1_vmem[...], preferred_element_type=jnp.float32)
        return gru_cell(gB, m, edge_mlp(agg, e2_w1a, e2_c, e2_w2, e2_b2))

    # --- Nc message-passing iterations ----------------------------------------
    m = ggc1(jnp.zeros((B, E), jnp.float32))   # first half-iteration: g1 not needed
    cp_g1.wait()                               # g1 resident before the first ggc2
    if Nc == 1:
        m_p = m
        m = ggc2(m)
    else:
        m = ggc2(m)
        m = jax.lax.fori_loop(1, Nc - 1, lambda i, mm: ggc2(ggc1(mm)), m)
        m = ggc1(m)
        m_p = m                                # snapshot right after ggc1 at i == Nc-1
        m = ggc2(m)

    # --- readout ---------------------------------------------------------------
    def node_mlp(s):
        # Linear(1,H) -> ReLU -> Linear(H,1)
        terms = [f_w2[j] * jnp.maximum(f_w1[j] * s + f_b1[j], 0.0) for j in range(H)]
        return _tree_sum(terms) + f_b2

    cp_a0.wait()
    cp_a1.wait()
    s0 = jnp.dot(m, a0_vmem[...], preferred_element_type=jnp.float32)    # (B, Ng_pad)
    s1 = jnp.dot(m_p, a1_vmem[...], preferred_element_type=jnp.float32)
    out1_ref[...] = jax.nn.sigmoid(-(node_mlp(s0) + x_ref[...]))
    out2_ref[...] = jax.nn.sigmoid(-node_mlp(s1))
    # TODO(synk): the tmp/tmp_p reshuffling loop in GNNI.forward is dead code
    # (never returned), so it is intentionally not reproduced.


# ----------------------------------------------------------------------------
# Graph constants (built once, cached across forward calls).
# ----------------------------------------------------------------------------
def _round_up(v, m):
    return ((v + m - 1) // m) * m


def precompute_graph(edge_index, rows, cols, batch_size):
    """Build per-graph incidence / Gram constants once (numpy, host side)."""
    ei = np.asarray(edge_index)
    ng = rows + cols
    E = ei.shape[1]
    assert E % batch_size == 0, "edge count must be divisible by batch size"
    e_g = E // batch_size
    base = (np.arange(batch_size) * ng)[:, None]
    e0 = ei[0].reshape(batch_size, e_g) - base
    e1 = ei[1].reshape(batch_size, e_g) - base
    assert np.all(e0 == e0[0]) and np.all(e1 == e1[0]), \
        "batched graphs must share one topology (batch-on-M kernel layout)"
    e0_g, e1_g = e0[0], e1[0]
    assert np.all((e0_g >= 0) & (e0_g < ng)) and np.all((e1_g >= 0) & (e1_g < ng))

    E_pad = _round_up(e_g, 128)
    Ng_pad = _round_up(ng, 128)
    B_pad = _round_up(batch_size, 8)

    # One-hot incidence; padded edge rows are all-zero, so padded-lane garbage
    # can never leak into real aggregations or the readout (zero-row invariant).
    A0 = np.zeros((E_pad, Ng_pad), np.float32)
    A1 = np.zeros((E_pad, Ng_pad), np.float32)
    A0[np.arange(e_g), e0_g] = 1.0
    A1[np.arange(e_g), e1_g] = 1.0
    mask = np.zeros((E_pad,), np.float32)
    mask[:e_g] = 1.0
    # Fused "scatter-add over nodes, gather back, subtract self" operators.
    # TODO(synk): for large graphs (E_pad ~2k+) this O(E^2) Gram outgrows v7x's
    # 64 MiB VMEM; switch there to the two-dot form (m @ A) @ A^T - m.
    G0 = A0 @ A0.T - np.diag(mask)
    G1 = A1 @ A1.T - np.diag(mask)

    return {
        "G0": jnp.asarray(G0), "G1": jnp.asarray(G1),
        "A0": jnp.asarray(A0), "A1": jnp.asarray(A1),
        "e0_g": jnp.asarray(e0_g, jnp.int32), "e1_g": jnp.asarray(e1_g, jnp.int32),
        "rows": rows, "cols": cols, "B": batch_size, "B_pad": B_pad,
        "Eg": e_g, "E_pad": E_pad, "Ng": ng, "Ng_pad": Ng_pad,
    }


# ----------------------------------------------------------------------------
# Wrapper: per-call prep (gathers, padding, weight packing) + pallas_call.
# ----------------------------------------------------------------------------
def gnni_forward(x, graph, params, Nc):
    B, B_pad = graph["B"], graph["B_pad"]
    ng, Ng_pad = graph["Ng"], graph["Ng_pad"]
    e_g, E_pad = graph["Eg"], graph["E_pad"]

    x_bn = x.reshape(B, ng).astype(jnp.float32)                 # (B, Ng)
    x_p = jnp.zeros((B_pad, Ng_pad), jnp.float32).at[:B, :ng].set(x_bn)
    xg0 = jnp.zeros((B_pad, E_pad), jnp.float32).at[:B, :e_g].set(x_bn[:, graph["e0_g"]])
    xg1 = jnp.zeros((B_pad, E_pad), jnp.float32).at[:B, :e_g].set(x_bn[:, graph["e1_g"]])

    def pack_edge_mlp(p):      # Linear(2,10) -> ReLU -> Linear(10,1)
        w1, b1, w2, b2 = p
        return jnp.concatenate([w1[:, 0], w1[:, 1], b1,
                                w2.reshape(-1), b2.reshape(-1)]).astype(jnp.float32)

    def pack_node_mlp(p):      # Linear(1,10) -> ReLU -> Linear(10,1)
        w1, b1, w2, b2 = p
        return jnp.concatenate([w1[:, 0], b1,
                                w2.reshape(-1), b2.reshape(-1)]).astype(jnp.float32)

    def pack_gru(p):
        # [wi_r, wi_z, wi_n, wh_r, wh_z, wh_n, b_ir+b_hr, b_iz+b_hz, b_in, b_hn]
        w_ih, w_hh, b_ih, b_hh = [a.reshape(-1).astype(jnp.float32) for a in p]
        return jnp.stack([w_ih[0], w_ih[1], w_ih[2],
                          w_hh[0], w_hh[1], w_hh[2],
                          b_ih[0] + b_hh[0], b_ih[1] + b_hh[1],
                          b_ih[2], b_hh[2]])

    mlp1_pack = pack_edge_mlp(params["mlp1"])
    mlp2_pack = pack_edge_mlp(params["mlp2"])
    mlpf_pack = pack_node_mlp(params["mlpf"])
    gru1_pack = pack_gru(params["gru1"])
    gru2_pack = pack_gru(params["gru2"])

    vmem = pl.BlockSpec(memory_space=pltpu.MemorySpace.VMEM)
    smem = pl.BlockSpec(memory_space=pltpu.MemorySpace.SMEM)
    hbm = pl.BlockSpec(memory_space=pl.ANY)

    vmem_need = 4 * (2 * E_pad * E_pad          # G0 (input) + G1 (scratch)
                     + 4 * E_pad * Ng_pad       # A0/A1 scratch (+ margin)
                     + 16 * B_pad * E_pad       # messages + hoisted invariants
                     + 8 * B_pad * Ng_pad)      # x, outputs, readout temporaries
    vmem_limit = min(max(2 * vmem_need, 32 << 20), 64 << 20)

    out1, out2 = pl.pallas_call(
        functools.partial(gnni_kernel, Nc),
        out_shape=(jax.ShapeDtypeStruct((B_pad, Ng_pad), jnp.float32),
                   jax.ShapeDtypeStruct((B_pad, Ng_pad), jnp.float32)),
        in_specs=[vmem, hbm, hbm, hbm, vmem, vmem, vmem,
                  smem, smem, smem, smem, smem],
        out_specs=(vmem, vmem),
        scratch_shapes=[pltpu.VMEM((E_pad, E_pad), jnp.float32),
                        pltpu.VMEM((E_pad, Ng_pad), jnp.float32),
                        pltpu.VMEM((E_pad, Ng_pad), jnp.float32),
                        pltpu.SemaphoreType.DMA((3,))],
        compiler_params=pltpu.CompilerParams(vmem_limit_bytes=vmem_limit),
    )(graph["G0"], graph["G1"], graph["A0"], graph["A1"],
      x_p, xg0, xg1,
      mlp1_pack, mlp2_pack, mlpf_pack, gru1_pack, gru2_pack)

    # back to PyTorch's (N, 1) column-vector convention (drop padding)
    out1 = out1[:B, :ng].reshape(-1, 1)
    out2 = out2[:B, :ng].reshape(-1, 1)
    # TODO(synk): on v7x, add a ("parallel",) grid over batch blocks to engage
    # the second TensorCore once B is large enough to split without
    # under-filling the MXU M axis.
    return out1, out2


# ----------------------------------------------------------------------------
# Pure-JAX reference (index-based scatter/gather) for correctness checking.
# ----------------------------------------------------------------------------
def gnni_reference(x, edge_index, params, Nc):
    N = x.shape[0]
    e0, e1 = edge_index[0], edge_index[1]
    E = e0.shape[0]

    def mlp(inp, w1, b1, w2, b2):
        h = jnp.maximum(inp @ w1.T + b1, 0.0)
        return h @ w2.T + b2

    def gru(p, inp, h):
        w_ih, w_hh, b_ih, b_hh = p
        gi = inp @ w_ih.T + b_ih
        gh = h @ w_hh.T + b_hh
        r = jax.nn.sigmoid(gi[:, 0:1] + gh[:, 0:1])
        z = jax.nn.sigmoid(gi[:, 1:2] + gh[:, 1:2])
        n = jnp.tanh(gi[:, 2:3] + r * gh[:, 2:3])
        return (1.0 - z) * n + z * h

    def ggc(m, idx, mlp_p, gru_p):
        s = jnp.zeros((N, 1), jnp.float32).at[idx].add(m)
        agg = s[idx] - m
        inp = jnp.concatenate([agg, x[idx]], axis=1)
        mes = mlp(inp, *mlp_p)
        return gru(gru_p, m, mes)

    m = jnp.zeros((E, 1), jnp.float32)
    m_p = m
    for i in range(Nc):
        m = ggc(m, e0, params["mlp1"], params["gru1"])
        if i == Nc - 1:
            m_p = m
        m = ggc(m, e1, params["mlp2"], params["gru2"])

    res = mlp(jnp.zeros((N, 1), jnp.float32).at[e0].add(m), *params["mlpf"]) + x
    res_p = mlp(jnp.zeros((N, 1), jnp.float32).at[e1].add(m_p), *params["mlpf"])
    return jax.nn.sigmoid(-res), jax.nn.sigmoid(-res_p)


# ----------------------------------------------------------------------------
# Deterministic parameter init (PyTorch default Linear / GRUCell init ranges).
# ----------------------------------------------------------------------------
def init_params(key):
    def linear(k, out_f, in_f):
        k1, k2 = jax.random.split(k)
        bound = 1.0 / math.sqrt(in_f)
        w = jax.random.uniform(k1, (out_f, in_f), jnp.float32, -bound, bound)
        b = jax.random.uniform(k2, (out_f,), jnp.float32, -bound, bound)
        return w, b

    def mlp_2_10_1(k):
        k1, k2 = jax.random.split(k)
        w1, b1 = linear(k1, 10, 2)
        w2, b2 = linear(k2, 1, 10)
        return (w1, b1, w2, b2)

    def mlp_1_10_1(k):
        k1, k2 = jax.random.split(k)
        w1, b1 = linear(k1, 10, 1)
        w2, b2 = linear(k2, 1, 10)
        return (w1, b1, w2, b2)

    def gru_1_1(k):
        ks = jax.random.split(k, 4)
        w_ih = jax.random.uniform(ks[0], (3, 1), jnp.float32, -1.0, 1.0)
        w_hh = jax.random.uniform(ks[1], (3, 1), jnp.float32, -1.0, 1.0)
        b_ih = jax.random.uniform(ks[2], (3,), jnp.float32, -1.0, 1.0)
        b_hh = jax.random.uniform(ks[3], (3,), jnp.float32, -1.0, 1.0)
        return (w_ih, w_hh, b_ih, b_hh)

    k = jax.random.split(key, 5)
    return {
        "mlp1": mlp_2_10_1(k[0]),
        "mlp2": mlp_2_10_1(k[1]),
        "mlpf": mlp_1_10_1(k[2]),
        "gru1": gru_1_1(k[3]),
        "gru2": gru_1_1(k[4]),
    }


if __name__ == "__main__":
    # Small synthetic problem consistent with the module: BATCH identical
    # Tanner graphs with `rows` variable nodes and `cols` check nodes each.
    rows, cols, BATCH = 8, 8, 16
    Nc = 15
    deg = 3                              # checks per variable node
    ng = rows + cols
    N = ng * BATCH                       # 256 nodes
    e0_list, e1_list = [], []
    for b in range(BATCH):
        base = b * ng
        for v in range(rows):
            for d in range(deg):
                c = (v + d) % cols
                e0_list.append(base + v)
                # GNNI.forward offsets data.edge_index[1] by `rows`
                e1_list.append(base + rows + c)
    edge_index = jnp.array([e0_list, e1_list], dtype=jnp.int32)   # (2, 384)

    key = jax.random.PRNGKey(0)
    kx, kp = jax.random.split(key)
    x = jax.random.normal(kx, (N, 1), jnp.float32)
    params = init_params(kp)

    graph = precompute_graph(edge_index, rows, cols, BATCH)   # built once, reused
    out1, out2 = gnni_forward(x, graph, params, Nc)
    out1 = jax.block_until_ready(out1)
    out2 = jax.block_until_ready(out2)

    ref1, ref2 = gnni_reference(x, edge_index, params, Nc)
    err = max(float(jnp.max(jnp.abs(out1 - ref1))),
              float(jnp.max(jnp.abs(out2 - ref2))))
    assert err < 5e-4, f"mismatch vs reference: {err}"
    print("KERNEL_OK")
</pallas_src>

<mosaic_0001>
module attributes {stable_mosaic.version = 11 : i64} {
  func.func @gnni_kernel(%arg0: memref<128x128xf32, #tpu.memory_space<vmem>>, %arg1: memref<128x128xf32, #tpu.memory_space<any>>, %arg2: memref<128x128xf32, #tpu.memory_space<any>>, %arg3: memref<128x128xf32, #tpu.memory_space<any>>, %arg4: memref<16x128xf32, #tpu.memory_space<vmem>>, %arg5: memref<16x128xf32, #tpu.memory_space<vmem>>, %arg6: memref<16x128xf32, #tpu.memory_space<vmem>>, %arg7: memref<41xf32, #tpu.memory_space<smem>>, %arg8: memref<41xf32, #tpu.memory_space<smem>>, %arg9: memref<31xf32, #tpu.memory_space<smem>>, %arg10: memref<10xf32, #tpu.memory_space<smem>>, %arg11: memref<10xf32, #tpu.memory_space<smem>>, %arg12: memref<16x128xf32, #tpu.memory_space<vmem>>, %arg13: memref<16x128xf32, #tpu.memory_space<vmem>>, %arg14: memref<128x128xf32, #tpu.memory_space<vmem>>, %arg15: memref<128x128xf32, #tpu.memory_space<vmem>>, %arg16: memref<128x128xf32, #tpu.memory_space<vmem>>, %arg17: memref<3x!tpu.dma_semaphore, #tpu.memory_space<semaphore_mem>>) attributes {dimension_semantics = [], scalar_prefetch = 0 : i64, scratch_operands = 4 : i64, tpu.core_type = #tpu.core_type<tc>} {
    %c0_i32 = arith.constant 0 : i32
    %0 = tpu.memref_slice %arg17[%c0_i32] : memref<3x!tpu.dma_semaphore, #tpu.memory_space<semaphore_mem>> -> memref<1x!tpu.dma_semaphore, #tpu.memory_space<semaphore_mem>>
    %1 = tpu.memref_squeeze %0 : memref<1x!tpu.dma_semaphore, #tpu.memory_space<semaphore_mem>> -> memref<!tpu.dma_semaphore, #tpu.memory_space<semaphore_mem>>
    tpu.enqueue_dma source(%arg1 : memref<128x128xf32, #tpu.memory_space<any>>) target(%arg14 : memref<128x128xf32, #tpu.memory_space<vmem>>) target_semaphore(%1 : memref<!tpu.dma_semaphore, #tpu.memory_space<semaphore_mem>>)
    %c1_i32 = arith.constant 1 : i32
    %2 = tpu.memref_slice %arg17[%c1_i32] : memref<3x!tpu.dma_semaphore, #tpu.memory_space<semaphore_mem>> -> memref<1x!tpu.dma_semaphore, #tpu.memory_space<semaphore_mem>>
    %3 = tpu.memref_squeeze %2 : memref<1x!tpu.dma_semaphore, #tpu.memory_space<semaphore_mem>> -> memref<!tpu.dma_semaphore, #tpu.memory_space<semaphore_mem>>
    tpu.enqueue_dma source(%arg2 : memref<128x128xf32, #tpu.memory_space<any>>) target(%arg15 : memref<128x128xf32, #tpu.memory_space<vmem>>) target_semaphore(%3 : memref<!tpu.dma_semaphore, #tpu.memory_space<semaphore_mem>>)
    %c2_i32 = arith.constant 2 : i32
    %4 = tpu.memref_slice %arg17[%c2_i32] : memref<3x!tpu.dma_semaphore, #tpu.memory_space<semaphore_mem>> -> memref<1x!tpu.dma_semaphore, #tpu.memory_space<semaphore_mem>>
    %5 = tpu.memref_squeeze %4 : memref<1x!tpu.dma_semaphore, #tpu.memory_space<semaphore_mem>> -> memref<!tpu.dma_semaphore, #tpu.memory_space<semaphore_mem>>
    tpu.enqueue_dma source(%arg3 : memref<128x128xf32, #tpu.memory_space<any>>) target(%arg16 : memref<128x128xf32, #tpu.memory_space<vmem>>) target_semaphore(%5 : memref<!tpu.dma_semaphore, #tpu.memory_space<semaphore_mem>>)
    %c0 = arith.constant 0 : index
    %c0_0 = arith.constant 0 : index
    %6 = vector.load %arg5[%c0, %c0_0] : memref<16x128xf32, #tpu.memory_space<vmem>>, vector<16x128xf32>
    %c0_1 = arith.constant 0 : index
    %c0_2 = arith.constant 0 : index
    %7 = vector.load %arg6[%c0_1, %c0_2] : memref<16x128xf32, #tpu.memory_space<vmem>>, vector<16x128xf32>
    %c0_3 = arith.constant 0 : index
    %8 = memref.load %arg7[%c0_3] : memref<41xf32, #tpu.memory_space<smem>>
    %c1 = arith.constant 1 : index
    %9 = memref.load %arg7[%c1] : memref<41xf32, #tpu.memory_space<smem>>
    %c2 = arith.constant 2 : index
    %10 = memref.load %arg7[%c2] : memref<41xf32, #tpu.memory_space<smem>>
    %c3 = arith.constant 3 : index
    %11 = memref.load %arg7[%c3] : memref<41xf32, #tpu.memory_space<smem>>
    %c4 = arith.constant 4 : index
    %12 = memref.load %arg7[%c4] : memref<41xf32, #tpu.memory_space<smem>>
    %c5 = arith.constant 5 : index
    %13 = memref.load %arg7[%c5] : memref<41xf32, #tpu.memory_space<smem>>
    %c6 = arith.constant 6 : index
    %14 = memref.load %arg7[%c6] : memref<41xf32, #tpu.memory_space<smem>>
    %c7 = arith.constant 7 : index
    %15 = memref.load %arg7[%c7] : memref<41xf32, #tpu.memory_space<smem>>
    %c8 = arith.constant 8 : index
    %16 = memref.load %arg7[%c8] : memref<41xf32, #tpu.memory_space<smem>>
    %c9 = arith.constant 9 : index
    %17 = memref.load %arg7[%c9] : memref<41xf32, #tpu.memory_space<smem>>
    %c10 = arith.constant 10 : index
    %18 = memref.load %arg7[%c10] : memref<41xf32, #tpu.memory_space<smem>>
    %c11 = arith.constant 11 : index
    %19 = memref.load %arg7[%c11] : memref<41xf32, #tpu.memory_space<smem>>
    %c12 = arith.constant 12 : index
    %20 = memref.load %arg7[%c12] : memref<41xf32, #tpu.memory_space<smem>>
    %c13 = arith.constant 13 : index
    %21 = memref.load %arg7[%c13] : memref<41xf32, #tpu.memory_space<smem>>
    %c14 = arith.constant 14 : index
    %22 = memref.load %arg7[%c14] : memref<41xf32, #tpu.memory_space<smem>>
    %c15 = arith.constant 15 : index
    %23 = memref.load %arg7[%c15] : memref<41xf32, #tpu.memory_space<smem>>
    %c16 = arith.constant 16 : index
    %24 = memref.load %arg7[%c16] : memref<41xf32, #tpu.memory_space<smem>>
    %c17 = arith.constant 17 : index
    %25 = memref.load %arg7[%c17] : memref<41xf32, #tpu.memory_space<smem>>
    %c18 = arith.constant 18 : index
    %26 = memref.load %arg7[%c18] : memref<41xf32, #tpu.memory_space<smem>>
    %c19 = arith.constant 19 : index
    %27 = memref.load %arg7[%c19] : memref<41xf32, #tpu.memory_space<smem>>
    %c20 = arith.constant 20 : index
    %28 = memref.load %arg7[%c20] : memref<41xf32, #tpu.memory_space<smem>>
    %c21 = arith.constant 21 : index
    %29 = memref.load %arg7[%c21] : memref<41xf32, #tpu.memory_space<smem>>
    %c22 = arith.constant 22 : index
    %30 = memref.load %arg7[%c22] : memref<41xf32, #tpu.memory_space<smem>>
    %c23 = arith.constant 23 : index
    %31 = memref.load %arg7[%c23] : memref<41xf32, #tpu.memory_space<smem>>
    %c24 = arith.constant 24 : index
    %32 = memref.load %arg7[%c24] : memref<41xf32, #tpu.memory_space<smem>>
    %c25 = arith.constant 25 : index
    %33 = memref.load %arg7[%c25] : memref<41xf32, #tpu.memory_space<smem>>
    %c26 = arith.constant 26 : index
    %34 = memref.load %arg7[%c26] : memref<41xf32, #tpu.memory_space<smem>>
    %c27 = arith.constant 27 : index
    %35 = memref.load %arg7[%c27] : memref<41xf32, #tpu.memory_space<smem>>
    %c28 = arith.constant 28 : index
    %36 = memref.load %arg7[%c28] : memref<41xf32, #tpu.memory_space<smem>>
    %c29 = arith.constant 29 : index
    %37 = memref.load %arg7[%c29] : memref<41xf32, #tpu.memory_space<smem>>
    %c30 = arith.constant 30 : index
    %38 = memref.load %arg7[%c30] : memref<41xf32, #tpu.memory_space<smem>>
    %c31 = arith.constant 31 : index
    %39 = memref.load %arg7[%c31] : memref<41xf32, #tpu.memory_space<smem>>
    %c32 = arith.constant 32 : index
    %40 = memref.load %arg7[%c32] : memref<41xf32, #tpu.memory_space<smem>>
    %c33 = arith.constant 33 : index
    %41 = memref.load %arg7[%c33] : memref<41xf32, #tpu.memory_space<smem>>
    %c34 = arith.constant 34 : index
    %42 = memref.load %arg7[%c34] : memref<41xf32, #tpu.memory_space<smem>>
    %c35 = arith.constant 35 : index
    %43 = memref.load %arg7[%c35] : memref<41xf32, #tpu.memory_space<smem>>
    %c36 = arith.constant 36 : index
    %44 = memref.load %arg7[%c36] : memref<41xf32, #tpu.memory_space<smem>>
    %c37 = arith.constant 37 : index
    %45 = memref.load %arg7[%c37] : memref<41xf32, #tpu.memory_space<smem>>
    %c38 = arith.constant 38 : index
    %46 = memref.load %arg7[%c38] : memref<41xf32, #tpu.memory_space<smem>>
    %c39 = arith.constant 39 : index
    %47 = memref.load %arg7[%c39] : memref<41xf32, #tpu.memory_space<smem>>
    %c40 = arith.constant 40 : index
    %48 = memref.load %arg7[%c40] : memref<41xf32, #tpu.memory_space<smem>>
    %c0_4 = arith.constant 0 : index
    %49 = memref.load %arg8[%c0_4] : memref<41xf32, #tpu.memory_space<smem>>
    %c1_5 = arith.constant 1 : index
    %50 = memref.load %arg8[%c1_5] : memref<41xf32, #tpu.memory_space<smem>>
    %c2_6 = arith.constant 2 : index
    %51 = memref.load %arg8[%c2_6] : memref<41xf32, #tpu.memory_space<smem>>
    %c3_7 = arith.constant 3 : index
    %52 = memref.load %arg8[%c3_7] : memref<41xf32, #tpu.memory_space<smem>>
    %c4_8 = arith.constant 4 : index
    %53 = memref.load %arg8[%c4_8] : memref<41xf32, #tpu.memory_space<smem>>
    %c5_9 = arith.constant 5 : index
    %54 = memref.load %arg8[%c5_9] : memref<41xf32, #tpu.memory_space<smem>>
    %c6_10 = arith.constant 6 : index
    %55 = memref.load %arg8[%c6_10] : memref<41xf32, #tpu.memory_space<smem>>
    %c7_11 = arith.constant 7 : index
    %56 = memref.load %arg8[%c7_11] : memref<41xf32, #tpu.memory_space<smem>>
    %c8_12 = arith.constant 8 : index
    %57 = memref.load %arg8[%c8_12] : memref<41xf32, #tpu.memory_space<smem>>
    %c9_13 = arith.constant 9 : index
    %58 = memref.load %arg8[%c9_13] : memref<41xf32, #tpu.memory_space<smem>>
    %c10_14 = arith.constant 10 : index
    %59 = memref.load %arg8[%c10_14] : memref<41xf32, #tpu.memory_space<smem>>
    %c11_15 = arith.constant 11 : index
    %60 = memref.load %arg8[%c11_15] : memref<41xf32, #tpu.memory_space<smem>>
    %c12_16 = arith.constant 12 : index
    %61 = memref.load %arg8[%c12_16] : memref<41xf32, #tpu.memory_space<smem>>
    %c13_17 = arith.constant 13 : index
    %62 = memref.load %arg8[%c13_17] : memref<41xf32, #tpu.memory_space<smem>>
    %c14_18 = arith.constant 14 : index
    %63 = memref.load %arg8[%c14_18] : memref<41xf32, #tpu.memory_space<smem>>
    %c15_19 = arith.constant 15 : index
    %64 = memref.load %arg8[%c15_19] : memref<41xf32, #tpu.memory_space<smem>>
    %c16_20 = arith.constant 16 : index
    %65 = memref.load %arg8[%c16_20] : memref<41xf32, #tpu.memory_space<smem>>
    %c17_21 = arith.constant 17 : index
    %66 = memref.load %arg8[%c17_21] : memref<41xf32, #tpu.memory_space<smem>>
    %c18_22 = arith.constant 18 : index
    %67 = memref.load %arg8[%c18_22] : memref<41xf32, #tpu.memory_space<smem>>
    %c19_23 = arith.constant 19 : index
    %68 = memref.load %arg8[%c19_23] : memref<41xf32, #tpu.memory_space<smem>>
    %c20_24 = arith.constant 20 : index
    %69 = memref.load %arg8[%c20_24] : memref<41xf32, #tpu.memory_space<smem>>
    %c21_25 = arith.constant 21 : index
    %70 = memref.load %arg8[%c21_25] : memref<41xf32, #tpu.memory_space<smem>>
    %c22_26 = arith.constant 22 : index
    %71 = memref.load %arg8[%c22_26] : memref<41xf32, #tpu.memory_space<smem>>
    %c23_27 = arith.constant 23 : index
    %72 = memref.load %arg8[%c23_27] : memref<41xf32, #tpu.memory_space<smem>>
    %c24_28 = arith.constant 24 : index
    %73 = memref.load %arg8[%c24_28] : memref<41xf32, #tpu.memory_space<smem>>
    %c25_29 = arith.constant 25 : index
    %74 = memref.load %arg8[%c25_29] : memref<41xf32, #tpu.memory_space<smem>>
    %c26_30 = arith.constant 26 : index
    %75 = memref.load %arg8[%c26_30] : memref<41xf32, #tpu.memory_space<smem>>
    %c27_31 = arith.constant 27 : index
    %76 = memref.load %arg8[%c27_31] : memref<41xf32, #tpu.memory_space<smem>>
    %c28_32 = arith.constant 28 : index
    %77 = memref.load %arg8[%c28_32] : memref<41xf32, #tpu.memory_space<smem>>
    %c29_33 = arith.constant 29 : index
    %78 = memref.load %arg8[%c29_33] : memref<41xf32, #tpu.memory_space<smem>>
    %c30_34 = arith.constant 30 : index
    %79 = memref.load %arg8[%c30_34] : memref<41xf32, #tpu.memory_space<smem>>
    %c31_35 = arith.constant 31 : index
    %80 = memref.load %arg8[%c31_35] : memref<41xf32, #tpu.memory_space<smem>>
    %c32_36 = arith.constant 32 : index
    %81 = memref.load %arg8[%c32_36] : memref<41xf32, #tpu.memory_space<smem>>
    %c33_37 = arith.constant 33 : index
    %82 = memref.load %arg8[%c33_37] : memref<41xf32, #tpu.memory_space<smem>>
    %c34_38 = arith.constant 34 : index
    %83 = memref.load %arg8[%c34_38] : memref<41xf32, #tpu.memory_space<smem>>
    %c35_39 = arith.constant 35 : index
    %84 = memref.load %arg8[%c35_39] : memref<41xf32, #tpu.memory_space<smem>>
    %c36_40 = arith.constant 36 : index
    %85 = memref.load %arg8[%c36_40] : memref<41xf32, #tpu.memory_space<smem>>
    %c37_41 = arith.constant 37 : index
    %86 = memref.load %arg8[%c37_41] : memref<41xf32, #tpu.memory_space<smem>>
    %c38_42 = arith.constant 38 : index
    %87 = memref.load %arg8[%c38_42] : memref<41xf32, #tpu.memory_space<smem>>
    %c39_43 = arith.constant 39 : index
    %88 = memref.load %arg8[%c39_43] : memref<41xf32, #tpu.memory_space<smem>>
    %c40_44 = arith.constant 40 : index
    %89 = memref.load %arg8[%c40_44] : memref<41xf32, #tpu.memory_space<smem>>
    %c0_45 = arith.constant 0 : index
    %90 = memref.load %arg9[%c0_45] : memref<31xf32, #tpu.memory_space<smem>>
    %c1_46 = arith.constant 1 : index
    %91 = memref.load %arg9[%c1_46] : memref<31xf32, #tpu.memory_space<smem>>
    %c2_47 = arith.constant 2 : index
    %92 = memref.load %arg9[%c2_47] : memref<31xf32, #tpu.memory_space<smem>>
    %c3_48 = arith.constant 3 : index
    %93 = memref.load %arg9[%c3_48] : memref<31xf32, #tpu.memory_space<smem>>
    %c4_49 = arith.constant 4 : index
    %94 = memref.load %arg9[%c4_49] : memref<31xf32, #tpu.memory_space<smem>>
    %c5_50 = arith.constant 5 : index
    %95 = memref.load %arg9[%c5_50] : memref<31xf32, #tpu.memory_space<smem>>
    %c6_51 = arith.constant 6 : index
    %96 = memref.load %arg9[%c6_51] : memref<31xf32, #tpu.memory_space<smem>>
    %c7_52 = arith.constant 7 : index
    %97 = memref.load %arg9[%c7_52] : memref<31xf32, #tpu.memory_space<smem>>
    %c8_53 = arith.constant 8 : index
    %98 = memref.load %arg9[%c8_53] : memref<31xf32, #tpu.memory_space<smem>>
    %c9_54 = arith.constant 9 : index
    %99 = memref.load %arg9[%c9_54] : memref<31xf32, #tpu.memory_space<smem>>
    %c10_55 = arith.constant 10 : index
    %100 = memref.load %arg9[%c10_55] : memref<31xf32, #tpu.memory_space<smem>>
    %c11_56 = arith.constant 11 : index
    %101 = memref.load %arg9[%c11_56] : memref<31xf32, #tpu.memory_space<smem>>
    %c12_57 = arith.constant 12 : index
    %102 = memref.load %arg9[%c12_57] : memref<31xf32, #tpu.memory_space<smem>>
    %c13_58 = arith.constant 13 : index
    %103 = memref.load %arg9[%c13_58] : memref<31xf32, #tpu.memory_space<smem>>
    %c14_59 = arith.constant 14 : index
    %104 = memref.load %arg9[%c14_59] : memref<31xf32, #tpu.memory_space<smem>>
    %c15_60 = arith.constant 15 : index
    %105 = memref.load %arg9[%c15_60] : memref<31xf32, #tpu.memory_space<smem>>
    %c16_61 = arith.constant 16 : index
    %106 = memref.load %arg9[%c16_61] : memref<31xf32, #tpu.memory_space<smem>>
    %c17_62 = arith.constant 17 : index
    %107 = memref.load %arg9[%c17_62] : memref<31xf32, #tpu.memory_space<smem>>
    %c18_63 = arith.constant 18 : index
    %108 = memref.load %arg9[%c18_63] : memref<31xf32, #tpu.memory_space<smem>>
    %c19_64 = arith.constant 19 : index
    %109 = memref.load %arg9[%c19_64] : memref<31xf32, #tpu.memory_space<smem>>
    %c20_65 = arith.constant 20 : index
    %110 = memref.load %arg9[%c20_65] : memref<31xf32, #tpu.memory_space<smem>>
    %c21_66 = arith.constant 21 : index
    %111 = memref.load %arg9[%c21_66] : memref<31xf32, #tpu.memory_space<smem>>
    %c22_67 = arith.constant 22 : index
    %112 = memref.load %arg9[%c22_67] : memref<31xf32, #tpu.memory_space<smem>>
    %c23_68 = arith.constant 23 : index
    %113 = memref.load %arg9[%c23_68] : memref<31xf32, #tpu.memory_space<smem>>
    %c24_69 = arith.constant 24 : index
    %114 = memref.load %arg9[%c24_69] : memref<31xf32, #tpu.memory_space<smem>>
    %c25_70 = arith.constant 25 : index
    %115 = memref.load %arg9[%c25_70] : memref<31xf32, #tpu.memory_space<smem>>
    %c26_71 = arith.constant 26 : index
    %116 = memref.load %arg9[%c26_71] : memref<31xf32, #tpu.memory_space<smem>>
    %c27_72 = arith.constant 27 : index
    %117 = memref.load %arg9[%c27_72] : memref<31xf32, #tpu.memory_space<smem>>
    %c28_73 = arith.constant 28 : index
    %118 = memref.load %arg9[%c28_73] : memref<31xf32, #tpu.memory_space<smem>>
    %c29_74 = arith.constant 29 : index
    %119 = memref.load %arg9[%c29_74] : memref<31xf32, #tpu.memory_space<smem>>
    %c30_75 = arith.constant 30 : index
    %120 = memref.load %arg9[%c30_75] : memref<31xf32, #tpu.memory_space<smem>>
    %c0_76 = arith.constant 0 : index
    %121 = memref.load %arg10[%c0_76] : memref<10xf32, #tpu.memory_space<smem>>
    %c1_77 = arith.constant 1 : index
    %122 = memref.load %arg10[%c1_77] : memref<10xf32, #tpu.memory_space<smem>>
    %c2_78 = arith.constant 2 : index
    %123 = memref.load %arg10[%c2_78] : memref<10xf32, #tpu.memory_space<smem>>
    %c3_79 = arith.constant 3 : index
    %124 = memref.load %arg10[%c3_79] : memref<10xf32, #tpu.memory_space<smem>>
    %c4_80 = arith.constant 4 : index
    %125 = memref.load %arg10[%c4_80] : memref<10xf32, #tpu.memory_space<smem>>
    %c5_81 = arith.constant 5 : index
    %126 = memref.load %arg10[%c5_81] : memref<10xf32, #tpu.memory_space<smem>>
    %c6_82 = arith.constant 6 : index
    %127 = memref.load %arg10[%c6_82] : memref<10xf32, #tpu.memory_space<smem>>
    %c7_83 = arith.constant 7 : index
    %128 = memref.load %arg10[%c7_83] : memref<10xf32, #tpu.memory_space<smem>>
    %c8_84 = arith.constant 8 : index
    %129 = memref.load %arg10[%c8_84] : memref<10xf32, #tpu.memory_space<smem>>
    %c9_85 = arith.constant 9 : index
    %130 = memref.load %arg10[%c9_85] : memref<10xf32, #tpu.memory_space<smem>>
    %c0_86 = arith.constant 0 : index
    %131 = memref.load %arg11[%c0_86] : memref<10xf32, #tpu.memory_space<smem>>
    %c1_87 = arith.constant 1 : index
    %132 = memref.load %arg11[%c1_87] : memref<10xf32, #tpu.memory_space<smem>>
    %c2_88 = arith.constant 2 : index
    %133 = memref.load %arg11[%c2_88] : memref<10xf32, #tpu.memory_space<smem>>
    %c3_89 = arith.constant 3 : index
    %134 = memref.load %arg11[%c3_89] : memref<10xf32, #tpu.memory_space<smem>>
    %c4_90 = arith.constant 4 : index
    %135 = memref.load %arg11[%c4_90] : memref<10xf32, #tpu.memory_space<smem>>
    %c5_91 = arith.constant 5 : index
    %136 = memref.load %arg11[%c5_91] : memref<10xf32, #tpu.memory_space<smem>>
    %c6_92 = arith.constant 6 : index
    %137 = memref.load %arg11[%c6_92] : memref<10xf32, #tpu.memory_space<smem>>
    %c7_93 = arith.constant 7 : index
    %138 = memref.load %arg11[%c7_93] : memref<10xf32, #tpu.memory_space<smem>>
    %c8_94 = arith.constant 8 : index
    %139 = memref.load %arg11[%c8_94] : memref<10xf32, #tpu.memory_space<smem>>
    %c9_95 = arith.constant 9 : index
    %140 = memref.load %arg11[%c9_95] : memref<10xf32, #tpu.memory_space<smem>>
    %141 = vector.broadcast %18 : f32 to vector<16x128xf32>
    %142 = arith.mulf %141, %6 : vector<16x128xf32>
    %143 = vector.broadcast %28 : f32 to vector<16x128xf32>
    %144 = arith.addf %142, %143 : vector<16x128xf32>
    %145 = vector.broadcast %19 : f32 to vector<16x128xf32>
    %146 = arith.mulf %145, %6 : vector<16x128xf32>
    %147 = vector.broadcast %29 : f32 to vector<16x128xf32>
    %148 = arith.addf %146, %147 : vector<16x128xf32>
    %149 = vector.broadcast %20 : f32 to vector<16x128xf32>
    %150 = arith.mulf %149, %6 : vector<16x128xf32>
    %151 = vector.broadcast %30 : f32 to vector<16x128xf32>
    %152 = arith.addf %150, %151 : vector<16x128xf32>
    %153 = vector.broadcast %21 : f32 to vector<16x128xf32>
    %154 = arith.mulf %153, %6 : vector<16x128xf32>
    %155 = vector.broadcast %31 : f32 to vector<16x128xf32>
    %156 = arith.addf %154, %155 : vector<16x128xf32>
    %157 = vector.broadcast %22 : f32 to vector<16x128xf32>
    %158 = arith.mulf %157, %6 : vector<16x128xf32>
    %159 = vector.broadcast %32 : f32 to vector<16x128xf32>
    %160 = arith.addf %158, %159 : vector<16x128xf32>
    %161 = vector.broadcast %23 : f32 to vector<16x128xf32>
    %162 = arith.mulf %161, %6 : vector<16x128xf32>
    %163 = vector.broadcast %33 : f32 to vector<16x128xf32>
    %164 = arith.addf %162, %163 : vector<16x128xf32>
    %165 = vector.broadcast %24 : f32 to vector<16x128xf32>
    %166 = arith.mulf %165, %6 : vector<16x128xf32>
    %167 = vector.broadcast %34 : f32 to vector<16x128xf32>
    %168 = arith.addf %166, %167 : vector<16x128xf32>
    %169 = vector.broadcast %25 : f32 to vector<16x128xf32>
    %170 = arith.mulf %169, %6 : vector<16x128xf32>
    %171 = vector.broadcast %35 : f32 to vector<16x128xf32>
    %172 = arith.addf %170, %171 : vector<16x128xf32>
    %173 = vector.broadcast %26 : f32 to vector<16x128xf32>
    %174 = arith.mulf %173, %6 : vector<16x128xf32>
    %175 = vector.broadcast %36 : f32 to vector<16x128xf32>
    %176 = arith.addf %174, %175 : vector<16x128xf32>
    %177 = vector.broadcast %27 : f32 to vector<16x128xf32>
    %178 = arith.mulf %177, %6 : vector<16x128xf32>
    %179 = vector.broadcast %37 : f32 to vector<16x128xf32>
    %180 = arith.addf %178, %179 : vector<16x128xf32>
    %181 = vector.broadcast %59 : f32 to vector<16x128xf32>
    %182 = arith.mulf %181, %7 : vector<16x128xf32>
    %183 = vector.broadcast %69 : f32 to vector<16x128xf32>
    %184 = arith.addf %182, %183 : vector<16x128xf32>
    %185 = vector.broadcast %60 : f32 to vector<16x128xf32>
    %186 = arith.mulf %185, %7 : vector<16x128xf32>
    %187 = vector.broadcast %70 : f32 to vector<16x128xf32>
    %188 = arith.addf %186, %187 : vector<16x128xf32>
    %189 = vector.broadcast %61 : f32 to vector<16x128xf32>
    %190 = arith.mulf %189, %7 : vector<16x128xf32>
    %191 = vector.broadcast %71 : f32 to vector<16x128xf32>
    %192 = arith.addf %190, %191 : vector<16x128xf32>
    %193 = vector.broadcast %62 : f32 to vector<16x128xf32>
    %194 = arith.mulf %193, %7 : vector<16x128xf32>
    %195 = vector.broadcast %72 : f32 to vector<16x128xf32>
    %196 = arith.addf %194, %195 : vector<16x128xf32>
    %197 = vector.broadcast %63 : f32 to vector<16x128xf32>
    %198 = arith.mulf %197, %7 : vector<16x128xf32>
    %199 = vector.broadcast %73 : f32 to vector<16x128xf32>
    %200 = arith.addf %198, %199 : vector<16x128xf32>
    %201 = vector.broadcast %64 : f32 to vector<16x128xf32>
    %202 = arith.mulf %201, %7 : vector<16x128xf32>
    %203 = vector.broadcast %74 : f32 to vector<16x128xf32>
    %204 = arith.addf %202, %203 : vector<16x128xf32>
    %205 = vector.broadcast %65 : f32 to vector<16x128xf32>
    %206 = arith.mulf %205, %7 : vector<16x128xf32>
    %207 = vector.broadcast %75 : f32 to vector<16x128xf32>
    %208 = arith.addf %206, %207 : vector<16x128xf32>
    %209 = vector.broadcast %66 : f32 to vector<16x128xf32>
    %210 = arith.mulf %209, %7 : vector<16x128xf32>
    %211 = vector.broadcast %76 : f32 to vector<16x128xf32>
    %212 = arith.addf %210, %211 : vector<16x128xf32>
    %213 = vector.broadcast %67 : f32 to vector<16x128xf32>
    %214 = arith.mulf %213, %7 : vector<16x128xf32>
    %215 = vector.broadcast %77 : f32 to vector<16x128xf32>
    %216 = arith.addf %214, %215 : vector<16x128xf32>
    %217 = vector.broadcast %68 : f32 to vector<16x128xf32>
    %218 = arith.mulf %217, %7 : vector<16x128xf32>
    %219 = vector.broadcast %78 : f32 to vector<16x128xf32>
    %220 = arith.addf %218, %219 : vector<16x128xf32>
    %cst = arith.constant 0.000000e+00 : f32
    %221 = vector.broadcast %cst : f32 to vector<16x128xf32>
    %c0_96 = arith.constant 0 : index
    %c0_97 = arith.constant 0 : index
    %222 = vector.load %arg0[%c0_96, %c0_97] : memref<128x128xf32, #tpu.memory_space<vmem>>, vector<128x128xf32>
    %cst_98 = arith.constant dense<0.000000e+00> : vector<16x128xf32>
    %223 = tpu.matmul %221, %222, %cst_98 {dimension_numbers = #tpu.dot_dimension_numbers<[1], [0], [0], [1], [0, 0, 1, 1], [], []>} : vector<16x128xf32>, vector<128x128xf32>, vector<16x128xf32> -> vector<16x128xf32>
    %224 = vector.broadcast %8 : f32 to vector<16x128xf32>
    %225 = arith.mulf %224, %223 : vector<16x128xf32>
    %226 = arith.addf %225, %144 : vector<16x128xf32>
    %cst_99 = arith.constant 0.000000e+00 : f32
    %227 = vector.broadcast %cst_99 : f32 to vector<16x128xf32>
    %228 = arith.maximumf %226, %227 : vector<16x128xf32>
    %229 = vector.broadcast %38 : f32 to vector<16x128xf32>
    %230 = arith.mulf %229, %228 : vector<16x128xf32>
    %231 = vector.broadcast %9 : f32 to vector<16x128xf32>
    %232 = arith.mulf %231, %223 : vector<16x128xf32>
    %233 = arith.addf %232, %148 : vector<16x128xf32>
    %cst_100 = arith.constant 0.000000e+00 : f32
    %234 = vector.broadcast %cst_100 : f32 to vector<16x128xf32>
    %235 = arith.maximumf %233, %234 : vector<16x128xf32>
    %236 = vector.broadcast %39 : f32 to vector<16x128xf32>
    %237 = arith.mulf %236, %235 : vector<16x128xf32>
    %238 = vector.broadcast %10 : f32 to vector<16x128xf32>
    %239 = arith.mulf %238, %223 : vector<16x128xf32>
    %240 = arith.addf %239, %152 : vector<16x128xf32>
    %cst_101 = arith.constant 0.000000e+00 : f32
    %241 = vector.broadcast %cst_101 : f32 to vector<16x128xf32>
    %242 = arith.maximumf %240, %241 : vector<16x128xf32>
    %243 = vector.broadcast %40 : f32 to vector<16x128xf32>
    %244 = arith.mulf %243, %242 : vector<16x128xf32>
    %245 = vector.broadcast %11 : f32 to vector<16x128xf32>
    %246 = arith.mulf %245, %223 : vector<16x128xf32>
    %247 = arith.addf %246, %156 : vector<16x128xf32>
    %cst_102 = arith.constant 0.000000e+00 : f32
    %248 = vector.broadcast %cst_102 : f32 to vector<16x128xf32>
    %249 = arith.maximumf %247, %248 : vector<16x128xf32>
    %250 = vector.broadcast %41 : f32 to vector<16x128xf32>
    %251 = arith.mulf %250, %249 : vector<16x128xf32>
    %252 = vector.broadcast %12 : f32 to vector<16x128xf32>
    %253 = arith.mulf %252, %223 : vector<16x128xf32>
    %254 = arith.addf %253, %160 : vector<16x128xf32>
    %cst_103 = arith.constant 0.000000e+00 : f32
    %255 = vector.broadcast %cst_103 : f32 to vector<16x128xf32>
    %256 = arith.maximumf %254, %255 : vector<16x128xf32>
    %257 = vector.broadcast %42 : f32 to vector<16x128xf32>
    %258 = arith.mulf %257, %256 : vector<16x128xf32>
    %259 = vector.broadcast %13 : f32 to vector<16x128xf32>
    %260 = arith.mulf %259, %223 : vector<16x128xf32>
    %261 = arith.addf %260, %164 : vector<16x128xf32>
    %cst_104 = arith.constant 0.000000e+00 : f32
    %262 = vector.broadcast %cst_104 : f32 to vector<16x128xf32>
    %263 = arith.maximumf %261, %262 : vector<16x128xf32>
    %264 = vector.broadcast %43 : f32 to vector<16x128xf32>
    %265 = arith.mulf %264, %263 : vector<16x128xf32>
    %266 = vector.broadcast %14 : f32 to vector<16x128xf32>
    %267 = arith.mulf %266, %223 : vector<16x128xf32>
    %268 = arith.addf %267, %168 : vector<16x128xf32>
    %cst_105 = arith.constant 0.000000e+00 : f32
    %269 = vector.broadcast %cst_105 : f32 to vector<16x128xf32>
    %270 = arith.maximumf %268, %269 : vector<16x128xf32>
    %271 = vector.broadcast %44 : f32 to vector<16x128xf32>
    %272 = arith.mulf %271, %270 : vector<16x128xf32>
    %273 = vector.broadcast %15 : f32 to vector<16x128xf32>
    %274 = arith.mulf %273, %223 : vector<16x128xf32>
    %275 = arith.addf %274, %172 : vector<16x128xf32>
    %cst_106 = arith.constant 0.000000e+00 : f32
    %276 = vector.broadcast %cst_106 : f32 to vector<16x128xf32>
    %277 = arith.maximumf %275, %276 : vector<16x128xf32>
    %278 = vector.broadcast %45 : f32 to vector<16x128xf32>
    %279 = arith.mulf %278, %277 : vector<16x128xf32>
    %280 = vector.broadcast %16 : f32 to vector<16x128xf32>
    %281 = arith.mulf %280, %223 : vector<16x128xf32>
    %282 = arith.addf %281, %176 : vector<16x128xf32>
    %cst_107 = arith.constant 0.000000e+00 : f32
    %283 = vector.broadcast %cst_107 : f32 to vector<16x128xf32>
    %284 = arith.maximumf %282, %283 : vector<16x128xf32>
    %285 = vector.broadcast %46 : f32 to vector<16x128xf32>
    %286 = arith.mulf %285, %284 : vector<16x128xf32>
    %287 = vector.broadcast %17 : f32 to vector<16x128xf32>
    %288 = arith.mulf %287, %223 : vector<16x128xf32>
    %289 = arith.addf %288, %180 : vector<16x128xf32>
    %cst_108 = arith.constant 0.000000e+00 : f32
    %290 = vector.broadcast %cst_108 : f32 to vector<16x128xf32>
    %291 = arith.maximumf %289, %290 : vector<16x128xf32>
    %292 = vector.broadcast %47 : f32 to vector<16x128xf32>
    %293 = arith.mulf %292, %291 : vector<16x128xf32>
    %294 = arith.addf %230, %237 : vector<16x128xf32>
    %295 = arith.addf %244, %251 : vector<16x128xf32>
    %296 = arith.addf %258, %265 : vector<16x128xf32>
    %297 = arith.addf %272, %279 : vector<16x128xf32>
    %298 = arith.addf %286, %293 : vector<16x128xf32>
    %299 = arith.addf %294, %295 : vector<16x128xf32>
    %300 = arith.addf %296, %297 : vector<16x128xf32>
    %301 = arith.addf %299, %300 : vector<16x128xf32>
    %302 = arith.addf %301, %298 : vector<16x128xf32>
    %303 = vector.broadcast %48 : f32 to vector<16x128xf32>
    %304 = arith.addf %302, %303 : vector<16x128xf32>
    %305 = vector.broadcast %121 : f32 to vector<16x128xf32>
    %306 = arith.mulf %305, %221 : vector<16x128xf32>
    %307 = vector.broadcast %124 : f32 to vector<16x128xf32>
    %308 = arith.mulf %307, %304 : vector<16x128xf32>
    %309 = arith.addf %306, %308 : vector<16x128xf32>
    %310 = vector.broadcast %127 : f32 to vector<16x128xf32>
    %311 = arith.addf %309, %310 : vector<16x128xf32>
    %312 = arith.negf %311 : vector<16x128xf32>
    %313 = math.exp %312 : vector<16x128xf32>
    %cst_109 = arith.constant 1.000000e+00 : f32
    %314 = vector.broadcast %cst_109 : f32 to vector<16x128xf32>
    %315 = arith.addf %314, %313 : vector<16x128xf32>
    %316 = arith.divf %314, %315 : vector<16x128xf32>
    %317 = vector.broadcast %122 : f32 to vector<16x128xf32>
    %318 = arith.mulf %317, %221 : vector<16x128xf32>
    %319 = vector.broadcast %125 : f32 to vector<16x128xf32>
    %320 = arith.mulf %319, %304 : vector<16x128xf32>
    %321 = arith.addf %318, %320 : vector<16x128xf32>
    %322 = vector.broadcast %128 : f32 to vector<16x128xf32>
    %323 = arith.addf %321, %322 : vector<16x128xf32>
    %324 = arith.negf %323 : vector<16x128xf32>
    %325 = math.exp %324 : vector<16x128xf32>
    %cst_110 = arith.constant 1.000000e+00 : f32
    %326 = vector.broadcast %cst_110 : f32 to vector<16x128xf32>
    %327 = arith.addf %326, %325 : vector<16x128xf32>
    %328 = arith.divf %326, %327 : vector<16x128xf32>
    %329 = vector.broadcast %123 : f32 to vector<16x128xf32>
    %330 = arith.mulf %329, %221 : vector<16x128xf32>
    %331 = vector.broadcast %129 : f32 to vector<16x128xf32>
    %332 = arith.addf %330, %331 : vector<16x128xf32>
    %333 = vector.broadcast %126 : f32 to vector<16x128xf32>
    %334 = arith.mulf %333, %304 : vector<16x128xf32>
    %335 = vector.broadcast %130 : f32 to vector<16x128xf32>
    %336 = arith.addf %334, %335 : vector<16x128xf32>
    %337 = arith.mulf %316, %336 : vector<16x128xf32>
    %338 = arith.addf %332, %337 : vector<16x128xf32>
    %339 = math.tanh %338 : vector<16x128xf32>
    %cst_111 = arith.constant 1.000000e+00 : f32
    %340 = vector.broadcast %cst_111 : f32 to vector<16x128xf32>
    %341 = arith.subf %340, %328 : vector<16x128xf32>
    %342 = arith.mulf %341, %339 : vector<16x128xf32>
    %343 = arith.mulf %328, %304 : vector<16x128xf32>
    %344 = arith.addf %342, %343 : vector<16x128xf32>
    %c0_i32_112 = arith.constant 0 : i32
    %345 = tpu.memref_slice %arg17[%c0_i32_112] : memref<3x!tpu.dma_semaphore, #tpu.memory_space<semaphore_mem>> -> memref<1x!tpu.dma_semaphore, #tpu.memory_space<semaphore_mem>>
    %346 = tpu.memref_squeeze %345 : memref<1x!tpu.dma_semaphore, #tpu.memory_space<semaphore_mem>> -> memref<!tpu.dma_semaphore, #tpu.memory_space<semaphore_mem>>
    tpu.wait_dma2 semaphore(%346 : memref<!tpu.dma_semaphore, #tpu.memory_space<semaphore_mem>>) src(%arg1 : memref<128x128xf32, #tpu.memory_space<any>>) dst(%arg14 : memref<128x128xf32, #tpu.memory_space<vmem>>)
    %c0_113 = arith.constant 0 : index
    %c0_114 = arith.constant 0 : index
    %347 = vector.load %arg14[%c0_113, %c0_114] : memref<128x128xf32, #tpu.memory_space<vmem>>, vector<128x128xf32>
    %cst_115 = arith.constant dense<0.000000e+00> : vector<16x128xf32>
    %348 = tpu.matmul %344, %347, %cst_115 {dimension_numbers = #tpu.dot_dimension_numbers<[1], [0], [0], [1], [0, 0, 1, 1], [], []>} : vector<16x128xf32>, vector<128x128xf32>, vector<16x128xf32> -> vector<16x128xf32>
    %349 = vector.broadcast %49 : f32 to vector<16x128xf32>
    %350 = arith.mulf %349, %348 : vector<16x128xf32>
    %351 = arith.addf %350, %184 : vector<16x128xf32>
    %cst_116 = arith.constant 0.000000e+00 : f32
    %352 = vector.broadcast %cst_116 : f32 to vector<16x128xf32>
    %353 = arith.maximumf %351, %352 : vector<16x128xf32>
    %354 = vector.broadcast %79 : f32 to vector<16x128xf32>
    %355 = arith.mulf %354, %353 : vector<16x128xf32>
    %356 = vector.broadcast %50 : f32 to vector<16x128xf32>
    %357 = arith.mulf %356, %348 : vector<16x128xf32>
    %358 = arith.addf %357, %188 : vector<16x128xf32>
    %cst_117 = arith.constant 0.000000e+00 : f32
    %359 = vector.broadcast %cst_117 : f32 to vector<16x128xf32>
    %360 = arith.maximumf %358, %359 : vector<16x128xf32>
    %361 = vector.broadcast %80 : f32 to vector<16x128xf32>
    %362 = arith.mulf %361, %360 : vector<16x128xf32>
    %363 = vector.broadcast %51 : f32 to vector<16x128xf32>
    %364 = arith.mulf %363, %348 : vector<16x128xf32>
    %365 = arith.addf %364, %192 : vector<16x128xf32>
    %cst_118 = arith.constant 0.000000e+00 : f32
    %366 = vector.broadcast %cst_118 : f32 to vector<16x128xf32>
    %367 = arith.maximumf %365, %366 : vector<16x128xf32>
    %368 = vector.broadcast %81 : f32 to vector<16x128xf32>
    %369 = arith.mulf %368, %367 : vector<16x128xf32>
    %370 = vector.broadcast %52 : f32 to vector<16x128xf32>
    %371 = arith.mulf %370, %348 : vector<16x128xf32>
    %372 = arith.addf %371, %196 : vector<16x128xf32>
    %cst_119 = arith.constant 0.000000e+00 : f32
    %373 = vector.broadcast %cst_119 : f32 to vector<16x128xf32>
    %374 = arith.maximumf %372, %373 : vector<16x128xf32>
    %375 = vector.broadcast %82 : f32 to vector<16x128xf32>
    %376 = arith.mulf %375, %374 : vector<16x128xf32>
    %377 = vector.broadcast %53 : f32 to vector<16x128xf32>
    %378 = arith.mulf %377, %348 : vector<16x128xf32>
    %379 = arith.addf %378, %200 : vector<16x128xf32>
    %cst_120 = arith.constant 0.000000e+00 : f32
    %380 = vector.broadcast %cst_120 : f32 to vector<16x128xf32>
    %381 = arith.maximumf %379, %380 : vector<16x128xf32>
    %382 = vector.broadcast %83 : f32 to vector<16x128xf32>
    %383 = arith.mulf %382, %381 : vector<16x128xf32>
    %384 = vector.broadcast %54 : f32 to vector<16x128xf32>
    %385 = arith.mulf %384, %348 : vector<16x128xf32>
    %386 = arith.addf %385, %204 : vector<16x128xf32>
    %cst_121 = arith.constant 0.000000e+00 : f32
    %387 = vector.broadcast %cst_121 : f32 to vector<16x128xf32>
    %388 = arith.maximumf %386, %387 : vector<16x128xf32>
    %389 = vector.broadcast %84 : f32 to vector<16x128xf32>
    %390 = arith.mulf %389, %388 : vector<16x128xf32>
    %391 = vector.broadcast %55 : f32 to vector<16x128xf32>
    %392 = arith.mulf %391, %348 : vector<16x128xf32>
    %393 = arith.addf %392, %208 : vector<16x128xf32>
    %cst_122 = arith.constant 0.000000e+00 : f32
    %394 = vector.broadcast %cst_122 : f32 to vector<16x128xf32>
    %395 = arith.maximumf %393, %394 : vector<16x128xf32>
    %396 = vector.broadcast %85 : f32 to vector<16x128xf32>
    %397 = arith.mulf %396, %395 : vector<16x128xf32>
    %398 = vector.broadcast %56 : f32 to vector<16x128xf32>
    %399 = arith.mulf %398, %348 : vector<16x128xf32>
    %400 = arith.addf %399, %212 : vector<16x128xf32>
    %cst_123 = arith.constant 0.000000e+00 : f32
    %401 = vector.broadcast %cst_123 : f32 to vector<16x128xf32>
    %402 = arith.maximumf %400, %401 : vector<16x128xf32>
    %403 = vector.broadcast %86 : f32 to vector<16x128xf32>
    %404 = arith.mulf %403, %402 : vector<16x128xf32>
    %405 = vector.broadcast %57 : f32 to vector<16x128xf32>
    %406 = arith.mulf %405, %348 : vector<16x128xf32>
    %407 = arith.addf %406, %216 : vector<16x128xf32>
    %cst_124 = arith.constant 0.000000e+00 : f32
    %408 = vector.broadcast %cst_124 : f32 to vector<16x128xf32>
    %409 = arith.maximumf %407, %408 : vector<16x128xf32>
    %410 = vector.broadcast %87 : f32 to vector<16x128xf32>
    %411 = arith.mulf %410, %409 : vector<16x128xf32>
    %412 = vector.broadcast %58 : f32 to vector<16x128xf32>
    %413 = arith.mulf %412, %348 : vector<16x128xf32>
    %414 = arith.addf %413, %220 : vector<16x128xf32>
    %cst_125 = arith.constant 0.000000e+00 : f32
    %415 = vector.broadcast %cst_125 : f32 to vector<16x128xf32>
    %416 = arith.maximumf %414, %415 : vector<16x128xf32>
    %417 = vector.broadcast %88 : f32 to vector<16x128xf32>
    %418 = arith.mulf %417, %416 : vector<16x128xf32>
    %419 = arith.addf %355, %362 : vector<16x128xf32>
    %420 = arith.addf %369, %376 : vector<16x128xf32>
    %421 = arith.addf %383, %390 : vector<16x128xf32>
    %422 = arith.addf %397, %404 : vector<16x128xf32>
    %423 = arith.addf %411, %418 : vector<16x128xf32>
    %424 = arith.addf %419, %420 : vector<16x128xf32>
    %425 = arith.addf %421, %422 : vector<16x128xf32>
    %426 = arith.addf %424, %425 : vector<16x128xf32>
    %427 = arith.addf %426, %423 : vector<16x128xf32>
    %428 = vector.broadcast %89 : f32 to vector<16x128xf32>
    %429 = arith.addf %427, %428 : vector<16x128xf32>
    %430 = vector.broadcast %131 : f32 to vector<16x128xf32>
    %431 = arith.mulf %430, %344 : vector<16x128xf32>
    %432 = vector.broadcast %134 : f32 to vector<16x128xf32>
    %433 = arith.mulf %432, %429 : vector<16x128xf32>
    %434 = arith.addf %431, %433 : vector<16x128xf32>
    %435 = vector.broadcast %137 : f32 to vector<16x128xf32>
    %436 = arith.addf %434, %435 : vector<16x128xf32>
    %437 = arith.negf %436 : vector<16x128xf32>
    %438 = math.exp %437 : vector<16x128xf32>
    %cst_126 = arith.constant 1.000000e+00 : f32
    %439 = vector.broadcast %cst_126 : f32 to vector<16x128xf32>
    %440 = arith.addf %439, %438 : vector<16x128xf32>
    %441 = arith.divf %439, %440 : vector<16x128xf32>
    %442 = vector.broadcast %132 : f32 to vector<16x128xf32>
    %443 = arith.mulf %442, %344 : vector<16x128xf32>
    %444 = vector.broadcast %135 : f32 to vector<16x128xf32>
    %445 = arith.mulf %444, %429 : vector<16x128xf32>
    %446 = arith.addf %443, %445 : vector<16x128xf32>
    %447 = vector.broadcast %138 : f32 to vector<16x128xf32>
    %448 = arith.addf %446, %447 : vector<16x128xf32>
    %449 = arith.negf %448 : vector<16x128xf32>
    %450 = math.exp %449 : vector<16x128xf32>
    %cst_127 = arith.constant 1.000000e+00 : f32
    %451 = vector.broadcast %cst_127 : f32 to vector<16x128xf32>
    %452 = arith.addf %451, %450 : vector<16x128xf32>
    %453 = arith.divf %451, %452 : vector<16x128xf32>
    %454 = vector.broadcast %133 : f32 to vector<16x128xf32>
    %455 = arith.mulf %454, %344 : vector<16x128xf32>
    %456 = vector.broadcast %139 : f32 to vector<16x128xf32>
    %457 = arith.addf %455, %456 : vector<16x128xf32>
    %458 = vector.broadcast %136 : f32 to vector<16x128xf32>
    %459 = arith.mulf %458, %429 : vector<16x128xf32>
    %460 = vector.broadcast %140 : f32 to vector<16x128xf32>
    %461 = arith.addf %459, %460 : vector<16x128xf32>
    %462 = arith.mulf %441, %461 : vector<16x128xf32>
    %463 = arith.addf %457, %462 : vector<16x128xf32>
    %464 = math.tanh %463 : vector<16x128xf32>
    %cst_128 = arith.constant 1.000000e+00 : f32
    %465 = vector.broadcast %cst_128 : f32 to vector<16x128xf32>
    %466 = arith.subf %465, %453 : vector<16x128xf32>
    %467 = arith.mulf %466, %464 : vector<16x128xf32>
    %468 = arith.mulf %453, %429 : vector<16x128xf32>
    %469 = arith.addf %467, %468 : vector<16x128xf32>
    %c0_i32_129 = arith.constant 0 : i32
    %c13_i32 = arith.constant 13 : i32
    %470 = arith.addi %c0_i32_129, %c13_i32 : i32
    %c1_i32_130 = arith.constant 1 : i32
    %471 = scf.for %arg18 = %c0_i32_129 to %470 step %c1_i32_130 iter_args(%arg19 = %469) -> (vector<16x128xf32>)  : i32 {
      %c0_201 = arith.constant 0 : index
      %c0_202 = arith.constant 0 : index
      %926 = vector.load %arg0[%c0_201, %c0_202] : memref<128x128xf32, #tpu.memory_space<vmem>>, vector<128x128xf32>
      %cst_203 = arith.constant dense<0.000000e+00> : vector<16x128xf32>
      %927 = tpu.matmul %arg19, %926, %cst_203 {dimension_numbers = #tpu.dot_dimension_numbers<[1], [0], [0], [1], [0, 0, 1, 1], [], []>} : vector<16x128xf32>, vector<128x128xf32>, vector<16x128xf32> -> vector<16x128xf32>
      %928 = vector.broadcast %8 : f32 to vector<16x128xf32>
      %929 = arith.mulf %928, %927 : vector<16x128xf32>
      %930 = arith.addf %929, %144 : vector<16x128xf32>
      %cst_204 = arith.constant 0.000000e+00 : f32
      %931 = vector.broadcast %cst_204 : f32 to vector<16x128xf32>
      %932 = arith.maximumf %930, %931 : vector<16x128xf32>
      %933 = vector.broadcast %38 : f32 to vector<16x128xf32>
      %934 = arith.mulf %933, %932 : vector<16x128xf32>
      %935 = vector.broadcast %9 : f32 to vector<16x128xf32>
      %936 = arith.mulf %935, %927 : vector<16x128xf32>
      %937 = arith.addf %936, %148 : vector<16x128xf32>
      %cst_205 = arith.constant 0.000000e+00 : f32
      %938 = vector.broadcast %cst_205 : f32 to vector<16x128xf32>
      %939 = arith.maximumf %937, %938 : vector<16x128xf32>
      %940 = vector.broadcast %39 : f32 to vector<16x128xf32>
      %941 = arith.mulf %940, %939 : vector<16x128xf32>
      %942 = vector.broadcast %10 : f32 to vector<16x128xf32>
      %943 = arith.mulf %942, %927 : vector<16x128xf32>
      %944 = arith.addf %943, %152 : vector<16x128xf32>
      %cst_206 = arith.constant 0.000000e+00 : f32
      %945 = vector.broadcast %cst_206 : f32 to vector<16x128xf32>
      %946 = arith.maximumf %944, %945 : vector<16x128xf32>
      %947 = vector.broadcast %40 : f32 to vector<16x128xf32>
      %948 = arith.mulf %947, %946 : vector<16x128xf32>
      %949 = vector.broadcast %11 : f32 to vector<16x128xf32>
      %950 = arith.mulf %949, %927 : vector<16x128xf32>
      %951 = arith.addf %950, %156 : vector<16x128xf32>
      %cst_207 = arith.constant 0.000000e+00 : f32
      %952 = vector.broadcast %cst_207 : f32 to vector<16x128xf32>
      %953 = arith.maximumf %951, %952 : vector<16x128xf32>
      %954 = vector.broadcast %41 : f32 to vector<16x128xf32>
      %955 = arith.mulf %954, %953 : vector<16x128xf32>
      %956 = vector.broadcast %12 : f32 to vector<16x128xf32>
      %957 = arith.mulf %956, %927 : vector<16x128xf32>
      %958 = arith.addf %957, %160 : vector<16x128xf32>
      %cst_208 = arith.constant 0.000000e+00 : f32
      %959 = vector.broadcast %cst_208 : f32 to vector<16x128xf32>
      %960 = arith.maximumf %958, %959 : vector<16x128xf32>
      %961 = vector.broadcast %42 : f32 to vector<16x128xf32>
      %962 = arith.mulf %961, %960 : vector<16x128xf32>
      %963 = vector.broadcast %13 : f32 to vector<16x128xf32>
      %964 = arith.mulf %963, %927 : vector<16x128xf32>
      %965 = arith.addf %964, %164 : vector<16x128xf32>
      %cst_209 = arith.constant 0.000000e+00 : f32
      %966 = vector.broadcast %cst_209 : f32 to vector<16x128xf32>
      %967 = arith.maximumf %965, %966 : vector<16x128xf32>
      %968 = vector.broadcast %43 : f32 to vector<16x128xf32>
      %969 = arith.mulf %968, %967 : vector<16x128xf32>
      %970 = vector.broadcast %14 : f32 to vector<16x128xf32>
      %971 = arith.mulf %970, %927 : vector<16x128xf32>
      %972 = arith.addf %971, %168 : vector<16x128xf32>
      %cst_210 = arith.constant 0.000000e+00 : f32
      %973 = vector.broadcast %cst_210 : f32 to vector<16x128xf32>
      %974 = arith.maximumf %972, %973 : vector<16x128xf32>
      %975 = vector.broadcast %44 : f32 to vector<16x128xf32>
      %976 = arith.mulf %975, %974 : vector<16x128xf32>
      %977 = vector.broadcast %15 : f32 to vector<16x128xf32>
      %978 = arith.mulf %977, %927 : vector<16x128xf32>
      %979 = arith.addf %978, %172 : vector<16x128xf32>
      %cst_211 = arith.constant 0.000000e+00 : f32
      %980 = vector.broadcast %cst_211 : f32 to vector<16x128xf32>
      %981 = arith.maximumf %979, %980 : vector<16x128xf32>
      %982 = vector.broadcast %45 : f32 to vector<16x128xf32>
      %983 = arith.mulf %982, %981 : vector<16x128xf32>
      %984 = vector.broadcast %16 : f32 to vector<16x128xf32>
      %985 = arith.mulf %984, %927 : vector<16x128xf32>
      %986 = arith.addf %985, %176 : vector<16x128xf32>
      %cst_212 = arith.constant 0.000000e+00 : f32
      %987 = vector.broadcast %cst_212 : f32 to vector<16x128xf32>
      %988 = arith.maximumf %986, %987 : vector<16x128xf32>
      %989 = vector.broadcast %46 : f32 to vector<16x128xf32>
      %990 = arith.mulf %989, %988 : vector<16x128xf32>
      %991 = vector.broadcast %17 : f32 to vector<16x128xf32>
      %992 = arith.mulf %991, %927 : vector<16x128xf32>
      %993 = arith.addf %992, %180 : vector<16x128xf32>
      %cst_213 = arith.constant 0.000000e+00 : f32
      %994 = vector.broadcast %cst_213 : f32 to vector<16x128xf32>
      %995 = arith.maximumf %993, %994 : vector<16x128xf32>
      %996 = vector.broadcast %47 : f32 to vector<16x128xf32>
      %997 = arith.mulf %996, %995 : vector<16x128xf32>
      %998 = arith.addf %934, %941 : vector<16x128xf32>
      %999 = arith.addf %948, %955 : vector<16x128xf32>
      %1000 = arith.addf %962, %969 : vector<16x128xf32>
      %1001 = arith.addf %976, %983 : vector<16x128xf32>
      %1002 = arith.addf %990, %997 : vector<16x128xf32>
      %1003 = arith.addf %998, %999 : vector<16x128xf32>
      %1004 = arith.addf %1000, %1001 : vector<16x128xf32>
      %1005 = arith.addf %1003, %1004 : vector<16x128xf32>
      %1006 = arith.addf %1005, %1002 : vector<16x128xf32>
      %1007 = vector.broadcast %48 : f32 to vector<16x128xf32>
      %1008 = arith.addf %1006, %1007 : vector<16x128xf32>
      %1009 = vector.broadcast %121 : f32 to vector<16x128xf32>
      %1010 = arith.mulf %1009, %arg19 : vector<16x128xf32>
      %1011 = vector.broadcast %124 : f32 to vector<16x128xf32>
      %1012 = arith.mulf %1011, %1008 : vector<16x128xf32>
      %1013 = arith.addf %1010, %1012 : vector<16x128xf32>
      %1014 = vector.broadcast %127 : f32 to vector<16x128xf32>
      %1015 = arith.addf %1013, %1014 : vector<16x128xf32>
      %1016 = arith.negf %1015 : vector<16x128xf32>
      %1017 = math.exp %1016 : vector<16x128xf32>
      %cst_214 = arith.constant 1.000000e+00 : f32
      %1018 = vector.broadcast %cst_214 : f32 to vector<16x128xf32>
      %1019 = arith.addf %1018, %1017 : vector<16x128xf32>
      %1020 = arith.divf %1018, %1019 : vector<16x128xf32>
      %1021 = vector.broadcast %122 : f32 to vector<16x128xf32>
      %1022 = arith.mulf %1021, %arg19 : vector<16x128xf32>
      %1023 = vector.broadcast %125 : f32 to vector<16x128xf32>
      %1024 = arith.mulf %1023, %1008 : vector<16x128xf32>
      %1025 = arith.addf %1022, %1024 : vector<16x128xf32>
      %1026 = vector.broadcast %128 : f32 to vector<16x128xf32>
      %1027 = arith.addf %1025, %1026 : vector<16x128xf32>
      %1028 = arith.negf %1027 : vector<16x128xf32>
      %1029 = math.exp %1028 : vector<16x128xf32>
      %cst_215 = arith.constant 1.000000e+00 : f32
      %1030 = vector.broadcast %cst_215 : f32 to vector<16x128xf32>
      %1031 = arith.addf %1030, %1029 : vector<16x128xf32>
      %1032 = arith.divf %1030, %1031 : vector<16x128xf32>
      %1033 = vector.broadcast %123 : f32 to vector<16x128xf32>
      %1034 = arith.mulf %1033, %arg19 : vector<16x128xf32>
      %1035 = vector.broadcast %129 : f32 to vector<16x128xf32>
      %1036 = arith.addf %1034, %1035 : vector<16x128xf32>
      %1037 = vector.broadcast %126 : f32 to vector<16x128xf32>
      %1038 = arith.mulf %1037, %1008 : vector<16x128xf32>
      %1039 = vector.broadcast %130 : f32 to vector<16x128xf32>
      %1040 = arith.addf %1038, %1039 : vector<16x128xf32>
      %1041 = arith.mulf %1020, %1040 : vector<16x128xf32>
      %1042 = arith.addf %1036, %1041 : vector<16x128xf32>
      %1043 = math.tanh %1042 : vector<16x128xf32>
      %cst_216 = arith.constant 1.000000e+00 : f32
      %1044 = vector.broadcast %cst_216 : f32 to vector<16x128xf32>
      %1045 = arith.subf %1044, %1032 : vector<16x128xf32>
      %1046 = arith.mulf %1045, %1043 : vector<16x128xf32>
      %1047 = arith.mulf %1032, %1008 : vector<16x128xf32>
      %1048 = arith.addf %1046, %1047 : vector<16x128xf32>
      %c0_217 = arith.constant 0 : index
      %c0_218 = arith.constant 0 : index
      %1049 = vector.load %arg14[%c0_217, %c0_218] : memref<128x128xf32, #tpu.memory_space<vmem>>, vector<128x128xf32>
      %cst_219 = arith.constant dense<0.000000e+00> : vector<16x128xf32>
      %1050 = tpu.matmul %1048, %1049, %cst_219 {dimension_numbers = #tpu.dot_dimension_numbers<[1], [0], [0], [1], [0, 0, 1, 1], [], []>} : vector<16x128xf32>, vector<128x128xf32>, vector<16x128xf32> -> vector<16x128xf32>
      %1051 = vector.broadcast %49 : f32 to vector<16x128xf32>
      %1052 = arith.mulf %1051, %1050 : vector<16x128xf32>
      %1053 = arith.addf %1052, %184 : vector<16x128xf32>
      %cst_220 = arith.constant 0.000000e+00 : f32
      %1054 = vector.broadcast %cst_220 : f32 to vector<16x128xf32>
      %1055 = arith.maximumf %1053, %1054 : vector<16x128xf32>
      %1056 = vector.broadcast %79 : f32 to vector<16x128xf32>
      %1057 = arith.mulf %1056, %1055 : vector<16x128xf32>
      %1058 = vector.broadcast %50 : f32 to vector<16x128xf32>
      %1059 = arith.mulf %1058, %1050 : vector<16x128xf32>
      %1060 = arith.addf %1059, %188 : vector<16x128xf32>
      %cst_221 = arith.constant 0.000000e+00 : f32
      %1061 = vector.broadcast %cst_221 : f32 to vector<16x128xf32>
      %1062 = arith.maximumf %1060, %1061 : vector<16x128xf32>
      %1063 = vector.broadcast %80 : f32 to vector<16x128xf32>
      %1064 = arith.mulf %1063, %1062 : vector<16x128xf32>
      %1065 = vector.broadcast %51 : f32 to vector<16x128xf32>
      %1066 = arith.mulf %1065, %1050 : vector<16x128xf32>
      %1067 = arith.addf %1066, %192 : vector<16x128xf32>
      %cst_222 = arith.constant 0.000000e+00 : f32
      %1068 = vector.broadcast %cst_222 : f32 to vector<16x128xf32>
      %1069 = arith.maximumf %1067, %1068 : vector<16x128xf32>
      %1070 = vector.broadcast %81 : f32 to vector<16x128xf32>
      %1071 = arith.mulf %1070, %1069 : vector<16x128xf32>
      %1072 = vector.broadcast %52 : f32 to vector<16x128xf32>
      %1073 = arith.mulf %1072, %1050 : vector<16x128xf32>
      %1074 = arith.addf %1073, %196 : vector<16x128xf32>
      %cst_223 = arith.constant 0.000000e+00 : f32
      %1075 = vector.broadcast %cst_223 : f32 to vector<16x128xf32>
      %1076 = arith.maximumf %1074, %1075 : vector<16x128xf32>
      %1077 = vector.broadcast %82 : f32 to vector<16x128xf32>
      %1078 = arith.mulf %1077, %1076 : vector<16x128xf32>
      %1079 = vector.broadcast %53 : f32 to vector<16x128xf32>
      %1080 = arith.mulf %1079, %1050 : vector<16x128xf32>
      %1081 = arith.addf %1080, %200 : vector<16x128xf32>
      %cst_224 = arith.constant 0.000000e+00 : f32
      %1082 = vector.broadcast %cst_224 : f32 to vector<16x128xf32>
      %1083 = arith.maximumf %1081, %1082 : vector<16x128xf32>
      %1084 = vector.broadcast %83 : f32 to vector<16x128xf32>
      %1085 = arith.mulf %1084, %1083 : vector<16x128xf32>
      %1086 = vector.broadcast %54 : f32 to vector<16x128xf32>
      %1087 = arith.mulf %1086, %1050 : vector<16x128xf32>
      %1088 = arith.addf %1087, %204 : vector<16x128xf32>
      %cst_225 = arith.constant 0.000000e+00 : f32
      %1089 = vector.broadcast %cst_225 : f32 to vector<16x128xf32>
      %1090 = arith.maximumf %1088, %1089 : vector<16x128xf32>
      %1091 = vector.broadcast %84 : f32 to vector<16x128xf32>
      %1092 = arith.mulf %1091, %1090 : vector<16x128xf32>
      %1093 = vector.broadcast %55 : f32 to vector<16x128xf32>
      %1094 = arith.mulf %1093, %1050 : vector<16x128xf32>
      %1095 = arith.addf %1094, %208 : vector<16x128xf32>
      %cst_226 = arith.constant 0.000000e+00 : f32
      %1096 = vector.broadcast %cst_226 : f32 to vector<16x128xf32>
      %1097 = arith.maximumf %1095, %1096 : vector<16x128xf32>
      %1098 = vector.broadcast %85 : f32 to vector<16x128xf32>
      %1099 = arith.mulf %1098, %1097 : vector<16x128xf32>
      %1100 = vector.broadcast %56 : f32 to vector<16x128xf32>
      %1101 = arith.mulf %1100, %1050 : vector<16x128xf32>
      %1102 = arith.addf %1101, %212 : vector<16x128xf32>
      %cst_227 = arith.constant 0.000000e+00 : f32
      %1103 = vector.broadcast %cst_227 : f32 to vector<16x128xf32>
      %1104 = arith.maximumf %1102, %1103 : vector<16x128xf32>
      %1105 = vector.broadcast %86 : f32 to vector<16x128xf32>
      %1106 = arith.mulf %1105, %1104 : vector<16x128xf32>
      %1107 = vector.broadcast %57 : f32 to vector<16x128xf32>
      %1108 = arith.mulf %1107, %1050 : vector<16x128xf32>
      %1109 = arith.addf %1108, %216 : vector<16x128xf32>
      %cst_228 = arith.constant 0.000000e+00 : f32
      %1110 = vector.broadcast %cst_228 : f32 to vector<16x128xf32>
      %1111 = arith.maximumf %1109, %1110 : vector<16x128xf32>
      %1112 = vector.broadcast %87 : f32 to vector<16x128xf32>
      %1113 = arith.mulf %1112, %1111 : vector<16x128xf32>
      %1114 = vector.broadcast %58 : f32 to vector<16x128xf32>
      %1115 = arith.mulf %1114, %1050 : vector<16x128xf32>
      %1116 = arith.addf %1115, %220 : vector<16x128xf32>
      %cst_229 = arith.constant 0.000000e+00 : f32
      %1117 = vector.broadcast %cst_229 : f32 to vector<16x128xf32>
      %1118 = arith.maximumf %1116, %1117 : vector<16x128xf32>
      %1119 = vector.broadcast %88 : f32 to vector<16x128xf32>
      %1120 = arith.mulf %1119, %1118 : vector<16x128xf32>
      %1121 = arith.addf %1057, %1064 : vector<16x128xf32>
      %1122 = arith.addf %1071, %1078 : vector<16x128xf32>
      %1123 = arith.addf %1085, %1092 : vector<16x128xf32>
      %1124 = arith.addf %1099, %1106 : vector<16x128xf32>
      %1125 = arith.addf %1113, %1120 : vector<16x128xf32>
      %1126 = arith.addf %1121, %1122 : vector<16x128xf32>
      %1127 = arith.addf %1123, %1124 : vector<16x128xf32>
      %1128 = arith.addf %1126, %1127 : vector<16x128xf32>
      %1129 = arith.addf %1128, %1125 : vector<16x128xf32>
      %1130 = vector.broadcast %89 : f32 to vector<16x128xf32>
      %1131 = arith.addf %1129, %1130 : vector<16x128xf32>
      %1132 = vector.broadcast %131 : f32 to vector<16x128xf32>
      %1133 = arith.mulf %1132, %1048 : vector<16x128xf32>
      %1134 = vector.broadcast %134 : f32 to vector<16x128xf32>
      %1135 = arith.mulf %1134, %1131 : vector<16x128xf32>
      %1136 = arith.addf %1133, %1135 : vector<16x128xf32>
      %1137 = vector.broadcast %137 : f32 to vector<16x128xf32>
      %1138 = arith.addf %1136, %1137 : vector<16x128xf32>
      %1139 = arith.negf %1138 : vector<16x128xf32>
      %1140 = math.exp %1139 : vector<16x128xf32>
      %cst_230 = arith.constant 1.000000e+00 : f32
      %1141 = vector.broadcast %cst_230 : f32 to vector<16x128xf32>
      %1142 = arith.addf %1141, %1140 : vector<16x128xf32>
      %1143 = arith.divf %1141, %1142 : vector<16x128xf32>
      %1144 = vector.broadcast %132 : f32 to vector<16x128xf32>
      %1145 = arith.mulf %1144, %1048 : vector<16x128xf32>
      %1146 = vector.broadcast %135 : f32 to vector<16x128xf32>
      %1147 = arith.mulf %1146, %1131 : vector<16x128xf32>
      %1148 = arith.addf %1145, %1147 : vector<16x128xf32>
      %1149 = vector.broadcast %138 : f32 to vector<16x128xf32>
      %1150 = arith.addf %1148, %1149 : vector<16x128xf32>
      %1151 = arith.negf %1150 : vector<16x128xf32>
      %1152 = math.exp %1151 : vector<16x128xf32>
      %cst_231 = arith.constant 1.000000e+00 : f32
      %1153 = vector.broadcast %cst_231 : f32 to vector<16x128xf32>
      %1154 = arith.addf %1153, %1152 : vector<16x128xf32>
      %1155 = arith.divf %1153, %1154 : vector<16x128xf32>
      %1156 = vector.broadcast %133 : f32 to vector<16x128xf32>
      %1157 = arith.mulf %1156, %1048 : vector<16x128xf32>
      %1158 = vector.broadcast %139 : f32 to vector<16x128xf32>
      %1159 = arith.addf %1157, %1158 : vector<16x128xf32>
      %1160 = vector.broadcast %136 : f32 to vector<16x128xf32>
      %1161 = arith.mulf %1160, %1131 : vector<16x128xf32>
      %1162 = vector.broadcast %140 : f32 to vector<16x128xf32>
      %1163 = arith.addf %1161, %1162 : vector<16x128xf32>
      %1164 = arith.mulf %1143, %1163 : vector<16x128xf32>
      %1165 = arith.addf %1159, %1164 : vector<16x128xf32>
      %1166 = math.tanh %1165 : vector<16x128xf32>
      %cst_232 = arith.constant 1.000000e+00 : f32
      %1167 = vector.broadcast %cst_232 : f32 to vector<16x128xf32>
      %1168 = arith.subf %1167, %1155 : vector<16x128xf32>
      %1169 = arith.mulf %1168, %1166 : vector<16x128xf32>
      %1170 = arith.mulf %1155, %1131 : vector<16x128xf32>
      %1171 = arith.addf %1169, %1170 : vector<16x128xf32>
      scf.yield %1171 : vector<16x128xf32>
    }
    %c0_131 = arith.constant 0 : index
    %c0_132 = arith.constant 0 : index
    %472 = vector.load %arg0[%c0_131, %c0_132] : memref<128x128xf32, #tpu.memory_space<vmem>>, vector<128x128xf32>
    %cst_133 = arith.constant dense<0.000000e+00> : vector<16x128xf32>
    %473 = tpu.matmul %471, %472, %cst_133 {dimension_numbers = #tpu.dot_dimension_numbers<[1], [0], [0], [1], [0, 0, 1, 1], [], []>} : vector<16x128xf32>, vector<128x128xf32>, vector<16x128xf32> -> vector<16x128xf32>
    %474 = vector.broadcast %8 : f32 to vector<16x128xf32>
    %475 = arith.mulf %474, %473 : vector<16x128xf32>
    %476 = arith.addf %475, %144 : vector<16x128xf32>
    %cst_134 = arith.constant 0.000000e+00 : f32
    %477 = vector.broadcast %cst_134 : f32 to vector<16x128xf32>
    %478 = arith.maximumf %476, %477 : vector<16x128xf32>
    %479 = vector.broadcast %38 : f32 to vector<16x128xf32>
    %480 = arith.mulf %479, %478 : vector<16x128xf32>
    %481 = vector.broadcast %9 : f32 to vector<16x128xf32>
    %482 = arith.mulf %481, %473 : vector<16x128xf32>
    %483 = arith.addf %482, %148 : vector<16x128xf32>
    %cst_135 = arith.constant 0.000000e+00 : f32
    %484 = vector.broadcast %cst_135 : f32 to vector<16x128xf32>
    %485 = arith.maximumf %483, %484 : vector<16x128xf32>
    %486 = vector.broadcast %39 : f32 to vector<16x128xf32>
    %487 = arith.mulf %486, %485 : vector<16x128xf32>
    %488 = vector.broadcast %10 : f32 to vector<16x128xf32>
    %489 = arith.mulf %488, %473 : vector<16x128xf32>
    %490 = arith.addf %489, %152 : vector<16x128xf32>
    %cst_136 = arith.constant 0.000000e+00 : f32
    %491 = vector.broadcast %cst_136 : f32 to vector<16x128xf32>
    %492 = arith.maximumf %490, %491 : vector<16x128xf32>
    %493 = vector.broadcast %40 : f32 to vector<16x128xf32>
    %494 = arith.mulf %493, %492 : vector<16x128xf32>
    %495 = vector.broadcast %11 : f32 to vector<16x128xf32>
    %496 = arith.mulf %495, %473 : vector<16x128xf32>
    %497 = arith.addf %496, %156 : vector<16x128xf32>
    %cst_137 = arith.constant 0.000000e+00 : f32
    %498 = vector.broadcast %cst_137 : f32 to vector<16x128xf32>
    %499 = arith.maximumf %497, %498 : vector<16x128xf32>
    %500 = vector.broadcast %41 : f32 to vector<16x128xf32>
    %501 = arith.mulf %500, %499 : vector<16x128xf32>
    %502 = vector.broadcast %12 : f32 to vector<16x128xf32>
    %503 = arith.mulf %502, %473 : vector<16x128xf32>
    %504 = arith.addf %503, %160 : vector<16x128xf32>
    %cst_138 = arith.constant 0.000000e+00 : f32
    %505 = vector.broadcast %cst_138 : f32 to vector<16x128xf32>
    %506 = arith.maximumf %504, %505 : vector<16x128xf32>
    %507 = vector.broadcast %42 : f32 to vector<16x128xf32>
    %508 = arith.mulf %507, %506 : vector<16x128xf32>
    %509 = vector.broadcast %13 : f32 to vector<16x128xf32>
    %510 = arith.mulf %509, %473 : vector<16x128xf32>
    %511 = arith.addf %510, %164 : vector<16x128xf32>
    %cst_139 = arith.constant 0.000000e+00 : f32
    %512 = vector.broadcast %cst_139 : f32 to vector<16x128xf32>
    %513 = arith.maximumf %511, %512 : vector<16x128xf32>
    %514 = vector.broadcast %43 : f32 to vector<16x128xf32>
    %515 = arith.mulf %514, %513 : vector<16x128xf32>
    %516 = vector.broadcast %14 : f32 to vector<16x128xf32>
    %517 = arith.mulf %516, %473 : vector<16x128xf32>
    %518 = arith.addf %517, %168 : vector<16x128xf32>
    %cst_140 = arith.constant 0.000000e+00 : f32
    %519 = vector.broadcast %cst_140 : f32 to vector<16x128xf32>
    %520 = arith.maximumf %518, %519 : vector<16x128xf32>
    %521 = vector.broadcast %44 : f32 to vector<16x128xf32>
    %522 = arith.mulf %521, %520 : vector<16x128xf32>
    %523 = vector.broadcast %15 : f32 to vector<16x128xf32>
    %524 = arith.mulf %523, %473 : vector<16x128xf32>
    %525 = arith.addf %524, %172 : vector<16x128xf32>
    %cst_141 = arith.constant 0.000000e+00 : f32
    %526 = vector.broadcast %cst_141 : f32 to vector<16x128xf32>
    %527 = arith.maximumf %525, %526 : vector<16x128xf32>
    %528 = vector.broadcast %45 : f32 to vector<16x128xf32>
    %529 = arith.mulf %528, %527 : vector<16x128xf32>
    %530 = vector.broadcast %16 : f32 to vector<16x128xf32>
    %531 = arith.mulf %530, %473 : vector<16x128xf32>
    %532 = arith.addf %531, %176 : vector<16x128xf32>
    %cst_142 = arith.constant 0.000000e+00 : f32
    %533 = vector.broadcast %cst_142 : f32 to vector<16x128xf32>
    %534 = arith.maximumf %532, %533 : vector<16x128xf32>
    %535 = vector.broadcast %46 : f32 to vector<16x128xf32>
    %536 = arith.mulf %535, %534 : vector<16x128xf32>
    %537 = vector.broadcast %17 : f32 to vector<16x128xf32>
    %538 = arith.mulf %537, %473 : vector<16x128xf32>
    %539 = arith.addf %538, %180 : vector<16x128xf32>
    %cst_143 = arith.constant 0.000000e+00 : f32
    %540 = vector.broadcast %cst_143 : f32 to vector<16x128xf32>
    %541 = arith.maximumf %539, %540 : vector<16x128xf32>
    %542 = vector.broadcast %47 : f32 to vector<16x128xf32>
    %543 = arith.mulf %542, %541 : vector<16x128xf32>
    %544 = arith.addf %480, %487 : vector<16x128xf32>
    %545 = arith.addf %494, %501 : vector<16x128xf32>
    %546 = arith.addf %508, %515 : vector<16x128xf32>
    %547 = arith.addf %522, %529 : vector<16x128xf32>
    %548 = arith.addf %536, %543 : vector<16x128xf32>
    %549 = arith.addf %544, %545 : vector<16x128xf32>
    %550 = arith.addf %546, %547 : vector<16x128xf32>
    %551 = arith.addf %549, %550 : vector<16x128xf32>
    %552 = arith.addf %551, %548 : vector<16x128xf32>
    %553 = vector.broadcast %48 : f32 to vector<16x128xf32>
    %554 = arith.addf %552, %553 : vector<16x128xf32>
    %555 = vector.broadcast %121 : f32 to vector<16x128xf32>
    %556 = arith.mulf %555, %471 : vector<16x128xf32>
    %557 = vector.broadcast %124 : f32 to vector<16x128xf32>
    %558 = arith.mulf %557, %554 : vector<16x128xf32>
    %559 = arith.addf %556, %558 : vector<16x128xf32>
    %560 = vector.broadcast %127 : f32 to vector<16x128xf32>
    %561 = arith.addf %559, %560 : vector<16x128xf32>
    %562 = arith.negf %561 : vector<16x128xf32>
    %563 = math.exp %562 : vector<16x128xf32>
    %cst_144 = arith.constant 1.000000e+00 : f32
    %564 = vector.broadcast %cst_144 : f32 to vector<16x128xf32>
    %565 = arith.addf %564, %563 : vector<16x128xf32>
    %566 = arith.divf %564, %565 : vector<16x128xf32>
    %567 = vector.broadcast %122 : f32 to vector<16x128xf32>
    %568 = arith.mulf %567, %471 : vector<16x128xf32>
    %569 = vector.broadcast %125 : f32 to vector<16x128xf32>
    %570 = arith.mulf %569, %554 : vector<16x128xf32>
    %571 = arith.addf %568, %570 : vector<16x128xf32>
    %572 = vector.broadcast %128 : f32 to vector<16x128xf32>
    %573 = arith.addf %571, %572 : vector<16x128xf32>
    %574 = arith.negf %573 : vector<16x128xf32>
    %575 = math.exp %574 : vector<16x128xf32>
    %cst_145 = arith.constant 1.000000e+00 : f32
    %576 = vector.broadcast %cst_145 : f32 to vector<16x128xf32>
    %577 = arith.addf %576, %575 : vector<16x128xf32>
    %578 = arith.divf %576, %577 : vector<16x128xf32>
    %579 = vector.broadcast %123 : f32 to vector<16x128xf32>
    %580 = arith.mulf %579, %471 : vector<16x128xf32>
    %581 = vector.broadcast %129 : f32 to vector<16x128xf32>
    %582 = arith.addf %580, %581 : vector<16x128xf32>
    %583 = vector.broadcast %126 : f32 to vector<16x128xf32>
    %584 = arith.mulf %583, %554 : vector<16x128xf32>
    %585 = vector.broadcast %130 : f32 to vector<16x128xf32>
    %586 = arith.addf %584, %585 : vector<16x128xf32>
    %587 = arith.mulf %566, %586 : vector<16x128xf32>
    %588 = arith.addf %582, %587 : vector<16x128xf32>
    %589 = math.tanh %588 : vector<16x128xf32>
    %cst_146 = arith.constant 1.000000e+00 : f32
    %590 = vector.broadcast %cst_146 : f32 to vector<16x128xf32>
    %591 = arith.subf %590, %578 : vector<16x128xf32>
    %592 = arith.mulf %591, %589 : vector<16x128xf32>
    %593 = arith.mulf %578, %554 : vector<16x128xf32>
    %594 = arith.addf %592, %593 : vector<16x128xf32>
    %c0_147 = arith.constant 0 : index
    %c0_148 = arith.constant 0 : index
    %595 = vector.load %arg14[%c0_147, %c0_148] : memref<128x128xf32, #tpu.memory_space<vmem>>, vector<128x128xf32>
    %cst_149 = arith.constant dense<0.000000e+00> : vector<16x128xf32>
    %596 = tpu.matmul %594, %595, %cst_149 {dimension_numbers = #tpu.dot_dimension_numbers<[1], [0], [0], [1], [0, 0, 1, 1], [], []>} : vector<16x128xf32>, vector<128x128xf32>, vector<16x128xf32> -> vector<16x128xf32>
    %597 = vector.broadcast %49 : f32 to vector<16x128xf32>
    %598 = arith.mulf %597, %596 : vector<16x128xf32>
    %599 = arith.addf %598, %184 : vector<16x128xf32>
    %cst_150 = arith.constant 0.000000e+00 : f32
    %600 = vector.broadcast %cst_150 : f32 to vector<16x128xf32>
    %601 = arith.maximumf %599, %600 : vector<16x128xf32>
    %602 = vector.broadcast %79 : f32 to vector<16x128xf32>
    %603 = arith.mulf %602, %601 : vector<16x128xf32>
    %604 = vector.broadcast %50 : f32 to vector<16x128xf32>
    %605 = arith.mulf %604, %596 : vector<16x128xf32>
    %606 = arith.addf %605, %188 : vector<16x128xf32>
    %cst_151 = arith.constant 0.000000e+00 : f32
    %607 = vector.broadcast %cst_151 : f32 to vector<16x128xf32>
    %608 = arith.maximumf %606, %607 : vector<16x128xf32>
    %609 = vector.broadcast %80 : f32 to vector<16x128xf32>
    %610 = arith.mulf %609, %608 : vector<16x128xf32>
    %611 = vector.broadcast %51 : f32 to vector<16x128xf32>
    %612 = arith.mulf %611, %596 : vector<16x128xf32>
    %613 = arith.addf %612, %192 : vector<16x128xf32>
    %cst_152 = arith.constant 0.000000e+00 : f32
    %614 = vector.broadcast %cst_152 : f32 to vector<16x128xf32>
    %615 = arith.maximumf %613, %614 : vector<16x128xf32>
    %616 = vector.broadcast %81 : f32 to vector<16x128xf32>
    %617 = arith.mulf %616, %615 : vector<16x128xf32>
    %618 = vector.broadcast %52 : f32 to vector<16x128xf32>
    %619 = arith.mulf %618, %596 : vector<16x128xf32>
    %620 = arith.addf %619, %196 : vector<16x128xf32>
    %cst_153 = arith.constant 0.000000e+00 : f32
    %621 = vector.broadcast %cst_153 : f32 to vector<16x128xf32>
    %622 = arith.maximumf %620, %621 : vector<16x128xf32>
    %623 = vector.broadcast %82 : f32 to vector<16x128xf32>
    %624 = arith.mulf %623, %622 : vector<16x128xf32>
    %625 = vector.broadcast %53 : f32 to vector<16x128xf32>
    %626 = arith.mulf %625, %596 : vector<16x128xf32>
    %627 = arith.addf %626, %200 : vector<16x128xf32>
    %cst_154 = arith.constant 0.000000e+00 : f32
    %628 = vector.broadcast %cst_154 : f32 to vector<16x128xf32>
    %629 = arith.maximumf %627, %628 : vector<16x128xf32>
    %630 = vector.broadcast %83 : f32 to vector<16x128xf32>
    %631 = arith.mulf %630, %629 : vector<16x128xf32>
    %632 = vector.broadcast %54 : f32 to vector<16x128xf32>
    %633 = arith.mulf %632, %596 : vector<16x128xf32>
    %634 = arith.addf %633, %204 : vector<16x128xf32>
    %cst_155 = arith.constant 0.000000e+00 : f32
    %635 = vector.broadcast %cst_155 : f32 to vector<16x128xf32>
    %636 = arith.maximumf %634, %635 : vector<16x128xf32>
    %637 = vector.broadcast %84 : f32 to vector<16x128xf32>
    %638 = arith.mulf %637, %636 : vector<16x128xf32>
    %639 = vector.broadcast %55 : f32 to vector<16x128xf32>
    %640 = arith.mulf %639, %596 : vector<16x128xf32>
    %641 = arith.addf %640, %208 : vector<16x128xf32>
    %cst_156 = arith.constant 0.000000e+00 : f32
    %642 = vector.broadcast %cst_156 : f32 to vector<16x128xf32>
    %643 = arith.maximumf %641, %642 : vector<16x128xf32>
    %644 = vector.broadcast %85 : f32 to vector<16x128xf32>
    %645 = arith.mulf %644, %643 : vector<16x128xf32>
    %646 = vector.broadcast %56 : f32 to vector<16x128xf32>
    %647 = arith.mulf %646, %596 : vector<16x128xf32>
    %648 = arith.addf %647, %212 : vector<16x128xf32>
    %cst_157 = arith.constant 0.000000e+00 : f32
    %649 = vector.broadcast %cst_157 : f32 to vector<16x128xf32>
    %650 = arith.maximumf %648, %649 : vector<16x128xf32>
    %651 = vector.broadcast %86 : f32 to vector<16x128xf32>
    %652 = arith.mulf %651, %650 : vector<16x128xf32>
    %653 = vector.broadcast %57 : f32 to vector<16x128xf32>
    %654 = arith.mulf %653, %596 : vector<16x128xf32>
    %655 = arith.addf %654, %216 : vector<16x128xf32>
    %cst_158 = arith.constant 0.000000e+00 : f32
    %656 = vector.broadcast %cst_158 : f32 to vector<16x128xf32>
    %657 = arith.maximumf %655, %656 : vector<16x128xf32>
    %658 = vector.broadcast %87 : f32 to vector<16x128xf32>
    %659 = arith.mulf %658, %657 : vector<16x128xf32>
    %660 = vector.broadcast %58 : f32 to vector<16x128xf32>
    %661 = arith.mulf %660, %596 : vector<16x128xf32>
    %662 = arith.addf %661, %220 : vector<16x128xf32>
    %cst_159 = arith.constant 0.000000e+00 : f32
    %663 = vector.broadcast %cst_159 : f32 to vector<16x128xf32>
    %664 = arith.maximumf %662, %663 : vector<16x128xf32>
    %665 = vector.broadcast %88 : f32 to vector<16x128xf32>
    %666 = arith.mulf %665, %664 : vector<16x128xf32>
    %667 = arith.addf %603, %610 : vector<16x128xf32>
    %668 = arith.addf %617, %624 : vector<16x128xf32>
    %669 = arith.addf %631, %638 : vector<16x128xf32>
    %670 = arith.addf %645, %652 : vector<16x128xf32>
    %671 = arith.addf %659, %666 : vector<16x128xf32>
    %672 = arith.addf %667, %668 : vector<16x128xf32>
    %673 = arith.addf %669, %670 : vector<16x128xf32>
    %674 = arith.addf %672, %673 : vector<16x128xf32>
    %675 = arith.addf %674, %671 : vector<16x128xf32>
    %676 = vector.broadcast %89 : f32 to vector<16x128xf32>
    %677 = arith.addf %675, %676 : vector<16x128xf32>
    %678 = vector.broadcast %131 : f32 to vector<16x128xf32>
    %679 = arith.mulf %678, %594 : vector<16x128xf32>
    %680 = vector.broadcast %134 : f32 to vector<16x128xf32>
    %681 = arith.mulf %680, %677 : vector<16x128xf32>
    %682 = arith.addf %679, %681 : vector<16x128xf32>
    %683 = vector.broadcast %137 : f32 to vector<16x128xf32>
    %684 = arith.addf %682, %683 : vector<16x128xf32>
    %685 = arith.negf %684 : vector<16x128xf32>
    %686 = math.exp %685 : vector<16x128xf32>
    %cst_160 = arith.constant 1.000000e+00 : f32
    %687 = vector.broadcast %cst_160 : f32 to vector<16x128xf32>
    %688 = arith.addf %687, %686 : vector<16x128xf32>
    %689 = arith.divf %687, %688 : vector<16x128xf32>
    %690 = vector.broadcast %132 : f32 to vector<16x128xf32>
    %691 = arith.mulf %690, %594 : vector<16x128xf32>
    %692 = vector.broadcast %135 : f32 to vector<16x128xf32>
    %693 = arith.mulf %692, %677 : vector<16x128xf32>
    %694 = arith.addf %691, %693 : vector<16x128xf32>
    %695 = vector.broadcast %138 : f32 to vector<16x128xf32>
    %696 = arith.addf %694, %695 : vector<16x128xf32>
    %697 = arith.negf %696 : vector<16x128xf32>
    %698 = math.exp %697 : vector<16x128xf32>
    %cst_161 = arith.constant 1.000000e+00 : f32
    %699 = vector.broadcast %cst_161 : f32 to vector<16x128xf32>
    %700 = arith.addf %699, %698 : vector<16x128xf32>
    %701 = arith.divf %699, %700 : vector<16x128xf32>
    %702 = vector.broadcast %133 : f32 to vector<16x128xf32>
    %703 = arith.mulf %702, %594 : vector<16x128xf32>
    %704 = vector.broadcast %139 : f32 to vector<16x128xf32>
    %705 = arith.addf %703, %704 : vector<16x128xf32>
    %706 = vector.broadcast %136 : f32 to vector<16x128xf32>
    %707 = arith.mulf %706, %677 : vector<16x128xf32>
    %708 = vector.broadcast %140 : f32 to vector<16x128xf32>
    %709 = arith.addf %707, %708 : vector<16x128xf32>
    %710 = arith.mulf %689, %709 : vector<16x128xf32>
    %711 = arith.addf %705, %710 : vector<16x128xf32>
    %712 = math.tanh %711 : vector<16x128xf32>
    %cst_162 = arith.constant 1.000000e+00 : f32
    %713 = vector.broadcast %cst_162 : f32 to vector<16x128xf32>
    %714 = arith.subf %713, %701 : vector<16x128xf32>
    %715 = arith.mulf %714, %712 : vector<16x128xf32>
    %716 = arith.mulf %701, %677 : vector<16x128xf32>
    %717 = arith.addf %715, %716 : vector<16x128xf32>
    %c1_i32_163 = arith.constant 1 : i32
    %718 = tpu.memref_slice %arg17[%c1_i32_163] : memref<3x!tpu.dma_semaphore, #tpu.memory_space<semaphore_mem>> -> memref<1x!tpu.dma_semaphore, #tpu.memory_space<semaphore_mem>>
    %719 = tpu.memref_squeeze %718 : memref<1x!tpu.dma_semaphore, #tpu.memory_space<semaphore_mem>> -> memref<!tpu.dma_semaphore, #tpu.memory_space<semaphore_mem>>
    tpu.wait_dma2 semaphore(%719 : memref<!tpu.dma_semaphore, #tpu.memory_space<semaphore_mem>>) src(%arg2 : memref<128x128xf32, #tpu.memory_space<any>>) dst(%arg15 : memref<128x128xf32, #tpu.memory_space<vmem>>)
    %c2_i32_164 = arith.constant 2 : i32
    %720 = tpu.memref_slice %arg17[%c2_i32_164] : memref<3x!tpu.dma_semaphore, #tpu.memory_space<semaphore_mem>> -> memref<1x!tpu.dma_semaphore, #tpu.memory_space<semaphore_mem>>
    %721 = tpu.memref_squeeze %720 : memref<1x!tpu.dma_semaphore, #tpu.memory_space<semaphore_mem>> -> memref<!tpu.dma_semaphore, #tpu.memory_space<semaphore_mem>>
    tpu.wait_dma2 semaphore(%721 : memref<!tpu.dma_semaphore, #tpu.memory_space<semaphore_mem>>) src(%arg3 : memref<128x128xf32, #tpu.memory_space<any>>) dst(%arg16 : memref<128x128xf32, #tpu.memory_space<vmem>>)
    %c0_165 = arith.constant 0 : index
    %c0_166 = arith.constant 0 : index
    %722 = vector.load %arg15[%c0_165, %c0_166] : memref<128x128xf32, #tpu.memory_space<vmem>>, vector<128x128xf32>
    %cst_167 = arith.constant dense<0.000000e+00> : vector<16x128xf32>
    %723 = tpu.matmul %717, %722, %cst_167 {dimension_numbers = #tpu.dot_dimension_numbers<[1], [0], [0], [1], [0, 0, 1, 1], [], []>} : vector<16x128xf32>, vector<128x128xf32>, vector<16x128xf32> -> vector<16x128xf32>
    %c0_168 = arith.constant 0 : index
    %c0_169 = arith.constant 0 : index
    %724 = vector.load %arg16[%c0_168, %c0_169] : memref<128x128xf32, #tpu.memory_space<vmem>>, vector<128x128xf32>
    %cst_170 = arith.constant dense<0.000000e+00> : vector<16x128xf32>
    %725 = tpu.matmul %594, %724, %cst_170 {dimension_numbers = #tpu.dot_dimension_numbers<[1], [0], [0], [1], [0, 0, 1, 1], [], []>} : vector<16x128xf32>, vector<128x128xf32>, vector<16x128xf32> -> vector<16x128xf32>
    %726 = vector.broadcast %90 : f32 to vector<16x128xf32>
    %727 = arith.mulf %726, %723 : vector<16x128xf32>
    %728 = vector.broadcast %100 : f32 to vector<16x128xf32>
    %729 = arith.addf %727, %728 : vector<16x128xf32>
    %cst_171 = arith.constant 0.000000e+00 : f32
    %730 = vector.broadcast %cst_171 : f32 to vector<16x128xf32>
    %731 = arith.maximumf %729, %730 : vector<16x128xf32>
    %732 = vector.broadcast %110 : f32 to vector<16x128xf32>
    %733 = arith.mulf %732, %731 : vector<16x128xf32>
    %734 = vector.broadcast %91 : f32 to vector<16x128xf32>
    %735 = arith.mulf %734, %723 : vector<16x128xf32>
    %736 = vector.broadcast %101 : f32 to vector<16x128xf32>
    %737 = arith.addf %735, %736 : vector<16x128xf32>
    %cst_172 = arith.constant 0.000000e+00 : f32
    %738 = vector.broadcast %cst_172 : f32 to vector<16x128xf32>
    %739 = arith.maximumf %737, %738 : vector<16x128xf32>
    %740 = vector.broadcast %111 : f32 to vector<16x128xf32>
    %741 = arith.mulf %740, %739 : vector<16x128xf32>
    %742 = vector.broadcast %92 : f32 to vector<16x128xf32>
    %743 = arith.mulf %742, %723 : vector<16x128xf32>
    %744 = vector.broadcast %102 : f32 to vector<16x128xf32>
    %745 = arith.addf %743, %744 : vector<16x128xf32>
    %cst_173 = arith.constant 0.000000e+00 : f32
    %746 = vector.broadcast %cst_173 : f32 to vector<16x128xf32>
    %747 = arith.maximumf %745, %746 : vector<16x128xf32>
    %748 = vector.broadcast %112 : f32 to vector<16x128xf32>
    %749 = arith.mulf %748, %747 : vector<16x128xf32>
    %750 = vector.broadcast %93 : f32 to vector<16x128xf32>
    %751 = arith.mulf %750, %723 : vector<16x128xf32>
    %752 = vector.broadcast %103 : f32 to vector<16x128xf32>
    %753 = arith.addf %751, %752 : vector<16x128xf32>
    %cst_174 = arith.constant 0.000000e+00 : f32
    %754 = vector.broadcast %cst_174 : f32 to vector<16x128xf32>
    %755 = arith.maximumf %753, %754 : vector<16x128xf32>
    %756 = vector.broadcast %113 : f32 to vector<16x128xf32>
    %757 = arith.mulf %756, %755 : vector<16x128xf32>
    %758 = vector.broadcast %94 : f32 to vector<16x128xf32>
    %759 = arith.mulf %758, %723 : vector<16x128xf32>
    %760 = vector.broadcast %104 : f32 to vector<16x128xf32>
    %761 = arith.addf %759, %760 : vector<16x128xf32>
    %cst_175 = arith.constant 0.000000e+00 : f32
    %762 = vector.broadcast %cst_175 : f32 to vector<16x128xf32>
    %763 = arith.maximumf %761, %762 : vector<16x128xf32>
    %764 = vector.broadcast %114 : f32 to vector<16x128xf32>
    %765 = arith.mulf %764, %763 : vector<16x128xf32>
    %766 = vector.broadcast %95 : f32 to vector<16x128xf32>
    %767 = arith.mulf %766, %723 : vector<16x128xf32>
    %768 = vector.broadcast %105 : f32 to vector<16x128xf32>
    %769 = arith.addf %767, %768 : vector<16x128xf32>
    %cst_176 = arith.constant 0.000000e+00 : f32
    %770 = vector.broadcast %cst_176 : f32 to vector<16x128xf32>
    %771 = arith.maximumf %769, %770 : vector<16x128xf32>
    %772 = vector.broadcast %115 : f32 to vector<16x128xf32>
    %773 = arith.mulf %772, %771 : vector<16x128xf32>
    %774 = vector.broadcast %96 : f32 to vector<16x128xf32>
    %775 = arith.mulf %774, %723 : vector<16x128xf32>
    %776 = vector.broadcast %106 : f32 to vector<16x128xf32>
    %777 = arith.addf %775, %776 : vector<16x128xf32>
    %cst_177 = arith.constant 0.000000e+00 : f32
    %778 = vector.broadcast %cst_177 : f32 to vector<16x128xf32>
    %779 = arith.maximumf %777, %778 : vector<16x128xf32>
    %780 = vector.broadcast %116 : f32 to vector<16x128xf32>
    %781 = arith.mulf %780, %779 : vector<16x128xf32>
    %782 = vector.broadcast %97 : f32 to vector<16x128xf32>
    %783 = arith.mulf %782, %723 : vector<16x128xf32>
    %784 = vector.broadcast %107 : f32 to vector<16x128xf32>
    %785 = arith.addf %783, %784 : vector<16x128xf32>
    %cst_178 = arith.constant 0.000000e+00 : f32
    %786 = vector.broadcast %cst_178 : f32 to vector<16x128xf32>
    %787 = arith.maximumf %785, %786 : vector<16x128xf32>
    %788 = vector.broadcast %117 : f32 to vector<16x128xf32>
    %789 = arith.mulf %788, %787 : vector<16x128xf32>
    %790 = vector.broadcast %98 : f32 to vector<16x128xf32>
    %791 = arith.mulf %790, %723 : vector<16x128xf32>
    %792 = vector.broadcast %108 : f32 to vector<16x128xf32>
    %793 = arith.addf %791, %792 : vector<16x128xf32>
    %cst_179 = arith.constant 0.000000e+00 : f32
    %794 = vector.broadcast %cst_179 : f32 to vector<16x128xf32>
    %795 = arith.maximumf %793, %794 : vector<16x128xf32>
    %796 = vector.broadcast %118 : f32 to vector<16x128xf32>
    %797 = arith.mulf %796, %795 : vector<16x128xf32>
    %798 = vector.broadcast %99 : f32 to vector<16x128xf32>
    %799 = arith.mulf %798, %723 : vector<16x128xf32>
    %800 = vector.broadcast %109 : f32 to vector<16x128xf32>
    %801 = arith.addf %799, %800 : vector<16x128xf32>
    %cst_180 = arith.constant 0.000000e+00 : f32
    %802 = vector.broadcast %cst_180 : f32 to vector<16x128xf32>
    %803 = arith.maximumf %801, %802 : vector<16x128xf32>
    %804 = vector.broadcast %119 : f32 to vector<16x128xf32>
    %805 = arith.mulf %804, %803 : vector<16x128xf32>
    %806 = arith.addf %733, %741 : vector<16x128xf32>
    %807 = arith.addf %749, %757 : vector<16x128xf32>
    %808 = arith.addf %765, %773 : vector<16x128xf32>
    %809 = arith.addf %781, %789 : vector<16x128xf32>
    %810 = arith.addf %797, %805 : vector<16x128xf32>
    %811 = arith.addf %806, %807 : vector<16x128xf32>
    %812 = arith.addf %808, %809 : vector<16x128xf32>
    %813 = arith.addf %811, %812 : vector<16x128xf32>
    %814 = arith.addf %813, %810 : vector<16x128xf32>
    %815 = vector.broadcast %120 : f32 to vector<16x128xf32>
    %816 = arith.addf %814, %815 : vector<16x128xf32>
    %c0_181 = arith.constant 0 : index
    %c0_182 = arith.constant 0 : index
    %817 = vector.load %arg4[%c0_181, %c0_182] : memref<16x128xf32, #tpu.memory_space<vmem>>, vector<16x128xf32>
    %818 = arith.addf %816, %817 : vector<16x128xf32>
    %cst_183 = arith.constant 0.000000e+00 : f32
    %819 = vector.broadcast %cst_183 : f32 to vector<16x128xf32>
    %820 = arith.subf %819, %818 : vector<16x128xf32>
    %821 = arith.negf %820 : vector<16x128xf32>
    %822 = math.exp %821 : vector<16x128xf32>
    %cst_184 = arith.constant 1.000000e+00 : f32
    %823 = vector.broadcast %cst_184 : f32 to vector<16x128xf32>
    %824 = arith.addf %823, %822 : vector<16x128xf32>
    %825 = arith.divf %823, %824 : vector<16x128xf32>
    %c0_185 = arith.constant 0 : index
    %c0_186 = arith.constant 0 : index
    %826 = vector.load %arg12[%c0_185, %c0_186] : memref<16x128xf32, #tpu.memory_space<vmem>>, vector<16x128xf32>
    tpu.vector_store %arg12[%c0_185, %c0_186], %825 {strides = array<i32>} : memref<16x128xf32, #tpu.memory_space<vmem>>, vector<16x128xf32>,
    %827 = vector.broadcast %90 : f32 to vector<16x128xf32>
    %828 = arith.mulf %827, %725 : vector<16x128xf32>
    %829 = vector.broadcast %100 : f32 to vector<16x128xf32>
    %830 = arith.addf %828, %829 : vector<16x128xf32>
    %cst_187 = arith.constant 0.000000e+00 : f32
    %831 = vector.broadcast %cst_187 : f32 to vector<16x128xf32>
    %832 = arith.maximumf %830, %831 : vector<16x128xf32>
    %833 = vector.broadcast %110 : f32 to vector<16x128xf32>
    %834 = arith.mulf %833, %832 : vector<16x128xf32>
    %835 = vector.broadcast %91 : f32 to vector<16x128xf32>
    %836 = arith.mulf %835, %725 : vector<16x128xf32>
    %837 = vector.broadcast %101 : f32 to vector<16x128xf32>
    %838 = arith.addf %836, %837 : vector<16x128xf32>
    %cst_188 = arith.constant 0.000000e+00 : f32
    %839 = vector.broadcast %cst_188 : f32 to vector<16x128xf32>
    %840 = arith.maximumf %838, %839 : vector<16x128xf32>
    %841 = vector.broadcast %111 : f32 to vector<16x128xf32>
    %842 = arith.mulf %841, %840 : vector<16x128xf32>
    %843 = vector.broadcast %92 : f32 to vector<16x128xf32>
    %844 = arith.mulf %843, %725 : vector<16x128xf32>
    %845 = vector.broadcast %102 : f32 to vector<16x128xf32>
    %846 = arith.addf %844, %845 : vector<16x128xf32>
    %cst_189 = arith.constant 0.000000e+00 : f32
    %847 = vector.broadcast %cst_189 : f32 to vector<16x128xf32>
    %848 = arith.maximumf %846, %847 : vector<16x128xf32>
    %849 = vector.broadcast %112 : f32 to vector<16x128xf32>
    %850 = arith.mulf %849, %848 : vector<16x128xf32>
    %851 = vector.broadcast %93 : f32 to vector<16x128xf32>
    %852 = arith.mulf %851, %725 : vector<16x128xf32>
    %853 = vector.broadcast %103 : f32 to vector<16x128xf32>
    %854 = arith.addf %852, %853 : vector<16x128xf32>
    %cst_190 = arith.constant 0.000000e+00 : f32
    %855 = vector.broadcast %cst_190 : f32 to vector<16x128xf32>
    %856 = arith.maximumf %854, %855 : vector<16x128xf32>
    %857 = vector.broadcast %113 : f32 to vector<16x128xf32>
    %858 = arith.mulf %857, %856 : vector<16x128xf32>
    %859 = vector.broadcast %94 : f32 to vector<16x128xf32>
    %860 = arith.mulf %859, %725 : vector<16x128xf32>
    %861 = vector.broadcast %104 : f32 to vector<16x128xf32>
    %862 = arith.addf %860, %861 : vector<16x128xf32>
    %cst_191 = arith.constant 0.000000e+00 : f32
    %863 = vector.broadcast %cst_191 : f32 to vector<16x128xf32>
    %864 = arith.maximumf %862, %863 : vector<16x128xf32>
    %865 = vector.broadcast %114 : f32 to vector<16x128xf32>
    %866 = arith.mulf %865, %864 : vector<16x128xf32>
    %867 = vector.broadcast %95 : f32 to vector<16x128xf32>
    %868 = arith.mulf %867, %725 : vector<16x128xf32>
    %869 = vector.broadcast %105 : f32 to vector<16x128xf32>
    %870 = arith.addf %868, %869 : vector<16x128xf32>
    %cst_192 = arith.constant 0.000000e+00 : f32
    %871 = vector.broadcast %cst_192 : f32 to vector<16x128xf32>
    %872 = arith.maximumf %870, %871 : vector<16x128xf32>
    %873 = vector.broadcast %115 : f32 to vector<16x128xf32>
    %874 = arith.mulf %873, %872 : vector<16x128xf32>
    %875 = vector.broadcast %96 : f32 to vector<16x128xf32>
    %876 = arith.mulf %875, %725 : vector<16x128xf32>
    %877 = vector.broadcast %106 : f32 to vector<16x128xf32>
    %878 = arith.addf %876, %877 : vector<16x128xf32>
    %cst_193 = arith.constant 0.000000e+00 : f32
    %879 = vector.broadcast %cst_193 : f32 to vector<16x128xf32>
    %880 = arith.maximumf %878, %879 : vector<16x128xf32>
    %881 = vector.broadcast %116 : f32 to vector<16x128xf32>
    %882 = arith.mulf %881, %880 : vector<16x128xf32>
    %883 = vector.broadcast %97 : f32 to vector<16x128xf32>
    %884 = arith.mulf %883, %725 : vector<16x128xf32>
    %885 = vector.broadcast %107 : f32 to vector<16x128xf32>
    %886 = arith.addf %884, %885 : vector<16x128xf32>
    %cst_194 = arith.constant 0.000000e+00 : f32
    %887 = vector.broadcast %cst_194 : f32 to vector<16x128xf32>
    %888 = arith.maximumf %886, %887 : vector<16x128xf32>
    %889 = vector.broadcast %117 : f32 to vector<16x128xf32>
    %890 = arith.mulf %889, %888 : vector<16x128xf32>
    %891 = vector.broadcast %98 : f32 to vector<16x128xf32>
    %892 = arith.mulf %891, %725 : vector<16x128xf32>
    %893 = vector.broadcast %108 : f32 to vector<16x128xf32>
    %894 = arith.addf %892, %893 : vector<16x128xf32>
    %cst_195 = arith.constant 0.000000e+00 : f32
    %895 = vector.broadcast %cst_195 : f32 to vector<16x128xf32>
    %896 = arith.maximumf %894, %895 : vector<16x128xf32>
    %897 = vector.broadcast %118 : f32 to vector<16x128xf32>
    %898 = arith.mulf %897, %896 : vector<16x128xf32>
    %899 = vector.broadcast %99 : f32 to vector<16x128xf32>
    %900 = arith.mulf %899, %725 : vector<16x128xf32>
    %901 = vector.broadcast %109 : f32 to vector<16x128xf32>
    %902 = arith.addf %900, %901 : vector<16x128xf32>
    %cst_196 = arith.constant 0.000000e+00 : f32
    %903 = vector.broadcast %cst_196 : f32 to vector<16x128xf32>
    %904 = arith.maximumf %902, %903 : vector<16x128xf32>
    %905 = vector.broadcast %119 : f32 to vector<16x128xf32>
    %906 = arith.mulf %905, %904 : vector<16x128xf32>
    %907 = arith.addf %834, %842 : vector<16x128xf32>
    %908 = arith.addf %850, %858 : vector<16x128xf32>
    %909 = arith.addf %866, %874 : vector<16x128xf32>
    %910 = arith.addf %882, %890 : vector<16x128xf32>
    %911 = arith.addf %898, %906 : vector<16x128xf32>
    %912 = arith.addf %907, %908 : vector<16x128xf32>
    %913 = arith.addf %909, %910 : vector<16x128xf32>
    %914 = arith.addf %912, %913 : vector<16x128xf32>
    %915 = arith.addf %914, %911 : vector<16x128xf32>
    %916 = vector.broadcast %120 : f32 to vector<16x128xf32>
    %917 = arith.addf %915, %916 : vector<16x128xf32>
    %cst_197 = arith.constant 0.000000e+00 : f32
    %918 = vector.broadcast %cst_197 : f32 to vector<16x128xf32>
    %919 = arith.subf %918, %917 : vector<16x128xf32>
    %920 = arith.negf %919 : vector<16x128xf32>
    %921 = math.exp %920 : vector<16x128xf32>
    %cst_198 = arith.constant 1.000000e+00 : f32
    %922 = vector.broadcast %cst_198 : f32 to vector<16x128xf32>
    %923 = arith.addf %922, %921 : vector<16x128xf32>
    %924 = arith.divf %922, %923 : vector<16x128xf32>
    %c0_199 = arith.constant 0 : index
    %c0_200 = arith.constant 0 : index
    %925 = vector.load %arg13[%c0_199, %c0_200] : memref<16x128xf32, #tpu.memory_space<vmem>>, vector<16x128xf32>
    tpu.vector_store %arg13[%c0_199, %c0_200], %924 {strides = array<i32>} : memref<16x128xf32, #tpu.memory_space<vmem>>, vector<16x128xf32>,
    return
  }
}

</mosaic_0001>

<llo_original>
// kernel: tpu_custom_call.1
$region0: #{tpu_custom_call.1}
  #allocation0 [shape = 'u32[]', space=smem, size = 0x4, offset = 0x4, fixed_abs, tag = 'smem constant byte address 0x4 - core index']
  #allocation1 [shape = 'u32[144,128]{1,0:T(1,128)}', space=vmem, size = 0x12000, scoped, tag = 'internal scratch']
  #allocation2 [shape = 'f32[128,128]{1,0:T(8,128)}', space=vmem, size = 0x10000, scoped, tag = 'scratch operand']
  #allocation3 [shape = 'f32[128,128]{1,0:T(8,128)}', space=vmem, size = 0x10000, scoped, tag = 'scratch operand']
  #allocation4 [shape = 'f32[128,128]{1,0:T(8,128)}', space=vmem, size = 0x10000, scoped, tag = 'scratch operand']
  #allocation5 [shape = 's32[3]{0}', space=sflag, size = 0xc, scoped, tag = 'scratch operand']
  #allocation23 [shape = 's32[]', space=sflag, size = 0x4, offset = 0, fixed_abs, tag = 'sflag constant byte address 0x0 - dummy sync flag']
  #allocation24 [shape = 's32[]', space=sflag, size = 0x4, offset = 0, fixed_abs, tag = 'sflag constant byte address 0x0 - dummy sync flag']
  #allocation25 [shape = 'u32[]', space=smem, size = 0x4, offset = 0x44, fixed_abs, tag = 'smem constant byte address 0x44 - assertion arg 0']
  #allocation26 [shape = 'u32[]', space=smem, size = 0x4, offset = 0x48, fixed_abs, tag = 'smem constant byte address 0x48 - assertion arg 1']
  #allocation27 [shape = 's32[]', space=sflag, size = 0x4, offset = 0, fixed_abs, tag = 'sflag constant byte address 0x0 - dummy sync flag']
  #allocation28 [shape = 's32[]', space=sflag, size = 0x4, offset = 0, fixed_abs, tag = 'sflag constant byte address 0x0 - dummy sync flag']
  #allocation29 [shape = 's32[]', space=sflag, size = 0x4, offset = 0, fixed_abs, tag = 'sflag constant byte address 0x0 - dummy sync flag']
  #allocation30 [shape = 's32[]', space=sflag, size = 0x4, offset = 0, fixed_abs, tag = 'sflag constant byte address 0x0 - dummy sync flag']
  %s0 = inlined_call_operand.hbm [shape: f32[128,128], index: 0, kind: input, shape index: {}]
  %s1 = inlined_call_operand.hbm [shape: f32[128,128], index: 1, kind: input, shape index: {}]
  %s2 = inlined_call_operand.hbm [shape: f32[128,128], index: 2, kind: input, shape index: {}]
  %s3 = inlined_call_operand.hbm [shape: f32[128,128], index: 3, kind: input, shape index: {}]
  %s4 = inlined_call_operand.hbm [shape: f32[16,128], index: 4, kind: input, shape index: {}]
  %s5 = inlined_call_operand.vmem [shape: f32[16,128], index: 5, kind: input, shape index: {}]
  %s6 = inlined_call_operand.hbm [shape: f32[16,128], index: 6, kind: input, shape index: {}]
  %s7 = inlined_call_operand.vmem [shape: f32[41], index: 7, kind: input, shape index: {}]
  %s8 = inlined_call_operand.vmem [shape: f32[41], index: 8, kind: input, shape index: {}]
  %s9 = inlined_call_operand.vmem [shape: f32[31], index: 9, kind: input, shape index: {}]
  %s10 = inlined_call_operand.vmem [shape: f32[10], index: 10, kind: input, shape index: {}]
  %s11 = inlined_call_operand.vmem [shape: f32[10], index: 11, kind: input, shape index: {}]
  %s12 = inlined_call_operand.hbm [shape: f32[16,128], index: 12, kind: output, shape index: {0}]
  %s13 = inlined_call_operand.hbm [shape: f32[16,128], index: 13, kind: output, shape index: {1}]
  %14 = xla_tuple %s12, %s13
  %s15 = sld [smem:[#allocation0]]
  $region105: #{tpu_custom_call.1} parent=0
    _
  %s17 = ssub.s32 1, %s15
  %s18 = scalar_select 0, %s17, %s15
  $region1: #{tpu_custom_call.1} parent=0
    #allocation6 [shape = 'u8[65536]{0}', space=vmem, size = 0x10000, scoped, tag = 'input window, operand 0, single buffered']
    #allocation7 [shape = 's32[1]{0}', space=sflag, size = 0x4, scoped, tag = 'scoped memory for tpu_custom_call.1']
    #allocation8 [shape = 's32[1]{0}', space=sflag, size = 0x4, scoped, tag = 'scoped memory for tpu_custom_call.1']
    #allocation9 [shape = 's32[1]{0}', space=sflag, size = 0x4, scoped, tag = 'scoped memory for tpu_custom_call.1']
    #allocation10 [shape = 'u8[8192]{0}', space=vmem, size = 0x2000, scoped, tag = 'input window, operand 4, single buffered']
    #allocation11 [shape = 's32[1]{0}', space=sflag, size = 0x4, scoped, tag = 'scoped memory for tpu_custom_call.1']
    #allocation12 [shape = 'u8[8192]{0}', space=vmem, size = 0x2000, scoped, tag = 'input window, operand 6, single buffered']
    #allocation13 [shape = 'u8[512]{0}', space=smem, size = 0x200, scoped, tag = 'input window, operand 7, single buffered']
    #allocation14 [shape = 'u8[512]{0}', space=smem, size = 0x200, scoped, tag = 'input window, operand 8, single buffered']
    #allocation15 [shape = 's32[1]{0}', space=sflag, size = 0x4, scoped, tag = 'scoped memory for tpu_custom_call.1']
    #allocation16 [shape = 'u8[512]{0}', space=smem, size = 0x200, scoped, tag = 'input window, operand 9, single buffered']
    #allocation17 [shape = 'u8[512]{0}', space=smem, size = 0x200, scoped, tag = 'input window, operand 10, single buffered']
    #allocation18 [shape = 's32[1]{0}', space=sflag, size = 0x4, scoped, tag = 'scoped memory for tpu_custom_call.1']
    #allocation19 [shape = 'u8[512]{0}', space=smem, size = 0x200, scoped, tag = 'input window, operand 11, single buffered']
    #allocation20 [shape = 'u8[8192]{0}', space=vmem, size = 0x2000, scoped, tag = 'output window, operand 0, single buffered']
    #allocation21 [shape = 'u8[8192]{0}', space=vmem, size = 0x2000, scoped, tag = 'output window, operand 1, single buffered']
    #allocation22 [shape = 's32[1]{0}', space=sflag, size = 0x4, scoped, tag = 'scoped memory for tpu_custom_call.1']
    %19 = vsyncpa [#allocation7], 0
    %20 = vsyncpa [#allocation11], 0
    %21 = vsyncpa [#allocation9], 0
    %22 = vsyncpa [#allocation15], 0
    %23 = vsyncpa [#allocation18], 0
    %24 = vsyncpa [#allocation8], 0
    %25 = vsyncpa [#allocation22], 0
    // Predicated region
    $region2: #{tpu_custom_call.1} parent=1 // pred_check
      _
    $region3: #{tpu_custom_call.1} parent=1 // pred_check_branch
      %27 = sbr.rel (0) target = $region5
    $region4: #{tpu_custom_call.1} parent=1 // pred_region
      %s29 = ssub.s32 2048, 2048
      %30 = vsyncadd [#allocation7], %s29
      %s31 = sshll.u32 [#allocation6], 4
      %s32 = int_to_ptr.vmem [resolvable:$true] %s31
      %37 = dma.hbm_to_vmem [thread:$0]  %s0, 2048, %s32, [#allocation7], 128, 128, 8
    $region5: #{tpu_custom_call.1} parent=1 // pred_fallthru
      _
    // Predicated region
    $region6: #{tpu_custom_call.1} parent=1 // pred_check
      _
    $region7: #{tpu_custom_call.1} parent=1 // pred_check_branch
      %39 = sbr.rel (0) target = $region9
    $region8: #{tpu_custom_call.1} parent=1 // pred_region
      %s41 = ssub.s32 256, 256
      %42 = vsyncadd [#allocation11], %s41
      %s43 = sshll.u32 [#allocation10], 4
      %s44 = int_to_ptr.vmem [resolvable:$true] %s43
      %49 = dma.hbm_to_vmem [thread:$0]  %s4, 256, %s44, [#allocation11], 128, 128, 8
    $region9: #{tpu_custom_call.1} parent=1 // pred_fallthru
      _
    // Predicated region
    $region10: #{tpu_custom_call.1} parent=1 // pred_check
      _
    $region11: #{tpu_custom_call.1} parent=1 // pred_check_branch
      %51 = sbr.rel (0) target = $region13
    $region12: #{tpu_custom_call.1} parent=1 // pred_region
      _
    $region13: #{tpu_custom_call.1} parent=1 // pred_fallthru
      _
    // Predicated region
    $region14: #{tpu_custom_call.1} parent=1 // pred_check
      _
    $region15: #{tpu_custom_call.1} parent=1 // pred_check_branch
      %53 = sbr.rel (0) target = $region17
    $region16: #{tpu_custom_call.1} parent=1 // pred_region
      %s55 = ssub.s32 256, 256
      %56 = vsyncadd [#allocation11], %s55
      %s57 = sshll.u32 [#allocation12], 4
      %s58 = int_to_ptr.vmem [resolvable:$true] %s57
      %63 = dma.hbm_to_vmem [thread:$0]  %s6, 256, %s58, [#allocation11], 128, 128, 8
    $region17: #{tpu_custom_call.1} parent=1 // pred_fallthru
      _
    // Predicated region
    $region18: #{tpu_custom_call.1} parent=1 // pred_check
      _
    $region19: #{tpu_custom_call.1} parent=1 // pred_check_branch
      %65 = sbr.rel (0) target = $region21
    $region20: #{tpu_custom_call.1} parent=1 // pred_region
      %s67 = ssub.s32 16, 16
      %68 = vsyncadd [#allocation9], %s67
      %s70 = sshll.u32 %s7, 4
      %s71 = int_to_ptr.vmem [resolvable:$true] %s70
      %73 = dma.vmem_to_smem %s71, 16, [#allocation13], [#allocation9]
    $region21: #{tpu_custom_call.1} parent=1 // pred_fallthru
      _
    // Predicated region
    $region22: #{tpu_custom_call.1} parent=1 // pred_check
      _
    $region23: #{tpu_custom_call.1} parent=1 // pred_check_branch
      %75 = sbr.rel (0) target = $region25
    $region24: #{tpu_custom_call.1} parent=1 // pred_region
      %s77 = ssub.s32 16, 16
      %78 = vsyncadd [#allocation15], %s77
      %s80 = sshll.u32 %s8, 4
      %s81 = int_to_ptr.vmem [resolvable:$true] %s80
      %83 = dma.vmem_to_smem %s81, 16, [#allocation14], [#allocation15]
    $region25: #{tpu_custom_call.1} parent=1 // pred_fallthru
      _
    // Predicated region
    $region26: #{tpu_custom_call.1} parent=1 // pred_check
      _
    $region27: #{tpu_custom_call.1} parent=1 // pred_check_branch
      %85 = sbr.rel (0) target = $region29
    $region28: #{tpu_custom_call.1} parent=1 // pred_region
      %s87 = ssub.s32 16, 16
      %88 = vsyncadd [#allocation15], %s87
      %s90 = sshll.u32 %s9, 4
      %s91 = int_to_ptr.vmem [resolvable:$true] %s90
      %93 = dma.vmem_to_smem %s91, 16, [#allocation16], [#allocation15]
    $region29: #{tpu_custom_call.1} parent=1 // pred_fallthru
      _
    // Predicated region
    $region30: #{tpu_custom_call.1} parent=1 // pred_check
      _
    $region31: #{tpu_custom_call.1} parent=1 // pred_check_branch
      %95 = sbr.rel (0) target = $region33
    $region32: #{tpu_custom_call.1} parent=1 // pred_region
      %s97 = ssub.s32 16, 16
      %98 = vsyncadd [#allocation18], %s97
      %s100 = sshll.u32 %s10, 4
      %s101 = int_to_ptr.vmem [resolvable:$true] %s100
      %103 = dma.vmem_to_smem %s101, 16, [#allocation17], [#allocation18]
    $region33: #{tpu_custom_call.1} parent=1 // pred_fallthru
      _
    // Predicated region
    $region34: #{tpu_custom_call.1} parent=1 // pred_check
      _
    $region35: #{tpu_custom_call.1} parent=1 // pred_check_branch
      %105 = sbr.rel (0) target = $region37
    $region36: #{tpu_custom_call.1} parent=1 // pred_region
      %s107 = ssub.s32 16, 16
      %108 = vsyncadd [#allocation18], %s107
      %s110 = sshll.u32 %s11, 4
      %s111 = int_to_ptr.vmem [resolvable:$true] %s110
      %113 = dma.vmem_to_smem %s111, 16, [#allocation19], [#allocation18]
    $region37: #{tpu_custom_call.1} parent=1 // pred_fallthru
      _
    // Predicated region
    $region38: #{tpu_custom_call.1} parent=1 // pred_check
      _
    $region39: #{tpu_custom_call.1} parent=1 // pred_check_branch
      %115 = sbr.rel (0) target = $region41
    $region40: #{tpu_custom_call.1} parent=1 // pred_region
      %116 = dma.done [#allocation7], 2048
    $region41: #{tpu_custom_call.1} parent=1 // pred_fallthru
      _
    // Predicated region
    $region42: #{tpu_custom_call.1} parent=1 // pred_check
      _
    $region43: #{tpu_custom_call.1} parent=1 // pred_check_branch
      %118 = sbr.rel (0) target = $region45
    $region44: #{tpu_custom_call.1} parent=1 // pred_region
      %119 = dma.done [#allocation11], 256
    $region45: #{tpu_custom_call.1} parent=1 // pred_fallthru
      _
    // Predicated region
    $region46: #{tpu_custom_call.1} parent=1 // pred_check
      _
    $region47: #{tpu_custom_call.1} parent=1 // pred_check_branch
      %121 = sbr.rel (0) target = $region49
    $region48: #{tpu_custom_call.1} parent=1 // pred_region
      %122 = dma.done [#allocation11], 256
    $region49: #{tpu_custom_call.1} parent=1 // pred_fallthru
      _
    // Predicated region
    $region50: #{tpu_custom_call.1} parent=1 // pred_check
      _
    $region51: #{tpu_custom_call.1} parent=1 // pred_check_branch
      %124 = sbr.rel (0) target = $region53
    $region52: #{tpu_custom_call.1} parent=1 // pred_region
      %125 = dma.done [#allocation9], 16
    $region53: #{tpu_custom_call.1} parent=1 // pred_fallthru
      _
    // Predicated region
    $region54: #{tpu_custom_call.1} parent=1 // pred_check
      _
    $region55: #{tpu_custom_call.1} parent=1 // pred_check_branch
      %127 = sbr.rel (0) target = $region57
    $region56: #{tpu_custom_call.1} parent=1 // pred_region
      %128 = dma.done [#allocation15], 16
    $region57: #{tpu_custom_call.1} parent=1 // pred_fallthru
      _
    // Predicated region
    $region58: #{tpu_custom_call.1} parent=1 // pred_check
      _
    $region59: #{tpu_custom_call.1} parent=1 // pred_check_branch
      %130 = sbr.rel (0) target = $region61
    $region60: #{tpu_custom_call.1} parent=1 // pred_region
      %131 = dma.done [#allocation15], 16
    $region61: #{tpu_custom_call.1} parent=1 // pred_fallthru
      _
    // Predicated region
    $region62: #{tpu_custom_call.1} parent=1 // pred_check
      _
    $region63: #{tpu_custom_call.1} parent=1 // pred_check_branch
      %133 = sbr.rel (0) target = $region65
    $region64: #{tpu_custom_call.1} parent=1 // pred_region
      %134 = dma.done [#allocation18], 16
    $region65: #{tpu_custom_call.1} parent=1 // pred_fallthru
      _
    // Predicated region
    $region66: #{tpu_custom_call.1} parent=1 // pred_check
      _
    $region67: #{tpu_custom_call.1} parent=1 // pred_check_branch
      %136 = sbr.rel (0) target = $region69
    $region68: #{tpu_custom_call.1} parent=1 // pred_region
      %137 = dma.done [#allocation18], 16
    $region69: #{tpu_custom_call.1} parent=1 // pred_fallthru
      _
    %138 = sfence
    // Predicated region
    $region70: #{tpu_custom_call.1} parent=1 // pred_check
      _
    $region71: #{tpu_custom_call.1} parent=1 // pred_check_branch
      %140 = sbr.rel target = $region73
    $region72: #{tpu_custom_call.1} parent=1 // pred_region
      %141 = sst [smem:[#allocation25]] [#allocation24]
      %142 = sst [smem:[#allocation26]] [#allocation23]
    $region73: #{tpu_custom_call.1} parent=1 // pred_fallthru
      _
    %144 = shalt.err (0)
    %s146 = sshll.u32 [#allocation2], 4
    %s147 = int_to_ptr.vmem [resolvable:$true] %s146
    %149 = dma.hbm_to_vmem [thread:$0]  %s1, 2048, %s147, [#allocation5]
    %s150 = scalar_lea.sflag [#allocation5], 1
    // Predicated region
    $region74: #{tpu_custom_call.1} parent=1 // pred_check
      _
    $region75: #{tpu_custom_call.1} parent=1 // pred_check_branch
      %152 = sbr.rel target = $region77
    $region76: #{tpu_custom_call.1} parent=1 // pred_region
      %153 = sst [smem:[#allocation25]] [#allocation28]
      %154 = sst [smem:[#allocation26]] [#allocation27]
    $region77: #{tpu_custom_call.1} parent=1 // pred_fallthru
      _
    %156 = shalt.err (0)
    %s158 = sshll.u32 [#allocation3], 4
    %s159 = int_to_ptr.vmem [resolvable:$true] %s158
    %161 = dma.hbm_to_vmem [thread:$0]  %s2, 2048, %s159, %s150
    %s162 = scalar_lea.sflag [#allocation5], 2
    // Predicated region
    $region78: #{tpu_custom_call.1} parent=1 // pred_check
      _
    $region79: #{tpu_custom_call.1} parent=1 // pred_check_branch
      %164 = sbr.rel target = $region81
    $region80: #{tpu_custom_call.1} parent=1 // pred_region
      %165 = sst [smem:[#allocation25]] [#allocation30]
      %166 = sst [smem:[#allocation26]] [#allocation29]
    $region81: #{tpu_custom_call.1} parent=1 // pred_fallthru
      _
    %168 = shalt.err (0)
    %s170 = sshll.u32 [#allocation4], 4
    %s171 = int_to_ptr.vmem [resolvable:$true] %s170
    %173 = dma.hbm_to_vmem [thread:$0]  %s3, 2048, %s171, %s162
    %v174 = vld [vmem:[%s5] sm:$0xff]
    %v175 = vld [vmem:[%s5 + $0x8] sm:$0xff]
    %v176 = vld [vmem:[#allocation12] sm:$0xff]
    %v177 = vld [vmem:[#allocation12 + $0x8] sm:$0xff]
    %s178 = sld [smem:[#allocation13]]
    %s179 = sld [smem:[#allocation13 + $0x1]]
    %s180 = sld [smem:[#allocation13 + $0x2]]
    %s181 = sld [smem:[#allocation13 + $0x3]]
    %s182 = sld [smem:[#allocation13 + $0x4]]
    %s183 = sld [smem:[#allocation13 + $0x5]]
    %s184 = sld [smem:[#allocation13 + $0x6]]
    %s185 = sld [smem:[#allocation13 + $0x7]]
    %s186 = sld [smem:[#allocation13 + $0x8]]
    %s187 = sld [smem:[#allocation13 + $0x9]]
    %s188 = sld [smem:[#allocation13 + $0xa]]
    %s189 = sld [smem:[#allocation13 + $0xb]]
    %s190 = sld [smem:[#allocation13 + $0xc]]
    %s191 = sld [smem:[#allocation13 + $0xd]]
    %s192 = sld [smem:[#allocation13 + $0xe]]
    %s193 = sld [smem:[#allocation13 + $0xf]]
    %s194 = sld [smem:[#allocation13 + $0x10]]
    %s195 = sld [smem:[#allocation13 + $0x11]]
    %s196 = sld [smem:[#allocation13 + $0x12]]
    %s197 = sld [smem:[#allocation13 + $0x13]]
    %s198 = sld [smem:[#allocation13 + $0x14]]
    %s199 = sld [smem:[#allocation13 + $0x15]]
    %s200 = sld [smem:[#allocation13 + $0x16]]
    %s201 = sld [smem:[#allocation13 + $0x17]]
    %s202 = sld [smem:[#allocation13 + $0x18]]
    %s203 = sld [smem:[#allocation13 + $0x19]]
    %s204 = sld [smem:[#allocation13 + $0x1a]]
    %s205 = sld [smem:[#allocation13 + $0x1b]]
    %s206 = sld [smem:[#allocation13 + $0x1c]]
    %s207 = sld [smem:[#allocation13 + $0x1d]]
    %s208 = sld [smem:[#allocation13 + $0x1e]]
    %s209 = sld [smem:[#allocation13 + $0x1f]]
    %s210 = sld [smem:[#allocation13 + $0x20]]
    %s211 = sld [smem:[#allocation13 + $0x21]]
    %s212 = sld [smem:[#allocation13 + $0x22]]
    %s213 = sld [smem:[#allocation13 + $0x23]]
    %s214 = sld [smem:[#allocation13 + $0x24]]
    %s215 = sld [smem:[#allocation13 + $0x25]]
    %s216 = sld [smem:[#allocation13 + $0x26]]
    %s217 = sld [smem:[#allocation13 + $0x27]]
    %s218 = sld [smem:[#allocation13 + $0x28]]
    %s219 = sld [smem:[#allocation14]]
    %s220 = sld [smem:[#allocation14 + $0x1]]
    %s221 = sld [smem:[#allocation14 + $0x2]]
    %s222 = sld [smem:[#allocation14 + $0x3]]
    %s223 = sld [smem:[#allocation14 + $0x4]]
    %s224 = sld [smem:[#allocation14 + $0x5]]
    %s225 = sld [smem:[#allocation14 + $0x6]]
    %s226 = sld [smem:[#allocation14 + $0x7]]
    %s227 = sld [smem:[#allocation14 + $0x8]]
    %s228 = sld [smem:[#allocation14 + $0x9]]
    %s229 = sld [smem:[#allocation14 + $0xa]]
    %s230 = sld [smem:[#allocation14 + $0xb]]
    %s231 = sld [smem:[#allocation14 + $0xc]]
    %s232 = sld [smem:[#allocation14 + $0xd]]
    %s233 = sld [smem:[#allocation14 + $0xe]]
    %s234 = sld [smem:[#allocation14 + $0xf]]
    %s235 = sld [smem:[#allocation14 + $0x10]]
    %s236 = sld [smem:[#allocation14 + $0x11]]
    %s237 = sld [smem:[#allocation14 + $0x12]]
    %s238 = sld [smem:[#allocation14 + $0x13]]
    %s239 = sld [smem:[#allocation14 + $0x14]]
    %s240 = sld [smem:[#allocation14 + $0x15]]
    %s241 = sld [smem:[#allocation14 + $0x16]]
    %s242 = sld [smem:[#allocation14 + $0x17]]
    %s243 = sld [smem:[#allocation14 + $0x18]]
    %s244 = sld [smem:[#allocation14 + $0x19]]
    %s245 = sld [smem:[#allocation14 + $0x1a]]
    %s246 = sld [smem:[#allocation14 + $0x1b]]
    %s247 = sld [smem:[#allocation14 + $0x1c]]
    %s248 = sld [smem:[#allocation14 + $0x1d]]
    %s249 = sld [smem:[#allocation14 + $0x1e]]
    %s250 = sld [smem:[#allocation14 + $0x1f]]
    %s251 = sld [smem:[#allocation14 + $0x20]]
    %s252 = sld [smem:[#allocation14 + $0x21]]
    %s253 = sld [smem:[#allocation14 + $0x22]]
    %s254 = sld [smem:[#allocation14 + $0x23]]
    %s255 = sld [smem:[#allocation14 + $0x24]]
    %s256 = sld [smem:[#allocation14 + $0x25]]
    %s257 = sld [smem:[#allocation14 + $0x26]]
    %s258 = sld [smem:[#allocation14 + $0x27]]
    %s259 = sld [smem:[#allocation14 + $0x28]]
    %s260 = sld [smem:[#allocation16]]
    %s261 = sld [smem:[#allocation16 + $0x1]]
    %s262 = sld [smem:[#allocation16 + $0x2]]
    %s263 = sld [smem:[#allocation16 + $0x3]]
    %s264 = sld [smem:[#allocation16 + $0x4]]
    %s265 = sld [smem:[#allocation16 + $0x5]]
    %s266 = sld [smem:[#allocation16 + $0x6]]
    %s267 = sld [smem:[#allocation16 + $0x7]]
    %s268 = sld [smem:[#allocation16 + $0x8]]
    %s269 = sld [smem:[#allocation16 + $0x9]]
    %s270 = sld [smem:[#allocation16 + $0xa]]
    %s271 = sld [smem:[#allocation16 + $0xb]]
    %s272 = sld [smem:[#allocation16 + $0xc]]
    %s273 = sld [smem:[#allocation16 + $0xd]]
    %s274 = sld [smem:[#allocation16 + $0xe]]
    %s275 = sld [smem:[#allocation16 + $0xf]]
    %s276 = sld [smem:[#allocation16 + $0x10]]
    %s277 = sld [smem:[#allocation16 + $0x11]]
    %s278 = sld [smem:[#allocation16 + $0x12]]
    %s279 = sld [smem:[#allocation16 + $0x13]]
    %s280 = sld [smem:[#allocation16 + $0x14]]
    %s281 = sld [smem:[#allocation16 + $0x15]]
    %s282 = sld [smem:[#allocation16 + $0x16]]
    %s283 = sld [smem:[#allocation16 + $0x17]]
    %s284 = sld [smem:[#allocation16 + $0x18]]
    %s285 = sld [smem:[#allocation16 + $0x19]]
    %s286 = sld [smem:[#allocation16 + $0x1a]]
    %s287 = sld [smem:[#allocation16 + $0x1b]]
    %s288 = sld [smem:[#allocation16 + $0x1c]]
    %s289 = sld [smem:[#allocation16 + $0x1d]]
    %s290 = sld [smem:[#allocation16 + $0x1e]]
    %s291 = sld [smem:[#allocation17]]
    %s292 = sld [smem:[#allocation17 + $0x1]]
    %s293 = sld [smem:[#allocation17 + $0x2]]
    %s294 = sld [smem:[#allocation17 + $0x3]]
    %s295 = sld [smem:[#allocation17 + $0x4]]
    %s296 = sld [smem:[#allocation17 + $0x5]]
    %s297 = sld [smem:[#allocation17 + $0x6]]
    %s298 = sld [smem:[#allocation17 + $0x7]]
    %s299 = sld [smem:[#allocation17 + $0x8]]
    %s300 = sld [smem:[#allocation17 + $0x9]]
    %s301 = sld [smem:[#allocation19]]
    %s302 = sld [smem:[#allocation19 + $0x1]]
    %s303 = sld [smem:[#allocation19 + $0x2]]
    %s304 = sld [smem:[#allocation19 + $0x3]]
    %s305 = sld [smem:[#allocation19 + $0x4]]
    %s306 = sld [smem:[#allocation19 + $0x5]]
    %s307 = sld [smem:[#allocation19 + $0x6]]
    %s308 = sld [smem:[#allocation19 + $0x7]]
    %s309 = sld [smem:[#allocation19 + $0x8]]
    %s310 = sld [smem:[#allocation19 + $0x9]]
    %v311 = vstv %s188
    %v312 = vmul.f32 %v311, %v174
    %v313 = vmul.f32 %v311, %v175
    %v314 = vstv %s198
    %v315 = vadd.f32 %v312, %v314
    %v316 = vadd.f32 %v313, %v314
    %v317 = vstv %s189
    %v318 = vmul.f32 %v317, %v174
    %v319 = vmul.f32 %v317, %v175
    %v320 = vstv %s199
    %v321 = vadd.f32 %v318, %v320
    %v322 = vadd.f32 %v319, %v320
    %v323 = vstv %s190
    %v324 = vmul.f32 %v323, %v174
    %v325 = vmul.f32 %v323, %v175
    %v326 = vstv %s200
    %v327 = vadd.f32 %v324, %v326
    %v328 = vadd.f32 %v325, %v326
    %v329 = vstv %s191
    %v330 = vmul.f32 %v329, %v174
    %v331 = vmul.f32 %v329, %v175
    %v332 = vstv %s201
    %v333 = vadd.f32 %v330, %v332
    %v334 = vadd.f32 %v331, %v332
    %v335 = vstv %s192
    %v336 = vmul.f32 %v335, %v174
    %v337 = vmul.f32 %v335, %v175
    %v338 = vstv %s202
    %v339 = vadd.f32 %v336, %v338
    %v340 = vadd.f32 %v337, %v338
    %v341 = vstv %s193
    %v342 = vmul.f32 %v341, %v174
    %v343 = vmul.f32 %v341, %v175
    %v344 = vstv %s203
    %v345 = vadd.f32 %v342, %v344
    %v346 = vadd.f32 %v343, %v344
    %v347 = vstv %s194
    %v348 = vmul.f32 %v347, %v174
    %v349 = vmul.f32 %v347, %v175
    %v350 = vstv %s204
    %v351 = vadd.f32 %v348, %v350
    %v352 = vadd.f32 %v349, %v350
    %v353 = vstv %s195
    %v354 = vmul.f32 %v353, %v174
    %v355 = vmul.f32 %v353, %v175
    %v356 = vstv %s205
    %v357 = vadd.f32 %v354, %v356
    %v358 = vadd.f32 %v355, %v356
    %v359 = vstv %s196
    %v360 = vmul.f32 %v359, %v174
    %v361 = vmul.f32 %v359, %v175
    %v362 = vstv %s206
    %v363 = vadd.f32 %v360, %v362
    %v364 = vadd.f32 %v361, %v362
    %v365 = vstv %s197
    %v366 = vmul.f32 %v365, %v174
    %v367 = vmul.f32 %v365, %v175
    %v368 = vstv %s207
    %v369 = vadd.f32 %v366, %v368
    %v370 = vadd.f32 %v367, %v368
    %v371 = vstv %s229
    %v372 = vmul.f32 %v371, %v176
    %v373 = vmul.f32 %v371, %v177
    %v374 = vstv %s239
    %v375 = vadd.f32 %v372, %v374
    %v376 = vadd.f32 %v373, %v374
    %v377 = vstv %s230
    %v378 = vmul.f32 %v377, %v176
    %v379 = vmul.f32 %v377, %v177
    %v380 = vstv %s240
    %v381 = vadd.f32 %v378, %v380
    %v382 = vadd.f32 %v379, %v380
    %v383 = vstv %s231
    %v384 = vmul.f32 %v383, %v176
    %v385 = vmul.f32 %v383, %v177
    %v386 = vstv %s241
    %v387 = vadd.f32 %v384, %v386
    %v388 = vadd.f32 %v385, %v386
    %v389 = vstv %s232
    %v390 = vmul.f32 %v389, %v176
    %v391 = vmul.f32 %v389, %v177
    %v392 = vstv %s242
    %v393 = vadd.f32 %v390, %v392
    %v394 = vadd.f32 %v391, %v392
    %v395 = vstv %s233
    %v396 = vmul.f32 %v395, %v176
    %v397 = vmul.f32 %v395, %v177
    %v398 = vstv %s243
    %v399 = vadd.f32 %v396, %v398
    %v400 = vadd.f32 %v397, %v398
    %v401 = vstv %s234
    %v402 = vmul.f32 %v401, %v176
    %v403 = vmul.f32 %v401, %v177
    %v404 = vstv %s244
    %v405 = vadd.f32 %v402, %v404
    %v406 = vadd.f32 %v403, %v404
    %v407 = vstv %s235
    %v408 = vmul.f32 %v407, %v176
    %v409 = vmul.f32 %v407, %v177
    %v410 = vstv %s245
    %v411 = vadd.f32 %v408, %v410
    %v412 = vadd.f32 %v409, %v410
    %v413 = vstv %s236
    %v414 = vmul.f32 %v413, %v176
    %v415 = vmul.f32 %v413, %v177
    %v416 = vstv %s246
    %v417 = vadd.f32 %v414, %v416
    %v418 = vadd.f32 %v415, %v416
    %v419 = vstv %s237
    %v420 = vmul.f32 %v419, %v176
    %v421 = vmul.f32 %v419, %v177
    %v422 = vstv %s247
    %v423 = vadd.f32 %v420, %v422
    %v424 = vadd.f32 %v421, %v422
    %v425 = vstv %s238
    %v426 = vmul.f32 %v425, %v176
    %v427 = vmul.f32 %v425, %v177
    %v428 = vstv %s248
    %v429 = vadd.f32 %v426, %v428
    %v430 = vadd.f32 %v427, %v428
    %v431 = vld [vmem:[#allocation6] sm:$0xff]
    %v432 = vld [vmem:[#allocation6 + $0x8] sm:$0xff]
    %v433 = vld [vmem:[#allocation6 + $0x10] sm:$0xff]
    %v434 = vld [vmem:[#allocation6 + $0x18] sm:$0xff]
    %v435 = vld [vmem:[#allocation6 + $0x20] sm:$0xff]
    %v436 = vld [vmem:[#allocation6 + $0x28] sm:$0xff]
    %v437 = vld [vmem:[#allocation6 + $0x30] sm:$0xff]
    %v438 = vld [vmem:[#allocation6 + $0x38] sm:$0xff]
    %v439 = vld [vmem:[#allocation6 + $0x40] sm:$0xff]
    %v440 = vld [vmem:[#allocation6 + $0x48] sm:$0xff]
    %v441 = vld [vmem:[#allocation6 + $0x50] sm:$0xff]
    %v442 = vld [vmem:[#allocation6 + $0x58] sm:$0xff]
    %v443 = vld [vmem:[#allocation6 + $0x60] sm:$0xff]
    %v444 = vld [vmem:[#allocation6 + $0x68] sm:$0xff]
    %v445 = vld [vmem:[#allocation6 + $0x70] sm:$0xff]
    %v446 = vld [vmem:[#allocation6 + $0x78] sm:$0xff]
    %447 = vmatprep.subr.mxu0 0.0
    %448 = vmatpush1.msra.mxu0 %v431
    %449 = vmatprep.subr.mxu0 0.0
    %450 = vmatpush1.msra.mxu0 %v432
    %451 = vmatprep.subr.mxu0 0.0
    %452 = vmatpush1.msra.mxu0 %v433
    %453 = vmatprep.subr.mxu0 0.0
    %454 = vmatpush1.msra.mxu0 %v434
    %455 = vmatprep.subr.mxu0 0.0
    %456 = vmatpush1.msra.mxu0 %v435
    %457 = vmatprep.subr.mxu0 0.0
    %458 = vmatpush1.msra.mxu0 %v436
    %459 = vmatprep.subr.mxu0 0.0
    %460 = vmatpush1.msra.mxu0 %v437
    %461 = vmatprep.subr.mxu0 0.0
    %462 = vmatpush1.msra.mxu0 %v438
    %463 = vmatprep.subr.mxu0 0.0
    %464 = vmatpush1.msra.mxu0 %v439
    %465 = vmatprep.subr.mxu0 0.0
    %466 = vmatpush1.msra.mxu0 %v440
    %467 = vmatprep.subr.mxu0 0.0
    %468 = vmatpush1.msra.mxu0 %v441
    %469 = vmatprep.subr.mxu0 0.0
    %470 = vmatpush1.msra.mxu0 %v442
    %471 = vmatprep.subr.mxu0 0.0
    %472 = vmatpush1.msra.mxu0 %v443
    %473 = vmatprep.subr.mxu0 0.0
    %474 = vmatpush1.msra.mxu0 %v444
    %475 = vmatprep.subr.mxu0 0.0
    %476 = vmatpush1.msra.mxu0 %v445
    %477 = vmatprep.subr.mxu0 0.0
    %478 = vmatpush1.msra.mxu0 %v446
    %479 = vmatprep.subr.mxu0 0.0
    %480 = vmatpush1.msra.mxu0 0.0
    %481 = vmatprep.subr.mxu0 0.0
    %482 = vmatpush1.msra.mxu0 0.0
    %483 = vmatprep.subr.mxu0 0.0
    %484 = vmatpush1.msra.mxu0 0.0
    %485 = vmatprep.subr.mxu0 0.0
    %486 = vmatpush1.msra.mxu0 0.0
    %487 = vmatprep.subr.mxu0 0.0
    %488 = vmatpush1.msra.mxu0 0.0
    %489 = vmatprep.subr.mxu0 0.0
    %490 = vmatpush1.msra.mxu0 0.0
    %491 = vmatprep.subr.mxu0 0.0
    %492 = vmatpush1.msra.mxu0 0.0
    %493 = vmatprep.subr.mxu0 0.0
    %494 = vmatpush1.msra.mxu0 0.0
    %495 = vmatprep.subr.mxu0 0.0
    %496 = vmatpush1.msra.mxu0 0.0
    %497 = vmatprep.subr.mxu0 0.0
    %498 = vmatpush1.msra.mxu0 0.0
    %499 = vmatprep.subr.mxu0 0.0
    %500 = vmatpush1.msra.mxu0 0.0
    %501 = vmatprep.subr.mxu0 0.0
    %502 = vmatpush1.msra.mxu0 0.0
    %503 = vmatprep.subr.mxu0 0.0
    %504 = vmatpush1.msra.mxu0 0.0
    %505 = vmatprep.subr.mxu0 0.0
    %506 = vmatpush1.msra.mxu0 0.0
    %507 = vmatprep.subr.mxu0 0.0
    %508 = vmatpush1.msra.mxu0 0.0
    %509 = vmatprep.subr.mxu0 0.0
    %510 = vmatpush1.msra.mxu0 0.0
    %511 = vmatprep.mubr.f32.mxu0 0.0
    %512 = vmatmul.mubr.f32.gmra.mrb[0].mxu0 0.0
    %v513 = vpop.f32.mrb[0].mxu0
    %v514 = vadd.f32 0.0, %v513
    %v515 = vpop.f32.mrb[0].mxu0
    %516 = vmatprep.mubr.f32.mxu0 0.0
    %517 = vmatmul.mubr.f32.gmra.mrb[0].mxu0 0.0
    %v518 = vpop.f32.mrb[0].mxu0
    %v519 = vadd.f32 0.0, %v518
    %v520 = vpop.f32.mrb[0].mxu0
    %521 = vdwg.mxu0
    %v522 = vstv %s178
    %v523 = vmul.f32 %v522, %v514
    %v524 = vmul.f32 %v522, %v519
    %v525 = vadd.f32 %v523, %v315
    %v526 = vadd.f32 %v524, %v316
    %v527 = vmax.f32 %v525, 0.0
    %v528 = vmax.f32 %v526, 0.0
    %v529 = vstv %s208
    %v530 = vmul.f32 %v529, %v527
    %v531 = vmul.f32 %v529, %v528
    %v532 = vstv %s179
    %v533 = vmul.f32 %v532, %v514
    %v534 = vmul.f32 %v532, %v519
    %v535 = vadd.f32 %v533, %v321
    %v536 = vadd.f32 %v534, %v322
    %v537 = vmax.f32 %v535, 0.0
    %v538 = vmax.f32 %v536, 0.0
    %v539 = vstv %s209
    %v540 = vmul.f32 %v539, %v537
    %v541 = vmul.f32 %v539, %v538
    %v542 = vstv %s180
    %v543 = vmul.f32 %v542, %v514
    %v544 = vmul.f32 %v542, %v519
    %v545 = vadd.f32 %v543, %v327
    %v546 = vadd.f32 %v544, %v328
    %v547 = vmax.f32 %v545, 0.0
    %v548 = vmax.f32 %v546, 0.0
    %v549 = vstv %s210
    %v550 = vmul.f32 %v549, %v547
    %v551 = vmul.f32 %v549, %v548
    %v552 = vstv %s181
    %v553 = vmul.f32 %v552, %v514
    %v554 = vmul.f32 %v552, %v519
    %v555 = vadd.f32 %v553, %v333
    %v556 = vadd.f32 %v554, %v334
    %v557 = vmax.f32 %v555, 0.0
    %v558 = vmax.f32 %v556, 0.0
    %v559 = vstv %s211
    %v560 = vmul.f32 %v559, %v557
    %v561 = vmul.f32 %v559, %v558
    %v562 = vstv %s182
    %v563 = vmul.f32 %v562, %v514
    %v564 = vmul.f32 %v562, %v519
    %v565 = vadd.f32 %v563, %v339
    %v566 = vadd.f32 %v564, %v340
    %v567 = vmax.f32 %v565, 0.0
    %v568 = vmax.f32 %v566, 0.0
    %v569 = vstv %s212
    %v570 = vmul.f32 %v569, %v567
    %v571 = vmul.f32 %v569, %v568
    %v572 = vstv %s183
    %v573 = vmul.f32 %v572, %v514
    %v574 = vmul.f32 %v572, %v519
    %v575 = vadd.f32 %v573, %v345
    %v576 = vadd.f32 %v574, %v346
    %v577 = vmax.f32 %v575, 0.0
    %v578 = vmax.f32 %v576, 0.0
    %v579 = vstv %s213
    %v580 = vmul.f32 %v579, %v577
    %v581 = vmul.f32 %v579, %v578
    %v582 = vstv %s184
    %v583 = vmul.f32 %v582, %v514
    %v584 = vmul.f32 %v582, %v519
    %v585 = vadd.f32 %v583, %v351
    %v586 = vadd.f32 %v584, %v352
    %v587 = vmax.f32 %v585, 0.0
    %v588 = vmax.f32 %v586, 0.0
    %v589 = vstv %s214
    %v590 = vmul.f32 %v589, %v587
    %v591 = vmul.f32 %v589, %v588
    %v592 = vstv %s185
    %v593 = vmul.f32 %v592, %v514
    %v594 = vmul.f32 %v592, %v519
    %v595 = vadd.f32 %v593, %v357
    %v596 = vadd.f32 %v594, %v358
    %v597 = vmax.f32 %v595, 0.0
    %v598 = vmax.f32 %v596, 0.0
    %v599 = vstv %s215
    %v600 = vmul.f32 %v599, %v597
    %v601 = vmul.f32 %v599, %v598
    %v602 = vstv %s186
    %v603 = vmul.f32 %v602, %v514
    %v604 = vmul.f32 %v602, %v519
    %v605 = vadd.f32 %v603, %v363
    %v606 = vadd.f32 %v604, %v364
    %v607 = vmax.f32 %v605, 0.0
    %v608 = vmax.f32 %v606, 0.0
    %v609 = vstv %s216
    %v610 = vmul.f32 %v609, %v607
    %v611 = vmul.f32 %v609, %v608
    %v612 = vstv %s187
    %v613 = vmul.f32 %v612, %v514
    %v614 = vmul.f32 %v612, %v519
    %v615 = vadd.f32 %v613, %v369
    %v616 = vadd.f32 %v614, %v370
    %v617 = vmax.f32 %v615, 0.0
    %v618 = vmax.f32 %v616, 0.0
    %v619 = vstv %s217
    %v620 = vmul.f32 %v619, %v617
    %v621 = vmul.f32 %v619, %v618
    %v622 = vadd.f32 %v530, %v540
    %v623 = vadd.f32 %v531, %v541
    %v624 = vadd.f32 %v550, %v560
    %v625 = vadd.f32 %v551, %v561
    %v626 = vadd.f32 %v570, %v580
    %v627 = vadd.f32 %v571, %v581
    %v628 = vadd.f32 %v590, %v600
    %v629 = vadd.f32 %v591, %v601
    %v630 = vadd.f32 %v610, %v620
    %v631 = vadd.f32 %v611, %v621
    %v632 = vadd.f32 %v622, %v624
    %v633 = vadd.f32 %v623, %v625
    %v634 = vadd.f32 %v626, %v628
    %v635 = vadd.f32 %v627, %v629
    %v636 = vadd.f32 %v632, %v634
    %v637 = vadd.f32 %v633, %v635
    %v638 = vadd.f32 %v636, %v630
    %v639 = vadd.f32 %v637, %v631
    %v640 = vstv %s218
    %v641 = vadd.f32 %v638, %v640
    %v642 = vadd.f32 %v639, %v640
    %v643 = vstv %s291
    %v644 = vmul.f32 %v643, 0.0
    %v645 = vstv %s294
    %v646 = vmul.f32 %v645, %v641
    %v647 = vmul.f32 %v645, %v642
    %v648 = vadd.f32 %v644, %v646
    %v649 = vadd.f32 %v644, %v647
    %v650 = vstv %s297
    %v651 = vadd.f32 %v648, %v650
    %v652 = vadd.f32 %v649, %v650
    %v653 = vxor.u32 %v651, 2147483648
    %v654 = vxor.u32 %v652, 2147483648
    %v655 = vmul.f32 %v653, 1.442695
    %v656 = vpow.pop %v655
    %v657 = vmul.f32 %v654, 1.442695
    %v658 = vpow.pop %v657
    %v659 = vadd.f32 %v656, 1.0
    %v660 = vadd.f32 %v658, 1.0
    %v661 = vrcp.pop %v659
    %v662 = vmul.f32 1.0, %v661
    %v663 = vrcp.pop %v660
    %v664 = vmul.f32 1.0, %v663
    %v665 = vstv %s292
    %v666 = vmul.f32 %v665, 0.0
    %v667 = vstv %s295
    %v668 = vmul.f32 %v667, %v641
    %v669 = vmul.f32 %v667, %v642
    %v670 = vadd.f32 %v666, %v668
    %v671 = vadd.f32 %v666, %v669
    %v672 = vstv %s298
    %v673 = vadd.f32 %v670, %v672
    %v674 = vadd.f32 %v671, %v672
    %v675 = vxor.u32 %v673, 2147483648
    %v676 = vxor.u32 %v674, 2147483648
    %v677 = vmul.f32 %v675, 1.442695
    %v678 = vpow.pop %v677
    %v679 = vmul.f32 %v676, 1.442695
    %v680 = vpow.pop %v679
    %v681 = vadd.f32 %v678, 1.0
    %v682 = vadd.f32 %v680, 1.0
    %v683 = vrcp.pop %v681
    %v684 = vmul.f32 1.0, %v683
    %v685 = vrcp.pop %v682
    %v686 = vmul.f32 1.0, %v685
    %v687 = vstv %s293
    %v688 = vmul.f32 %v687, 0.0
    %v689 = vstv %s299
    %v690 = vadd.f32 %v688, %v689
    %v691 = vstv %s296
    %v692 = vmul.f32 %v691, %v641
    %v693 = vmul.f32 %v691, %v642
    %v694 = vstv %s300
    %v695 = vadd.f32 %v692, %v694
    %v696 = vadd.f32 %v693, %v694
    %v697 = vmul.f32 %v662, %v695
    %v698 = vmul.f32 %v664, %v696
    %v699 = vadd.f32 %v690, %v697
    %v700 = vadd.f32 %v690, %v698
    %v701 = vtanh.pop %v699
    %v702 = vtanh.pop %v700
    %v703 = vsub.f32 1.0, %v684
    %v704 = vsub.f32 1.0, %v686
    %v705 = vmul.f32 %v703, %v701
    %v706 = vmul.f32 %v704, %v702
    %v707 = vmul.f32 %v684, %v641
    %v708 = vmul.f32 %v686, %v642
    %v709 = vadd.f32 %v705, %v707
    %v710 = vadd.f32 %v706, %v708
    %s711 = smul.u32 128, 1
    %s712 = sshll.u32 %s711, 4
    %713 = dma.done [#allocation5], %s712
    %v714 = vld [vmem:[#allocation2] sm:$0xff]
    %v715 = vld [vmem:[#allocation2 + $0x8] sm:$0xff]
    %v716 = vld [vmem:[#allocation2 + $0x10] sm:$0xff]
    %v717 = vld [vmem:[#allocation2 + $0x18] sm:$0xff]
    %v718 = vld [vmem:[#allocation2 + $0x20] sm:$0xff]
    %v719 = vld [vmem:[#allocation2 + $0x28] sm:$0xff]
    %v720 = vld [vmem:[#allocation2 + $0x30] sm:$0xff]
    %v721 = vld [vmem:[#allocation2 + $0x38] sm:$0xff]
    %v722 = vld [vmem:[#allocation2 + $0x40] sm:$0xff]
    %v723 = vld [vmem:[#allocation2 + $0x48] sm:$0xff]
    %v724 = vld [vmem:[#allocation2 + $0x50] sm:$0xff]
    %v725 = vld [vmem:[#allocation2 + $0x58] sm:$0xff]
    %v726 = vld [vmem:[#allocation2 + $0x60] sm:$0xff]
    %v727 = vld [vmem:[#allocation2 + $0x68] sm:$0xff]
    %v728 = vld [vmem:[#allocation2 + $0x70] sm:$0xff]
    %v729 = vld [vmem:[#allocation2 + $0x78] sm:$0xff]
    %730 = vmatprep.subr.mxu0 0.0
    %731 = vmatpush1.msra.mxu0 %v714
    %732 = vmatprep.subr.mxu0 0.0
    %733 = vmatpush1.msra.mxu0 %v715
    %734 = vmatprep.subr.mxu0 0.0
    %735 = vmatpush1.msra.mxu0 %v716
    %736 = vmatprep.subr.mxu0 0.0
    %737 = vmatpush1.msra.mxu0 %v717
    %738 = vmatprep.subr.mxu0 0.0
    %739 = vmatpush1.msra.mxu0 %v718
    %740 = vmatprep.subr.mxu0 0.0
    %741 = vmatpush1.msra.mxu0 %v719
    %742 = vmatprep.subr.mxu0 0.0
    %743 = vmatpush1.msra.mxu0 %v720
    %744 = vmatprep.subr.mxu0 0.0
    %745 = vmatpush1.msra.mxu0 %v721
    %746 = vmatprep.subr.mxu0 0.0
    %747 = vmatpush1.msra.mxu0 %v722
    %748 = vmatprep.subr.mxu0 0.0
    %749 = vmatpush1.msra.mxu0 %v723
    %750 = vmatprep.subr.mxu0 0.0
    %751 = vmatpush1.msra.mxu0 %v724
    %752 = vmatprep.subr.mxu0 0.0
    %753 = vmatpush1.msra.mxu0 %v725
    %754 = vmatprep.subr.mxu0 0.0
    %755 = vmatpush1.msra.mxu0 %v726
    %756 = vmatprep.subr.mxu0 0.0
    %757 = vmatpush1.msra.mxu0 %v727
    %758 = vmatprep.subr.mxu0 0.0
    %759 = vmatpush1.msra.mxu0 %v728
    %760 = vmatprep.subr.mxu0 0.0
    %761 = vmatpush1.msra.mxu0 %v729
    %762 = vmatprep.subr.mxu0 0.0
    %763 = vmatpush1.msra.mxu0 0.0
    %764 = vmatprep.subr.mxu0 0.0
    %765 = vmatpush1.msra.mxu0 0.0
    %766 = vmatprep.subr.mxu0 0.0
    %767 = vmatpush1.msra.mxu0 0.0
    %768 = vmatprep.subr.mxu0 0.0
    %769 = vmatpush1.msra.mxu0 0.0
    %770 = vmatprep.subr.mxu0 0.0
    %771 = vmatpush1.msra.mxu0 0.0
    %772 = vmatprep.subr.mxu0 0.0
    %773 = vmatpush1.msra.mxu0 0.0
    %774 = vmatprep.subr.mxu0 0.0
    %775 = vmatpush1.msra.mxu0 0.0
    %776 = vmatprep.subr.mxu0 0.0
    %777 = vmatpush1.msra.mxu0 0.0
    %778 = vmatprep.subr.mxu0 0.0
    %779 = vmatpush1.msra.mxu0 0.0
    %780 = vmatprep.subr.mxu0 0.0
    %781 = vmatpush1.msra.mxu0 0.0
    %782 = vmatprep.subr.mxu0 0.0
    %783 = vmatpush1.msra.mxu0 0.0
    %784 = vmatprep.subr.mxu0 0.0
    %785 = vmatpush1.msra.mxu0 0.0
    %786 = vmatprep.subr.mxu0 0.0
    %787 = vmatpush1.msra.mxu0 0.0
    %788 = vmatprep.subr.mxu0 0.0
    %789 = vmatpush1.msra.mxu0 0.0
    %790 = vmatprep.subr.mxu0 0.0
    %791 = vmatpush1.msra.mxu0 0.0
    %792 = vmatprep.subr.mxu0 0.0
    %793 = vmatpush1.msra.mxu0 0.0
    %794 = vmatprep.mubr.f32.mxu0 0.0
    %795 = vmatmul.mubr.f32.gmra.mrb[0].mxu0 %v709
    %v796 = vpop.f32.mrb[0].mxu0
    %v797 = vadd.f32 0.0, %v796
    %v798 = vpop.f32.mrb[0].mxu0
    %799 = vmatprep.mubr.f32.mxu0 0.0
    %800 = vmatmul.mubr.f32.gmra.mrb[0].mxu0 %v710
    %v801 = vpop.f32.mrb[0].mxu0
    %v802 = vadd.f32 0.0, %v801
    %v803 = vpop.f32.mrb[0].mxu0
    %804 = vdwg.mxu0
    %v805 = vstv %s219
    %v806 = vmul.f32 %v805, %v797
    %v807 = vmul.f32 %v805, %v802
    %v808 = vadd.f32 %v806, %v375
    %v809 = vadd.f32 %v807, %v376
    %v810 = vmax.f32 %v808, 0.0
    %v811 = vmax.f32 %v809, 0.0
    %v812 = vstv %s249
    %v813 = vmul.f32 %v812, %v810
    %v814 = vmul.f32 %v812, %v811
    %v815 = vstv %s220
    %v816 = vmul.f32 %v815, %v797
    %v817 = vmul.f32 %v815, %v802
    %v818 = vadd.f32 %v816, %v381
    %v819 = vadd.f32 %v817, %v382
    %v820 = vmax.f32 %v818, 0.0
    %v821 = vmax.f32 %v819, 0.0
    %v822 = vstv %s250
    %v823 = vmul.f32 %v822, %v820
    %v824 = vmul.f32 %v822, %v821
    %v825 = vstv %s221
    %v826 = vmul.f32 %v825, %v797
    %v827 = vmul.f32 %v825, %v802
    %v828 = vadd.f32 %v826, %v387
    %v829 = vadd.f32 %v827, %v388
    %v830 = vmax.f32 %v828, 0.0
    %v831 = vmax.f32 %v829, 0.0
    %v832 = vstv %s251
    %v833 = vmul.f32 %v832, %v830
    %v834 = vmul.f32 %v832, %v831
    %v835 = vstv %s222
    %v836 = vmul.f32 %v835, %v797
    %v837 = vmul.f32 %v835, %v802
    %v838 = vadd.f32 %v836, %v393
    %v839 = vadd.f32 %v837, %v394
    %v840 = vmax.f32 %v838, 0.0
    %v841 = vmax.f32 %v839, 0.0
    %v842 = vstv %s252
    %v843 = vmul.f32 %v842, %v840
    %v844 = vmul.f32 %v842, %v841
    %v845 = vstv %s223
    %v846 = vmul.f32 %v845, %v797
    %v847 = vmul.f32 %v845, %v802
    %v848 = vadd.f32 %v846, %v399
    %v849 = vadd.f32 %v847, %v400
    %v850 = vmax.f32 %v848, 0.0
    %v851 = vmax.f32 %v849, 0.0
    %v852 = vstv %s253
    %v853 = vmul.f32 %v852, %v850
    %v854 = vmul.f32 %v852, %v851
    %v855 = vstv %s224
    %v856 = vmul.f32 %v855, %v797
    %v857 = vmul.f32 %v855, %v802
    %v858 = vadd.f32 %v856, %v405
    %v859 = vadd.f32 %v857, %v406
    %v860 = vmax.f32 %v858, 0.0
    %v861 = vmax.f32 %v859, 0.0
    %v862 = vstv %s254
    %v863 = vmul.f32 %v862, %v860
    %v864 = vmul.f32 %v862, %v861
    %v865 = vstv %s225
    %v866 = vmul.f32 %v865, %v797
    %v867 = vmul.f32 %v865, %v802
    %v868 = vadd.f32 %v866, %v411
    %v869 = vadd.f32 %v867, %v412
    %v870 = vmax.f32 %v868, 0.0
    %v871 = vmax.f32 %v869, 0.0
    %v872 = vstv %s255
    %v873 = vmul.f32 %v872, %v870
    %v874 = vmul.f32 %v872, %v871
    %v875 = vstv %s226
    %v876 = vmul.f32 %v875, %v797
    %v877 = vmul.f32 %v875, %v802
    %v878 = vadd.f32 %v876, %v417
    %v879 = vadd.f32 %v877, %v418
    %v880 = vmax.f32 %v878, 0.0
    %v881 = vmax.f32 %v879, 0.0
    %v882 = vstv %s256
    %v883 = vmul.f32 %v882, %v880
    %v884 = vmul.f32 %v882, %v881
    %v885 = vstv %s227
    %v886 = vmul.f32 %v885, %v797
    %v887 = vmul.f32 %v885, %v802
    %v888 = vadd.f32 %v886, %v423
    %v889 = vadd.f32 %v887, %v424
    %v890 = vmax.f32 %v888, 0.0
    %v891 = vmax.f32 %v889, 0.0
    %v892 = vstv %s257
    %v893 = vmul.f32 %v892, %v890
    %v894 = vmul.f32 %v892, %v891
    %v895 = vstv %s228
    %v896 = vmul.f32 %v895, %v797
    %v897 = vmul.f32 %v895, %v802
    %v898 = vadd.f32 %v896, %v429
    %v899 = vadd.f32 %v897, %v430
    %v900 = vmax.f32 %v898, 0.0
    %v901 = vmax.f32 %v899, 0.0
    %v902 = vstv %s258
    %v903 = vmul.f32 %v902, %v900
    %v904 = vmul.f32 %v902, %v901
    %v905 = vadd.f32 %v813, %v823
    %v906 = vadd.f32 %v814, %v824
    %v907 = vadd.f32 %v833, %v843
    %v908 = vadd.f32 %v834, %v844
    %v909 = vadd.f32 %v853, %v863
    %v910 = vadd.f32 %v854, %v864
    %v911 = vadd.f32 %v873, %v883
    %v912 = vadd.f32 %v874, %v884
    %v913 = vadd.f32 %v893, %v903
    %v914 = vadd.f32 %v894, %v904
    %v915 = vadd.f32 %v905, %v907
    %v916 = vadd.f32 %v906, %v908
    %v917 = vadd.f32 %v909, %v911
    %v918 = vadd.f32 %v910, %v912
    %v919 = vadd.f32 %v915, %v917
    %v920 = vadd.f32 %v916, %v918
    %v921 = vadd.f32 %v919, %v913
    %v922 = vadd.f32 %v920, %v914
    %v923 = vstv %s259
    %v924 = vadd.f32 %v921, %v923
    %v925 = vadd.f32 %v922, %v923
    %v926 = vstv %s301
    %v927 = vmul.f32 %v926, %v709
    %v928 = vmul.f32 %v926, %v710
    %v929 = vstv %s304
    %v930 = vmul.f32 %v929, %v924
    %v931 = vmul.f32 %v929, %v925
    %v932 = vadd.f32 %v927, %v930
    %v933 = vadd.f32 %v928, %v931
    %v934 = vstv %s307
    %v935 = vadd.f32 %v932, %v934
    %v936 = vadd.f32 %v933, %v934
    %v937 = vxor.u32 %v935, 2147483648
    %v938 = vxor.u32 %v936, 2147483648
    %v939 = vmul.f32 %v937, 1.442695
    %v940 = vpow.pop %v939
    %v941 = vmul.f32 %v938, 1.442695
    %v942 = vpow.pop %v941
    %v943 = vadd.f32 %v940, 1.0
    %v944 = vadd.f32 %v942, 1.0
    %v945 = vrcp.pop %v943
    %v946 = vmul.f32 1.0, %v945
    %v947 = vrcp.pop %v944
    %v948 = vmul.f32 1.0, %v947
    %v949 = vstv %s302
    %v950 = vmul.f32 %v949, %v709
    %v951 = vmul.f32 %v949, %v710
    %v952 = vstv %s305
    %v953 = vmul.f32 %v952, %v924
    %v954 = vmul.f32 %v952, %v925
    %v955 = vadd.f32 %v950, %v953
    %v956 = vadd.f32 %v951, %v954
    %v957 = vstv %s308
    %v958 = vadd.f32 %v955, %v957
    %v959 = vadd.f32 %v956, %v957
    %v960 = vxor.u32 %v958, 2147483648
    %v961 = vxor.u32 %v959, 2147483648
    %v962 = vmul.f32 %v960, 1.442695
    %v963 = vpow.pop %v962
    %v964 = vmul.f32 %v961, 1.442695
    %v965 = vpow.pop %v964
    %v966 = vadd.f32 %v963, 1.0
    %v967 = vadd.f32 %v965, 1.0
    %v968 = vrcp.pop %v966
    %v969 = vmul.f32 1.0, %v968
    %v970 = vrcp.pop %v967
    %v971 = vmul.f32 1.0, %v970
    %v972 = vstv %s303
    %v973 = vmul.f32 %v972, %v709
    %v974 = vmul.f32 %v972, %v710
    %v975 = vstv %s309
    %v976 = vadd.f32 %v973, %v975
    %v977 = vadd.f32 %v974, %v975
    %v978 = vstv %s306
    %v979 = vmul.f32 %v978, %v924
    %v980 = vmul.f32 %v978, %v925
    %v981 = vstv %s310
    %v982 = vadd.f32 %v979, %v981
    %v983 = vadd.f32 %v980, %v981
    %v984 = vmul.f32 %v946, %v982
    %v985 = vmul.f32 %v948, %v983
    %v986 = vadd.f32 %v976, %v984
    %v987 = vadd.f32 %v977, %v985
    %v988 = vtanh.pop %v986
    %v989 = vtanh.pop %v987
    %v990 = vsub.f32 1.0, %v969
    %v991 = vsub.f32 1.0, %v971
    %v992 = vmul.f32 %v990, %v988
    %v993 = vmul.f32 %v991, %v989
    %v994 = vmul.f32 %v969, %v924
    %v995 = vmul.f32 %v971, %v925
    %v996 = vadd.f32 %v992, %v994
    %v997 = vadd.f32 %v993, %v995
    loop: start=0, step=1, limit=13
    $region82: #{tpu_custom_call.1} parent=1 // loop_pre_header
      _
    $region83: #{tpu_custom_call.1} parent=1 // loop_header
      %s999 = sphi 0, %s1003
      %p1000 = scmp.ge.s32.totalorder %s999, 13
      %v1004 = vphi %v996, %v1510
      %v1005 = vphi %v997, %v1511
    $region84: #{tpu_custom_call.1} parent=1 // loop_header_branch
      %1002 = sbr.rel (%p1000) target = $region88
    $region85: #{tpu_custom_call.1} parent=1 // loop_body
      %v1006 = vld [vmem:[#allocation6] sm:$0xff]
      %v1007 = vld [vmem:[#allocation6 + $0x8] sm:$0xff]
      %v1008 = vld [vmem:[#allocation6 + $0x10] sm:$0xff]
      %v1009 = vld [vmem:[#allocation6 + $0x18] sm:$0xff]
      %v1010 = vld [vmem:[#allocation6 + $0x20] sm:$0xff]
      %v1011 = vld [vmem:[#allocation6 + $0x28] sm:$0xff]
      %v1012 = vld [vmem:[#allocation6 + $0x30] sm:$0xff]
      %v1013 = vld [vmem:[#allocation6 + $0x38] sm:$0xff]
      %v1014 = vld [vmem:[#allocation6 + $0x40] sm:$0xff]
      %v1015 = vld [vmem:[#allocation6 + $0x48] sm:$0xff]
      %v1016 = vld [vmem:[#allocation6 + $0x50] sm:$0xff]
      %v1017 = vld [vmem:[#allocation6 + $0x58] sm:$0xff]
      %v1018 = vld [vmem:[#allocation6 + $0x60] sm:$0xff]
      %v1019 = vld [vmem:[#allocation6 + $0x68] sm:$0xff]
      %v1020 = vld [vmem:[#allocation6 + $0x70] sm:$0xff]
      %v1021 = vld [vmem:[#allocation6 + $0x78] sm:$0xff]
      %1022 = vmatprep.subr.mxu0 0.0
      %1023 = vmatpush1.msra.mxu0 %v1006
      %1024 = vmatprep.subr.mxu0 0.0
      %1025 = vmatpush1.msra.mxu0 %v1007
      %1026 = vmatprep.subr.mxu0 0.0
      %1027 = vmatpush1.msra.mxu0 %v1008
      %1028 = vmatprep.subr.mxu0 0.0
      %1029 = vmatpush1.msra.mxu0 %v1009
      %1030 = vmatprep.subr.mxu0 0.0
      %1031 = vmatpush1.msra.mxu0 %v1010
      %1032 = vmatprep.subr.mxu0 0.0
      %1033 = vmatpush1.msra.mxu0 %v1011
      %1034 = vmatprep.subr.mxu0 0.0
      %1035 = vmatpush1.msra.mxu0 %v1012
      %1036 = vmatprep.subr.mxu0 0.0
      %1037 = vmatpush1.msra.mxu0 %v1013
      %1038 = vmatprep.subr.mxu0 0.0
      %1039 = vmatpush1.msra.mxu0 %v1014
      %1040 = vmatprep.subr.mxu0 0.0
      %1041 = vmatpush1.msra.mxu0 %v1015
      %1042 = vmatprep.subr.mxu0 0.0
      %1043 = vmatpush1.msra.mxu0 %v1016
      %1044 = vmatprep.subr.mxu0 0.0
      %1045 = vmatpush1.msra.mxu0 %v1017
      %1046 = vmatprep.subr.mxu0 0.0
      %1047 = vmatpush1.msra.mxu0 %v1018
      %1048 = vmatprep.subr.mxu0 0.0
      %1049 = vmatpush1.msra.mxu0 %v1019
      %1050 = vmatprep.subr.mxu0 0.0
      %1051 = vmatpush1.msra.mxu0 %v1020
      %1052 = vmatprep.subr.mxu0 0.0
      %1053 = vmatpush1.msra.mxu0 %v1021
      %1054 = vmatprep.subr.mxu0 0.0
      %1055 = vmatpush1.msra.mxu0 0.0
      %1056 = vmatprep.subr.mxu0 0.0
      %1057 = vmatpush1.msra.mxu0 0.0
      %1058 = vmatprep.subr.mxu0 0.0
      %1059 = vmatpush1.msra.mxu0 0.0
      %1060 = vmatprep.subr.mxu0 0.0
      %1061 = vmatpush1.msra.mxu0 0.0
      %1062 = vmatprep.subr.mxu0 0.0
      %1063 = vmatpush1.msra.mxu0 0.0
      %1064 = vmatprep.subr.mxu0 0.0
      %1065 = vmatpush1.msra.mxu0 0.0
      %1066 = vmatprep.subr.mxu0 0.0
      %1067 = vmatpush1.msra.mxu0 0.0
      %1068 = vmatprep.subr.mxu0 0.0
      %1069 = vmatpush1.msra.mxu0 0.0
      %1070 = vmatprep.subr.mxu0 0.0
      %1071 = vmatpush1.msra.mxu0 0.0
      %1072 = vmatprep.subr.mxu0 0.0
      %1073 = vmatpush1.msra.mxu0 0.0
      %1074 = vmatprep.subr.mxu0 0.0
      %1075 = vmatpush1.msra.mxu0 0.0
      %1076 = vmatprep.subr.mxu0 0.0
      %1077 = vmatpush1.msra.mxu0 0.0
      %1078 = vmatprep.subr.mxu0 0.0
      %1079 = vmatpush1.msra.mxu0 0.0
      %1080 = vmatprep.subr.mxu0 0.0
      %1081 = vmatpush1.msra.mxu0 0.0
      %1082 = vmatprep.subr.mxu0 0.0
      %1083 = vmatpush1.msra.mxu0 0.0
      %1084 = vmatprep.subr.mxu0 0.0
      %1085 = vmatpush1.msra.mxu0 0.0
      %1086 = vmatprep.mubr.f32.mxu0 0.0
      %1087 = vmatmul.mubr.f32.gmra.mrb[0].mxu0 %v1004
      %v1088 = vpop.f32.mrb[0].mxu0
      %v1089 = vadd.f32 0.0, %v1088
      %v1090 = vpop.f32.mrb[0].mxu0
      %1091 = vmatprep.mubr.f32.mxu0 0.0
      %1092 = vmatmul.mubr.f32.gmra.mrb[0].mxu0 %v1005
      %v1093 = vpop.f32.mrb[0].mxu0
      %v1094 = vadd.f32 0.0, %v1093
      %v1095 = vpop.f32.mrb[0].mxu0
      %1096 = vdwg.mxu0
      %v1097 = vmul.f32 %v522, %v1089
      %v1098 = vmul.f32 %v522, %v1094
      %v1099 = vadd.f32 %v1097, %v315
      %v1100 = vadd.f32 %v1098, %v316
      %v1101 = vmax.f32 %v1099, 0.0
      %v1102 = vmax.f32 %v1100, 0.0
      %v1103 = vmul.f32 %v529, %v1101
      %v1104 = vmul.f32 %v529, %v1102
      %v1105 = vmul.f32 %v532, %v1089
      %v1106 = vmul.f32 %v532, %v1094
      %v1107 = vadd.f32 %v1105, %v321
      %v1108 = vadd.f32 %v1106, %v322
      %v1109 = vmax.f32 %v1107, 0.0
      %v1110 = vmax.f32 %v1108, 0.0
      %v1111 = vmul.f32 %v539, %v1109
      %v1112 = vmul.f32 %v539, %v1110
      %v1113 = vmul.f32 %v542, %v1089
      %v1114 = vmul.f32 %v542, %v1094
      %v1115 = vadd.f32 %v1113, %v327
      %v1116 = vadd.f32 %v1114, %v328
      %v1117 = vmax.f32 %v1115, 0.0
      %v1118 = vmax.f32 %v1116, 0.0
      %v1119 = vmul.f32 %v549, %v1117
      %v1120 = vmul.f32 %v549, %v1118
      %v1121 = vmul.f32 %v552, %v1089
      %v1122 = vmul.f32 %v552, %v1094
      %v1123 = vadd.f32 %v1121, %v333
      %v1124 = vadd.f32 %v1122, %v334
      %v1125 = vmax.f32 %v1123, 0.0
      %v1126 = vmax.f32 %v1124, 0.0
      %v1127 = vmul.f32 %v559, %v1125
      %v1128 = vmul.f32 %v559, %v1126
      %v1129 = vmul.f32 %v562, %v1089
      %v1130 = vmul.f32 %v562, %v1094
      %v1131 = vadd.f32 %v1129, %v339
      %v1132 = vadd.f32 %v1130, %v340
      %v1133 = vmax.f32 %v1131, 0.0
      %v1134 = vmax.f32 %v1132, 0.0
      %v1135 = vmul.f32 %v569, %v1133
      %v1136 = vmul.f32 %v569, %v1134
      %v1137 = vmul.f32 %v572, %v1089
      %v1138 = vmul.f32 %v572, %v1094
      %v1139 = vadd.f32 %v1137, %v345
      %v1140 = vadd.f32 %v1138, %v346
      %v1141 = vmax.f32 %v1139, 0.0
      %v1142 = vmax.f32 %v1140, 0.0
      %v1143 = vmul.f32 %v579, %v1141
      %v1144 = vmul.f32 %v579, %v1142
      %v1145 = vmul.f32 %v582, %v1089
      %v1146 = vmul.f32 %v582, %v1094
      %v1147 = vadd.f32 %v1145, %v351
      %v1148 = vadd.f32 %v1146, %v352
      %v1149 = vmax.f32 %v1147, 0.0
      %v1150 = vmax.f32 %v1148, 0.0
      %v1151 = vmul.f32 %v589, %v1149
      %v1152 = vmul.f32 %v589, %v1150
      %v1153 = vmul.f32 %v592, %v1089
      %v1154 = vmul.f32 %v592, %v1094
      %v1155 = vadd.f32 %v1153, %v357
      %v1156 = vadd.f32 %v1154, %v358
      %v1157 = vmax.f32 %v1155, 0.0
      %v1158 = vmax.f32 %v1156, 0.0
      %v1159 = vmul.f32 %v599, %v1157
      %v1160 = vmul.f32 %v599, %v1158
      %v1161 = vmul.f32 %v602, %v1089
      %v1162 = vmul.f32 %v602, %v1094
      %v1163 = vadd.f32 %v1161, %v363
      %v1164 = vadd.f32 %v1162, %v364
      %v1165 = vmax.f32 %v1163, 0.0
      %v1166 = vmax.f32 %v1164, 0.0
      %v1167 = vmul.f32 %v609, %v1165
      %v1168 = vmul.f32 %v609, %v1166
      %v1169 = vmul.f32 %v612, %v1089
      %v1170 = vmul.f32 %v612, %v1094
      %v1171 = vadd.f32 %v1169, %v369
      %v1172 = vadd.f32 %v1170, %v370
      %v1173 = vmax.f32 %v1171, 0.0
      %v1174 = vmax.f32 %v1172, 0.0
      %v1175 = vmul.f32 %v619, %v1173
      %v1176 = vmul.f32 %v619, %v1174
      %v1177 = vadd.f32 %v1103, %v1111
      %v1178 = vadd.f32 %v1104, %v1112
      %v1179 = vadd.f32 %v1119, %v1127
      %v1180 = vadd.f32 %v1120, %v1128
      %v1181 = vadd.f32 %v1135, %v1143
      %v1182 = vadd.f32 %v1136, %v1144
      %v1183 = vadd.f32 %v1151, %v1159
      %v1184 = vadd.f32 %v1152, %v1160
      %v1185 = vadd.f32 %v1167, %v1175
      %v1186 = vadd.f32 %v1168, %v1176
      %v1187 = vadd.f32 %v1177, %v1179
      %v1188 = vadd.f32 %v1178, %v1180
      %v1189 = vadd.f32 %v1181, %v1183
      %v1190 = vadd.f32 %v1182, %v1184
      %v1191 = vadd.f32 %v1187, %v1189
      %v1192 = vadd.f32 %v1188, %v1190
      %v1193 = vadd.f32 %v1191, %v1185
      %v1194 = vadd.f32 %v1192, %v1186
      %v1195 = vadd.f32 %v1193, %v640
      %v1196 = vadd.f32 %v1194, %v640
      %v1197 = vmul.f32 %v643, %v1004
      %v1198 = vmul.f32 %v643, %v1005
      %v1199 = vmul.f32 %v645, %v1195
      %v1200 = vmul.f32 %v645, %v1196
      %v1201 = vadd.f32 %v1197, %v1199
      %v1202 = vadd.f32 %v1198, %v1200
      %v1203 = vadd.f32 %v1201, %v650
      %v1204 = vadd.f32 %v1202, %v650
      %v1205 = vxor.u32 %v1203, 2147483648
      %v1206 = vxor.u32 %v1204, 2147483648
      %v1207 = vmul.f32 %v1205, 1.442695
      %v1208 = vpow.pop %v1207
      %v1209 = vmul.f32 %v1206, 1.442695
      %v1210 = vpow.pop %v1209
      %v1211 = vadd.f32 %v1208, 1.0
      %v1212 = vadd.f32 %v1210, 1.0
      %v1213 = vrcp.pop %v1211
      %v1214 = vmul.f32 1.0, %v1213
      %v1215 = vrcp.pop %v1212
      %v1216 = vmul.f32 1.0, %v1215
      %v1217 = vmul.f32 %v665, %v1004
      %v1218 = vmul.f32 %v665, %v1005
      %v1219 = vmul.f32 %v667, %v1195
      %v1220 = vmul.f32 %v667, %v1196
      %v1221 = vadd.f32 %v1217, %v1219
      %v1222 = vadd.f32 %v1218, %v1220
      %v1223 = vadd.f32 %v1221, %v672
      %v1224 = vadd.f32 %v1222, %v672
      %v1225 = vxor.u32 %v1223, 2147483648
      %v1226 = vxor.u32 %v1224, 2147483648
      %v1227 = vmul.f32 %v1225, 1.442695
      %v1228 = vpow.pop %v1227
      %v1229 = vmul.f32 %v1226, 1.442695
      %v1230 = vpow.pop %v1229
      %v1231 = vadd.f32 %v1228, 1.0
      %v1232 = vadd.f32 %v1230, 1.0
      %v1233 = vrcp.pop %v1231
      %v1234 = vmul.f32 1.0, %v1233
      %v1235 = vrcp.pop %v1232
      %v1236 = vmul.f32 1.0, %v1235
      %v1237 = vmul.f32 %v687, %v1004
      %v1238 = vmul.f32 %v687, %v1005
      %v1239 = vadd.f32 %v1237, %v689
      %v1240 = vadd.f32 %v1238, %v689
      %v1241 = vmul.f32 %v691, %v1195
      %v1242 = vmul.f32 %v691, %v1196
      %v1243 = vadd.f32 %v1241, %v694
      %v1244 = vadd.f32 %v1242, %v694
      %v1245 = vmul.f32 %v1214, %v1243
      %v1246 = vmul.f32 %v1216, %v1244
      %v1247 = vadd.f32 %v1239, %v1245
      %v1248 = vadd.f32 %v1240, %v1246
      %v1249 = vtanh.pop %v1247
      %v1250 = vtanh.pop %v1248
      %v1251 = vsub.f32 1.0, %v1234
      %v1252 = vsub.f32 1.0, %v1236
      %v1253 = vmul.f32 %v1251, %v1249
      %v1254 = vmul.f32 %v1252, %v1250
      %v1255 = vmul.f32 %v1234, %v1195
      %v1256 = vmul.f32 %v1236, %v1196
      %v1257 = vadd.f32 %v1253, %v1255
      %v1258 = vadd.f32 %v1254, %v1256
      %v1259 = vld [vmem:[#allocation2] sm:$0xff]
      %v1260 = vld [vmem:[#allocation2 + $0x8] sm:$0xff]
      %v1261 = vld [vmem:[#allocation2 + $0x10] sm:$0xff]
      %v1262 = vld [vmem:[#allocation2 + $0x18] sm:$0xff]
      %v1263 = vld [vmem:[#allocation2 + $0x20] sm:$0xff]
      %v1264 = vld [vmem:[#allocation2 + $0x28] sm:$0xff]
      %v1265 = vld [vmem:[#allocation2 + $0x30] sm:$0xff]
      %v1266 = vld [vmem:[#allocation2 + $0x38] sm:$0xff]
      %v1267 = vld [vmem:[#allocation2 + $0x40] sm:$0xff]
      %v1268 = vld [vmem:[#allocation2 + $0x48] sm:$0xff]
      %v1269 = vld [vmem:[#allocation2 + $0x50] sm:$0xff]
      %v1270 = vld [vmem:[#allocation2 + $0x58] sm:$0xff]
      %v1271 = vld [vmem:[#allocation2 + $0x60] sm:$0xff]
      %v1272 = vld [vmem:[#allocation2 + $0x68] sm:$0xff]
      %v1273 = vld [vmem:[#allocation2 + $0x70] sm:$0xff]
      %v1274 = vld [vmem:[#allocation2 + $0x78] sm:$0xff]
      %1275 = vmatprep.subr.mxu0 0.0
      %1276 = vmatpush1.msra.mxu0 %v1259
      %1277 = vmatprep.subr.mxu0 0.0
      %1278 = vmatpush1.msra.mxu0 %v1260
      %1279 = vmatprep.subr.mxu0 0.0
      %1280 = vmatpush1.msra.mxu0 %v1261
      %1281 = vmatprep.subr.mxu0 0.0
      %1282 = vmatpush1.msra.mxu0 %v1262
      %1283 = vmatprep.subr.mxu0 0.0
      %1284 = vmatpush1.msra.mxu0 %v1263
      %1285 = vmatprep.subr.mxu0 0.0
      %1286 = vmatpush1.msra.mxu0 %v1264
      %1287 = vmatprep.subr.mxu0 0.0
      %1288 = vmatpush1.msra.mxu0 %v1265
      %1289 = vmatprep.subr.mxu0 0.0
      %1290 = vmatpush1.msra.mxu0 %v1266
      %1291 = vmatprep.subr.mxu0 0.0
      %1292 = vmatpush1.msra.mxu0 %v1267
      %1293 = vmatprep.subr.mxu0 0.0
      %1294 = vmatpush1.msra.mxu0 %v1268
      %1295 = vmatprep.subr.mxu0 0.0
      %1296 = vmatpush1.msra.mxu0 %v1269
      %1297 = vmatprep.subr.mxu0 0.0
      %1298 = vmatpush1.msra.mxu0 %v1270
      %1299 = vmatprep.subr.mxu0 0.0
      %1300 = vmatpush1.msra.mxu0 %v1271
      %1301 = vmatprep.subr.mxu0 0.0
      %1302 = vmatpush1.msra.mxu0 %v1272
      %1303 = vmatprep.subr.mxu0 0.0
      %1304 = vmatpush1.msra.mxu0 %v1273
      %1305 = vmatprep.subr.mxu0 0.0
      %1306 = vmatpush1.msra.mxu0 %v1274
      %1307 = vmatprep.subr.mxu0 0.0
      %1308 = vmatpush1.msra.mxu0 0.0
      %1309 = vmatprep.subr.mxu0 0.0
      %1310 = vmatpush1.msra.mxu0 0.0
      %1311 = vmatprep.subr.mxu0 0.0
      %1312 = vmatpush1.msra.mxu0 0.0
      %1313 = vmatprep.subr.mxu0 0.0
      %1314 = vmatpush1.msra.mxu0 0.0
      %1315 = vmatprep.subr.mxu0 0.0
      %1316 = vmatpush1.msra.mxu0 0.0
      %1317 = vmatprep.subr.mxu0 0.0
      %1318 = vmatpush1.msra.mxu0 0.0
      %1319 = vmatprep.subr.mxu0 0.0
      %1320 = vmatpush1.msra.mxu0 0.0
      %1321 = vmatprep.subr.mxu0 0.0
      %1322 = vmatpush1.msra.mxu0 0.0
      %1323 = vmatprep.subr.mxu0 0.0
      %1324 = vmatpush1.msra.mxu0 0.0
      %1325 = vmatprep.subr.mxu0 0.0
      %1326 = vmatpush1.msra.mxu0 0.0
      %1327 = vmatprep.subr.mxu0 0.0
      %1328 = vmatpush1.msra.mxu0 0.0
      %1329 = vmatprep.subr.mxu0 0.0
      %1330 = vmatpush1.msra.mxu0 0.0
      %1331 = vmatprep.subr.mxu0 0.0
      %1332 = vmatpush1.msra.mxu0 0.0
      %1333 = vmatprep.subr.mxu0 0.0
      %1334 = vmatpush1.msra.mxu0 0.0
      %1335 = vmatprep.subr.mxu0 0.0
      %1336 = vmatpush1.msra.mxu0 0.0
      %1337 = vmatprep.subr.mxu0 0.0
      %1338 = vmatpush1.msra.mxu0 0.0
      %1339 = vmatprep.mubr.f32.mxu0 0.0
      %1340 = vmatmul.mubr.f32.gmra.mrb[0].mxu0 %v1257
      %v1341 = vpop.f32.mrb[0].mxu0
      %v1342 = vadd.f32 0.0, %v1341
      %v1343 = vpop.f32.mrb[0].mxu0
      %1344 = vmatprep.mubr.f32.mxu0 0.0
      %1345 = vmatmul.mubr.f32.gmra.mrb[0].mxu0 %v1258
      %v1346 = vpop.f32.mrb[0].mxu0
      %v1347 = vadd.f32 0.0, %v1346
      %v1348 = vpop.f32.mrb[0].mxu0
      %1349 = vdwg.mxu0
      %v1350 = vmul.f32 %v805, %v1342
      %v1351 = vmul.f32 %v805, %v1347
      %v1352 = vadd.f32 %v1350, %v375
      %v1353 = vadd.f32 %v1351, %v376
      %v1354 = vmax.f32 %v1352, 0.0
      %v1355 = vmax.f32 %v1353, 0.0
      %v1356 = vmul.f32 %v812, %v1354
      %v1357 = vmul.f32 %v812, %v1355
      %v1358 = vmul.f32 %v815, %v1342
      %v1359 = vmul.f32 %v815, %v1347
      %v1360 = vadd.f32 %v1358, %v381
      %v1361 = vadd.f32 %v1359, %v382
      %v1362 = vmax.f32 %v1360, 0.0
      %v1363 = vmax.f32 %v1361, 0.0
      %v1364 = vmul.f32 %v822, %v1362
      %v1365 = vmul.f32 %v822, %v1363
      %v1366 = vmul.f32 %v825, %v1342
      %v1367 = vmul.f32 %v825, %v1347
      %v1368 = vadd.f32 %v1366, %v387
      %v1369 = vadd.f32 %v1367, %v388
      %v1370 = vmax.f32 %v1368, 0.0
      %v1371 = vmax.f32 %v1369, 0.0
      %v1372 = vmul.f32 %v832, %v1370
      %v1373 = vmul.f32 %v832, %v1371
      %v1374 = vmul.f32 %v835, %v1342
      %v1375 = vmul.f32 %v835, %v1347
      %v1376 = vadd.f32 %v1374, %v393
      %v1377 = vadd.f32 %v1375, %v394
      %v1378 = vmax.f32 %v1376, 0.0
      %v1379 = vmax.f32 %v1377, 0.0
      %v1380 = vmul.f32 %v842, %v1378
      %v1381 = vmul.f32 %v842, %v1379
      %v1382 = vmul.f32 %v845, %v1342
      %v1383 = vmul.f32 %v845, %v1347
      %v1384 = vadd.f32 %v1382, %v399
      %v1385 = vadd.f32 %v1383, %v400
      %v1386 = vmax.f32 %v1384, 0.0
      %v1387 = vmax.f32 %v1385, 0.0
      %v1388 = vmul.f32 %v852, %v1386
      %v1389 = vmul.f32 %v852, %v1387
      %v1390 = vmul.f32 %v855, %v1342
      %v1391 = vmul.f32 %v855, %v1347
      %v1392 = vadd.f32 %v1390, %v405
      %v1393 = vadd.f32 %v1391, %v406
      %v1394 = vmax.f32 %v1392, 0.0
      %v1395 = vmax.f32 %v1393, 0.0
      %v1396 = vmul.f32 %v862, %v1394
      %v1397 = vmul.f32 %v862, %v1395
      %v1398 = vmul.f32 %v865, %v1342
      %v1399 = vmul.f32 %v865, %v1347
      %v1400 = vadd.f32 %v1398, %v411
      %v1401 = vadd.f32 %v1399, %v412
      %v1402 = vmax.f32 %v1400, 0.0
      %v1403 = vmax.f32 %v1401, 0.0
      %v1404 = vmul.f32 %v872, %v1402
      %v1405 = vmul.f32 %v872, %v1403
      %v1406 = vmul.f32 %v875, %v1342
      %v1407 = vmul.f32 %v875, %v1347
      %v1408 = vadd.f32 %v1406, %v417
      %v1409 = vadd.f32 %v1407, %v418
      %v1410 = vmax.f32 %v1408, 0.0
      %v1411 = vmax.f32 %v1409, 0.0
      %v1412 = vmul.f32 %v882, %v1410
      %v1413 = vmul.f32 %v882, %v1411
      %v1414 = vmul.f32 %v885, %v1342
      %v1415 = vmul.f32 %v885, %v1347
      %v1416 = vadd.f32 %v1414, %v423
      %v1417 = vadd.f32 %v1415, %v424
      %v1418 = vmax.f32 %v1416, 0.0
      %v1419 = vmax.f32 %v1417, 0.0
      %v1420 = vmul.f32 %v892, %v1418
      %v1421 = vmul.f32 %v892, %v1419
      %v1422 = vmul.f32 %v895, %v1342
      %v1423 = vmul.f32 %v895, %v1347
      %v1424 = vadd.f32 %v1422, %v429
      %v1425 = vadd.f32 %v1423, %v430
      %v1426 = vmax.f32 %v1424, 0.0
      %v1427 = vmax.f32 %v1425, 0.0
      %v1428 = vmul.f32 %v902, %v1426
      %v1429 = vmul.f32 %v902, %v1427
      %v1430 = vadd.f32 %v1356, %v1364
      %v1431 = vadd.f32 %v1357, %v1365
      %v1432 = vadd.f32 %v1372, %v1380
      %v1433 = vadd.f32 %v1373, %v1381
      %v1434 = vadd.f32 %v1388, %v1396
      %v1435 = vadd.f32 %v1389, %v1397
      %v1436 = vadd.f32 %v1404, %v1412
      %v1437 = vadd.f32 %v1405, %v1413
      %v1438 = vadd.f32 %v1420, %v1428
      %v1439 = vadd.f32 %v1421, %v1429
      %v1440 = vadd.f32 %v1430, %v1432
      %v1441 = vadd.f32 %v1431, %v1433
      %v1442 = vadd.f32 %v1434, %v1436
      %v1443 = vadd.f32 %v1435, %v1437
      %v1444 = vadd.f32 %v1440, %v1442
      %v1445 = vadd.f32 %v1441, %v1443
      %v1446 = vadd.f32 %v1444, %v1438
      %v1447 = vadd.f32 %v1445, %v1439
      %v1448 = vadd.f32 %v1446, %v923
      %v1449 = vadd.f32 %v1447, %v923
      %v1450 = vmul.f32 %v926, %v1257
      %v1451 = vmul.f32 %v926, %v1258
      %v1452 = vmul.f32 %v929, %v1448
      %v1453 = vmul.f32 %v929, %v1449
      %v1454 = vadd.f32 %v1450, %v1452
      %v1455 = vadd.f32 %v1451, %v1453
      %v1456 = vadd.f32 %v1454, %v934
      %v1457 = vadd.f32 %v1455, %v934
      %v1458 = vxor.u32 %v1456, 2147483648
      %v1459 = vxor.u32 %v1457, 2147483648
      %v1460 = vmul.f32 %v1458, 1.442695
      %v1461 = vpow.pop %v1460
      %v1462 = vmul.f32 %v1459, 1.442695
      %v1463 = vpow.pop %v1462
      %v1464 = vadd.f32 %v1461, 1.0
      %v1465 = vadd.f32 %v1463, 1.0
      %v1466 = vrcp.pop %v1464
      %v1467 = vmul.f32 1.0, %v1466
      %v1468 = vrcp.pop %v1465
      %v1469 = vmul.f32 1.0, %v1468
      %v1470 = vmul.f32 %v949, %v1257
      %v1471 = vmul.f32 %v949, %v1258
      %v1472 = vmul.f32 %v952, %v1448
      %v1473 = vmul.f32 %v952, %v1449
      %v1474 = vadd.f32 %v1470, %v1472
      %v1475 = vadd.f32 %v1471, %v1473
      %v1476 = vadd.f32 %v1474, %v957
      %v1477 = vadd.f32 %v1475, %v957
      %v1478 = vxor.u32 %v1476, 2147483648
      %v1479 = vxor.u32 %v1477, 2147483648
      %v1480 = vmul.f32 %v1478, 1.442695
      %v1481 = vpow.pop %v1480
      %v1482 = vmul.f32 %v1479, 1.442695
      %v1483 = vpow.pop %v1482
      %v1484 = vadd.f32 %v1481, 1.0
      %v1485 = vadd.f32 %v1483, 1.0
      %v1486 = vrcp.pop %v1484
      %v1487 = vmul.f32 1.0, %v1486
      %v1488 = vrcp.pop %v1485
      %v1489 = vmul.f32 1.0, %v1488
      %v1490 = vmul.f32 %v972, %v1257
      %v1491 = vmul.f32 %v972, %v1258
      %v1492 = vadd.f32 %v1490, %v975
      %v1493 = vadd.f32 %v1491, %v975
      %v1494 = vmul.f32 %v978, %v1448
      %v1495 = vmul.f32 %v978, %v1449
      %v1496 = vadd.f32 %v1494, %v981
      %v1497 = vadd.f32 %v1495, %v981
      %v1498 = vmul.f32 %v1467, %v1496
      %v1499 = vmul.f32 %v1469, %v1497
      %v1500 = vadd.f32 %v1492, %v1498
      %v1501 = vadd.f32 %v1493, %v1499
      %v1502 = vtanh.pop %v1500
      %v1503 = vtanh.pop %v1501
      %v1504 = vsub.f32 1.0, %v1487
      %v1505 = vsub.f32 1.0, %v1489
      %v1506 = vmul.f32 %v1504, %v1502
      %v1507 = vmul.f32 %v1505, %v1503
      %v1508 = vmul.f32 %v1487, %v1448
      %v1509 = vmul.f32 %v1489, %v1449
      %v1510 = vadd.f32 %v1506, %v1508
      %v1511 = vadd.f32 %v1507, %v1509
    $region86: #{tpu_custom_call.1} parent=1 // loop_footer
      %s1003 = sadd.s32 1, %s999
    $region87: #{tpu_custom_call.1} parent=1 // loop_footer_branch
      %998 = sbr.rel target = $region83
    $region88: #{tpu_custom_call.1} parent=1 // loop_exit
      _
    %v1512 = vld [vmem:[#allocation6] sm:$0xff]
    %v1513 = vld [vmem:[#allocation6 + $0x8] sm:$0xff]
    %v1514 = vld [vmem:[#allocation6 + $0x10] sm:$0xff]
    %v1515 = vld [vmem:[#allocation6 + $0x18] sm:$0xff]
    %v1516 = vld [vmem:[#allocation6 + $0x20] sm:$0xff]
    %v1517 = vld [vmem:[#allocation6 + $0x28] sm:$0xff]
    %v1518 = vld [vmem:[#allocation6 + $0x30] sm:$0xff]
    %v1519 = vld [vmem:[#allocation6 + $0x38] sm:$0xff]
    %v1520 = vld [vmem:[#allocation6 + $0x40] sm:$0xff]
    %v1521 = vld [vmem:[#allocation6 + $0x48] sm:$0xff]
    %v1522 = vld [vmem:[#allocation6 + $0x50] sm:$0xff]
    %v1523 = vld [vmem:[#allocation6 + $0x58] sm:$0xff]
    %v1524 = vld [vmem:[#allocation6 + $0x60] sm:$0xff]
    %v1525 = vld [vmem:[#allocation6 + $0x68] sm:$0xff]
    %v1526 = vld [vmem:[#allocation6 + $0x70] sm:$0xff]
    %v1527 = vld [vmem:[#allocation6 + $0x78] sm:$0xff]
    %1528 = vmatprep.subr.mxu0 0.0
    %1529 = vmatpush1.msra.mxu0 %v1512
    %1530 = vmatprep.subr.mxu0 0.0
    %1531 = vmatpush1.msra.mxu0 %v1513
    %1532 = vmatprep.subr.mxu0 0.0
    %1533 = vmatpush1.msra.mxu0 %v1514
    %1534 = vmatprep.subr.mxu0 0.0
    %1535 = vmatpush1.msra.mxu0 %v1515
    %1536 = vmatprep.subr.mxu0 0.0
    %1537 = vmatpush1.msra.mxu0 %v1516
    %1538 = vmatprep.subr.mxu0 0.0
    %1539 = vmatpush1.msra.mxu0 %v1517
    %1540 = vmatprep.subr.mxu0 0.0
    %1541 = vmatpush1.msra.mxu0 %v1518
    %1542 = vmatprep.subr.mxu0 0.0
    %1543 = vmatpush1.msra.mxu0 %v1519
    %1544 = vmatprep.subr.mxu0 0.0
    %1545 = vmatpush1.msra.mxu0 %v1520
    %1546 = vmatprep.subr.mxu0 0.0
    %1547 = vmatpush1.msra.mxu0 %v1521
    %1548 = vmatprep.subr.mxu0 0.0
    %1549 = vmatpush1.msra.mxu0 %v1522
    %1550 = vmatprep.subr.mxu0 0.0
    %1551 = vmatpush1.msra.mxu0 %v1523
    %1552 = vmatprep.subr.mxu0 0.0
    %1553 = vmatpush1.msra.mxu0 %v1524
    %1554 = vmatprep.subr.mxu0 0.0
    %1555 = vmatpush1.msra.mxu0 %v1525
    %1556 = vmatprep.subr.mxu0 0.0
    %1557 = vmatpush1.msra.mxu0 %v1526
    %1558 = vmatprep.subr.mxu0 0.0
    %1559 = vmatpush1.msra.mxu0 %v1527
    %1560 = vmatprep.subr.mxu0 0.0
    %1561 = vmatpush1.msra.mxu0 0.0
    %1562 = vmatprep.subr.mxu0 0.0
    %1563 = vmatpush1.msra.mxu0 0.0
    %1564 = vmatprep.subr.mxu0 0.0
    %1565 = vmatpush1.msra.mxu0 0.0
    %1566 = vmatprep.subr.mxu0 0.0
    %1567 = vmatpush1.msra.mxu0 0.0
    %1568 = vmatprep.subr.mxu0 0.0
    %1569 = vmatpush1.msra.mxu0 0.0
    %1570 = vmatprep.subr.mxu0 0.0
    %1571 = vmatpush1.msra.mxu0 0.0
    %1572 = vmatprep.subr.mxu0 0.0
    %1573 = vmatpush1.msra.mxu0 0.0
    %1574 = vmatprep.subr.mxu0 0.0
    %1575 = vmatpush1.msra.mxu0 0.0
    %1576 = vmatprep.subr.mxu0 0.0
    %1577 = vmatpush1.msra.mxu0 0.0
    %1578 = vmatprep.subr.mxu0 0.0
    %1579 = vmatpush1.msra.mxu0 0.0
    %1580 = vmatprep.subr.mxu0 0.0
    %1581 = vmatpush1.msra.mxu0 0.0
    %1582 = vmatprep.subr.mxu0 0.0
    %1583 = vmatpush1.msra.mxu0 0.0
    %1584 = vmatprep.subr.mxu0 0.0
    %1585 = vmatpush1.msra.mxu0 0.0
    %1586 = vmatprep.subr.mxu0 0.0
    %1587 = vmatpush1.msra.mxu0 0.0
    %1588 = vmatprep.subr.mxu0 0.0
    %1589 = vmatpush1.msra.mxu0 0.0
    %1590 = vmatprep.subr.mxu0 0.0
    %1591 = vmatpush1.msra.mxu0 0.0
    %1592 = vmatprep.mubr.f32.mxu0 0.0
    %1593 = vmatmul.mubr.f32.gmra.mrb[0].mxu0 %v1004
    %v1594 = vpop.f32.mrb[0].mxu0
    %v1595 = vadd.f32 0.0, %v1594
    %v1596 = vpop.f32.mrb[0].mxu0
    %1597 = vmatprep.mubr.f32.mxu0 0.0
    %1598 = vmatmul.mubr.f32.gmra.mrb[0].mxu0 %v1005
    %v1599 = vpop.f32.mrb[0].mxu0
    %v1600 = vadd.f32 0.0, %v1599
    %v1601 = vpop.f32.mrb[0].mxu0
    %1602 = vdwg.mxu0
    %v1603 = vmul.f32 %v522, %v1595
    %v1604 = vmul.f32 %v522, %v1600
    %v1605 = vadd.f32 %v1603, %v315
    %v1606 = vadd.f32 %v1604, %v316
    %v1607 = vmax.f32 %v1605, 0.0
    %v1608 = vmax.f32 %v1606, 0.0
    %v1609 = vmul.f32 %v529, %v1607
    %v1610 = vmul.f32 %v529, %v1608
    %v1611 = vmul.f32 %v532, %v1595
    %v1612 = vmul.f32 %v532, %v1600
    %v1613 = vadd.f32 %v1611, %v321
    %v1614 = vadd.f32 %v1612, %v322
    %v1615 = vmax.f32 %v1613, 0.0
    %v1616 = vmax.f32 %v1614, 0.0
    %v1617 = vmul.f32 %v539, %v1615
    %v1618 = vmul.f32 %v539, %v1616
    %v1619 = vmul.f32 %v542, %v1595
    %v1620 = vmul.f32 %v542, %v1600
    %v1621 = vadd.f32 %v1619, %v327
    %v1622 = vadd.f32 %v1620, %v328
    %v1623 = vmax.f32 %v1621, 0.0
    %v1624 = vmax.f32 %v1622, 0.0
    %v1625 = vmul.f32 %v549, %v1623
    %v1626 = vmul.f32 %v549, %v1624
    %v1627 = vmul.f32 %v552, %v1595
    %v1628 = vmul.f32 %v552, %v1600
    %v1629 = vadd.f32 %v1627, %v333
    %v1630 = vadd.f32 %v1628, %v334
    %v1631 = vmax.f32 %v1629, 0.0
    %v1632 = vmax.f32 %v1630, 0.0
    %v1633 = vmul.f32 %v559, %v1631
    %v1634 = vmul.f32 %v559, %v1632
    %v1635 = vmul.f32 %v562, %v1595
    %v1636 = vmul.f32 %v562, %v1600
    %v1637 = vadd.f32 %v1635, %v339
    %v1638 = vadd.f32 %v1636, %v340
    %v1639 = vmax.f32 %v1637, 0.0
    %v1640 = vmax.f32 %v1638, 0.0
    %v1641 = vmul.f32 %v569, %v1639
    %v1642 = vmul.f32 %v569, %v1640
    %v1643 = vmul.f32 %v572, %v1595
    %v1644 = vmul.f32 %v572, %v1600
    %v1645 = vadd.f32 %v1643, %v345
    %v1646 = vadd.f32 %v1644, %v346
    %v1647 = vmax.f32 %v1645, 0.0
    %v1648 = vmax.f32 %v1646, 0.0
    %v1649 = vmul.f32 %v579, %v1647
    %v1650 = vmul.f32 %v579, %v1648
    %v1651 = vmul.f32 %v582, %v1595
    %v1652 = vmul.f32 %v582, %v1600
    %v1653 = vadd.f32 %v1651, %v351
    %v1654 = vadd.f32 %v1652, %v352
    %v1655 = vmax.f32 %v1653, 0.0
    %v1656 = vmax.f32 %v1654, 0.0
    %v1657 = vmul.f32 %v589, %v1655
    %v1658 = vmul.f32 %v589, %v1656
    %v1659 = vmul.f32 %v592, %v1595
    %v1660 = vmul.f32 %v592, %v1600
    %v1661 = vadd.f32 %v1659, %v357
    %v1662 = vadd.f32 %v1660, %v358
    %v1663 = vmax.f32 %v1661, 0.0
    %v1664 = vmax.f32 %v1662, 0.0
    %v1665 = vmul.f32 %v599, %v1663
    %v1666 = vmul.f32 %v599, %v1664
    %v1667 = vmul.f32 %v602, %v1595
    %v1668 = vmul.f32 %v602, %v1600
    %v1669 = vadd.f32 %v1667, %v363
    %v1670 = vadd.f32 %v1668, %v364
    %v1671 = vmax.f32 %v1669, 0.0
    %v1672 = vmax.f32 %v1670, 0.0
    %v1673 = vmul.f32 %v609, %v1671
    %v1674 = vmul.f32 %v609, %v1672
    %v1675 = vmul.f32 %v612, %v1595
    %v1676 = vmul.f32 %v612, %v1600
    %v1677 = vadd.f32 %v1675, %v369
    %v1678 = vadd.f32 %v1676, %v370
    %v1679 = vmax.f32 %v1677, 0.0
    %v1680 = vmax.f32 %v1678, 0.0
    %v1681 = vmul.f32 %v619, %v1679
    %v1682 = vmul.f32 %v619, %v1680
    %v1683 = vadd.f32 %v1609, %v1617
    %v1684 = vadd.f32 %v1610, %v1618
    %v1685 = vadd.f32 %v1625, %v1633
    %v1686 = vadd.f32 %v1626, %v1634
    %v1687 = vadd.f32 %v1641, %v1649
    %v1688 = vadd.f32 %v1642, %v1650
    %v1689 = vadd.f32 %v1657, %v1665
    %v1690 = vadd.f32 %v1658, %v1666
    %v1691 = vadd.f32 %v1673, %v1681
    %v1692 = vadd.f32 %v1674, %v1682
    %v1693 = vadd.f32 %v1683, %v1685
    %v1694 = vadd.f32 %v1684, %v1686
    %v1695 = vadd.f32 %v1687, %v1689
    %v1696 = vadd.f32 %v1688, %v1690
    %v1697 = vadd.f32 %v1693, %v1695
    %v1698 = vadd.f32 %v1694, %v1696
    %v1699 = vadd.f32 %v1697, %v1691
    %v1700 = vadd.f32 %v1698, %v1692
    %v1701 = vadd.f32 %v1699, %v640
    %v1702 = vadd.f32 %v1700, %v640
    %v1703 = vmul.f32 %v643, %v1004
    %v1704 = vmul.f32 %v643, %v1005
    %v1705 = vmul.f32 %v645, %v1701
    %v1706 = vmul.f32 %v645, %v1702
    %v1707 = vadd.f32 %v1703, %v1705
    %v1708 = vadd.f32 %v1704, %v1706
    %v1709 = vadd.f32 %v1707, %v650
    %v1710 = vadd.f32 %v1708, %v650
    %v1711 = vxor.u32 %v1709, 2147483648
    %v1712 = vxor.u32 %v1710, 2147483648
    %v1713 = vmul.f32 %v1711, 1.442695
    %v1714 = vpow.pop %v1713
    %v1715 = vmul.f32 %v1712, 1.442695
    %v1716 = vpow.pop %v1715
    %v1717 = vadd.f32 %v1714, 1.0
    %v1718 = vadd.f32 %v1716, 1.0
    %v1719 = vrcp.pop %v1717
    %v1720 = vmul.f32 1.0, %v1719
    %v1721 = vrcp.pop %v1718
    %v1722 = vmul.f32 1.0, %v1721
    %v1723 = vmul.f32 %v665, %v1004
    %v1724 = vmul.f32 %v665, %v1005
    %v1725 = vmul.f32 %v667, %v1701
    %v1726 = vmul.f32 %v667, %v1702
    %v1727 = vadd.f32 %v1723, %v1725
    %v1728 = vadd.f32 %v1724, %v1726
    %v1729 = vadd.f32 %v1727, %v672
    %v1730 = vadd.f32 %v1728, %v672
    %v1731 = vxor.u32 %v1729, 2147483648
    %v1732 = vxor.u32 %v1730, 2147483648
    %v1733 = vmul.f32 %v1731, 1.442695
    %v1734 = vpow.pop %v1733
    %v1735 = vmul.f32 %v1732, 1.442695
    %v1736 = vpow.pop %v1735
    %v1737 = vadd.f32 %v1734, 1.0
    %v1738 = vadd.f32 %v1736, 1.0
    %v1739 = vrcp.pop %v1737
    %v1740 = vmul.f32 1.0, %v1739
    %v1741 = vrcp.pop %v1738
    %v1742 = vmul.f32 1.0, %v1741
    %v1743 = vmul.f32 %v687, %v1004
    %v1744 = vmul.f32 %v687, %v1005
    %v1745 = vadd.f32 %v1743, %v689
    %v1746 = vadd.f32 %v1744, %v689
    %v1747 = vmul.f32 %v691, %v1701
    %v1748 = vmul.f32 %v691, %v1702
    %v1749 = vadd.f32 %v1747, %v694
    %v1750 = vadd.f32 %v1748, %v694
    %v1751 = vmul.f32 %v1720, %v1749
    %v1752 = vmul.f32 %v1722, %v1750
    %v1753 = vadd.f32 %v1745, %v1751
    %v1754 = vadd.f32 %v1746, %v1752
    %v1755 = vtanh.pop %v1753
    %v1756 = vtanh.pop %v1754
    %v1757 = vsub.f32 1.0, %v1740
    %v1758 = vsub.f32 1.0, %v1742
    %v1759 = vmul.f32 %v1757, %v1755
    %v1760 = vmul.f32 %v1758, %v1756
    %v1761 = vmul.f32 %v1740, %v1701
    %v1762 = vmul.f32 %v1742, %v1702
    %v1763 = vadd.f32 %v1759, %v1761
    %v1764 = vadd.f32 %v1760, %v1762
    %1765 = vmatprep.subr.mxu0 0.0
    %1766 = vmatpush1.msra.mxu0 %v714
    %1767 = vmatprep.subr.mxu0 0.0
    %1768 = vmatpush1.msra.mxu0 %v715
    %1769 = vmatprep.subr.mxu0 0.0
    %1770 = vmatpush1.msra.mxu0 %v716
    %1771 = vmatprep.subr.mxu0 0.0
    %1772 = vmatpush1.msra.mxu0 %v717
    %1773 = vmatprep.subr.mxu0 0.0
    %1774 = vmatpush1.msra.mxu0 %v718
    %1775 = vmatprep.subr.mxu0 0.0
    %1776 = vmatpush1.msra.mxu0 %v719
    %1777 = vmatprep.subr.mxu0 0.0
    %1778 = vmatpush1.msra.mxu0 %v720
    %1779 = vmatprep.subr.mxu0 0.0
    %1780 = vmatpush1.msra.mxu0 %v721
    %1781 = vmatprep.subr.mxu0 0.0
    %1782 = vmatpush1.msra.mxu0 %v722
    %1783 = vmatprep.subr.mxu0 0.0
    %1784 = vmatpush1.msra.mxu0 %v723
    %1785 = vmatprep.subr.mxu0 0.0
    %1786 = vmatpush1.msra.mxu0 %v724
    %1787 = vmatprep.subr.mxu0 0.0
    %1788 = vmatpush1.msra.mxu0 %v725
    %1789 = vmatprep.subr.mxu0 0.0
    %1790 = vmatpush1.msra.mxu0 %v726
    %1791 = vmatprep.subr.mxu0 0.0
    %1792 = vmatpush1.msra.mxu0 %v727
    %1793 = vmatprep.subr.mxu0 0.0
    %1794 = vmatpush1.msra.mxu0 %v728
    %1795 = vmatprep.subr.mxu0 0.0
    %1796 = vmatpush1.msra.mxu0 %v729
    %1797 = vmatprep.subr.mxu0 0.0
    %1798 = vmatpush1.msra.mxu0 0.0
    %1799 = vmatprep.subr.mxu0 0.0
    %1800 = vmatpush1.msra.mxu0 0.0
    %1801 = vmatprep.subr.mxu0 0.0
    %1802 = vmatpush1.msra.mxu0 0.0
    %1803 = vmatprep.subr.mxu0 0.0
    %1804 = vmatpush1.msra.mxu0 0.0
    %1805 = vmatprep.subr.mxu0 0.0
    %1806 = vmatpush1.msra.mxu0 0.0
    %1807 = vmatprep.subr.mxu0 0.0
    %1808 = vmatpush1.msra.mxu0 0.0
    %1809 = vmatprep.subr.mxu0 0.0
    %1810 = vmatpush1.msra.mxu0 0.0
    %1811 = vmatprep.subr.mxu0 0.0
    %1812 = vmatpush1.msra.mxu0 0.0
    %1813 = vmatprep.subr.mxu0 0.0
    %1814 = vmatpush1.msra.mxu0 0.0
    %1815 = vmatprep.subr.mxu0 0.0
    %1816 = vmatpush1.msra.mxu0 0.0
    %1817 = vmatprep.subr.mxu0 0.0
    %1818 = vmatpush1.msra.mxu0 0.0
    %1819 = vmatprep.subr.mxu0 0.0
    %1820 = vmatpush1.msra.mxu0 0.0
    %1821 = vmatprep.subr.mxu0 0.0
    %1822 = vmatpush1.msra.mxu0 0.0
    %1823 = vmatprep.subr.mxu0 0.0
    %1824 = vmatpush1.msra.mxu0 0.0
    %1825 = vmatprep.subr.mxu0 0.0
    %1826 = vmatpush1.msra.mxu0 0.0
    %1827 = vmatprep.subr.mxu0 0.0
    %1828 = vmatpush1.msra.mxu0 0.0
    %1829 = vmatprep.mubr.f32.mxu0 0.0
    %1830 = vmatmul.mubr.f32.gmra.mrb[0].mxu0 %v1763
    %v1831 = vpop.f32.mrb[0].mxu0
    %v1832 = vadd.f32 0.0, %v1831
    %v1833 = vpop.f32.mrb[0].mxu0
    %1834 = vmatprep.mubr.f32.mxu0 0.0
    %1835 = vmatmul.mubr.f32.gmra.mrb[0].mxu0 %v1764
    %v1836 = vpop.f32.mrb[0].mxu0
    %v1837 = vadd.f32 0.0, %v1836
    %v1838 = vpop.f32.mrb[0].mxu0
    %1839 = vdwg.mxu0
    %v1840 = vmul.f32 %v805, %v1832
    %v1841 = vmul.f32 %v805, %v1837
    %v1842 = vadd.f32 %v1840, %v375
    %v1843 = vadd.f32 %v1841, %v376
    %v1844 = vmax.f32 %v1842, 0.0
    %v1845 = vmax.f32 %v1843, 0.0
    %v1846 = vmul.f32 %v812, %v1844
    %v1847 = vmul.f32 %v812, %v1845
    %v1848 = vmul.f32 %v815, %v1832
    %v1849 = vmul.f32 %v815, %v1837
    %v1850 = vadd.f32 %v1848, %v381
    %v1851 = vadd.f32 %v1849, %v382
    %v1852 = vmax.f32 %v1850, 0.0
    %v1853 = vmax.f32 %v1851, 0.0
    %v1854 = vmul.f32 %v822, %v1852
    %v1855 = vmul.f32 %v822, %v1853
    %v1856 = vmul.f32 %v825, %v1832
    %v1857 = vmul.f32 %v825, %v1837
    %v1858 = vadd.f32 %v1856, %v387
    %v1859 = vadd.f32 %v1857, %v388
    %v1860 = vmax.f32 %v1858, 0.0
    %v1861 = vmax.f32 %v1859, 0.0
    %v1862 = vmul.f32 %v832, %v1860
    %v1863 = vmul.f32 %v832, %v1861
    %v1864 = vmul.f32 %v835, %v1832
    %v1865 = vmul.f32 %v835, %v1837
    %v1866 = vadd.f32 %v1864, %v393
    %v1867 = vadd.f32 %v1865, %v394
    %v1868 = vmax.f32 %v1866, 0.0
    %v1869 = vmax.f32 %v1867, 0.0
    %v1870 = vmul.f32 %v842, %v1868
    %v1871 = vmul.f32 %v842, %v1869
    %v1872 = vmul.f32 %v845, %v1832
    %v1873 = vmul.f32 %v845, %v1837
    %v1874 = vadd.f32 %v1872, %v399
    %v1875 = vadd.f32 %v1873, %v400
    %v1876 = vmax.f32 %v1874, 0.0
    %v1877 = vmax.f32 %v1875, 0.0
    %v1878 = vmul.f32 %v852, %v1876
    %v1879 = vmul.f32 %v852, %v1877
    %v1880 = vmul.f32 %v855, %v1832
    %v1881 = vmul.f32 %v855, %v1837
    %v1882 = vadd.f32 %v1880, %v405
    %v1883 = vadd.f32 %v1881, %v406
    %v1884 = vmax.f32 %v1882, 0.0
    %v1885 = vmax.f32 %v1883, 0.0
    %v1886 = vmul.f32 %v862, %v1884
    %v1887 = vmul.f32 %v862, %v1885
    %v1888 = vmul.f32 %v865, %v1832
    %v1889 = vmul.f32 %v865, %v1837
    %v1890 = vadd.f32 %v1888, %v411
    %v1891 = vadd.f32 %v1889, %v412
    %v1892 = vmax.f32 %v1890, 0.0
    %v1893 = vmax.f32 %v1891, 0.0
    %v1894 = vmul.f32 %v872, %v1892
    %v1895 = vmul.f32 %v872, %v1893
    %v1896 = vmul.f32 %v875, %v1832
    %v1897 = vmul.f32 %v875, %v1837
    %v1898 = vadd.f32 %v1896, %v417
    %v1899 = vadd.f32 %v1897, %v418
    %v1900 = vmax.f32 %v1898, 0.0
    %v1901 = vmax.f32 %v1899, 0.0
    %v1902 = vmul.f32 %v882, %v1900
    %v1903 = vmul.f32 %v882, %v1901
    %v1904 = vmul.f32 %v885, %v1832
    %v1905 = vmul.f32 %v885, %v1837
    %v1906 = vadd.f32 %v1904, %v423
    %v1907 = vadd.f32 %v1905, %v424
    %v1908 = vmax.f32 %v1906, 0.0
    %v1909 = vmax.f32 %v1907, 0.0
    %v1910 = vmul.f32 %v892, %v1908
    %v1911 = vmul.f32 %v892, %v1909
    %v1912 = vmul.f32 %v895, %v1832
    %v1913 = vmul.f32 %v895, %v1837
    %v1914 = vadd.f32 %v1912, %v429
    %v1915 = vadd.f32 %v1913, %v430
    %v1916 = vmax.f32 %v1914, 0.0
    %v1917 = vmax.f32 %v1915, 0.0
    %v1918 = vmul.f32 %v902, %v1916
    %v1919 = vmul.f32 %v902, %v1917
    %v1920 = vadd.f32 %v1846, %v1854
    %v1921 = vadd.f32 %v1847, %v1855
    %v1922 = vadd.f32 %v1862, %v1870
    %v1923 = vadd.f32 %v1863, %v1871
    %v1924 = vadd.f32 %v1878, %v1886
    %v1925 = vadd.f32 %v1879, %v1887
    %v1926 = vadd.f32 %v1894, %v1902
    %v1927 = vadd.f32 %v1895, %v1903
    %v1928 = vadd.f32 %v1910, %v1918
    %v1929 = vadd.f32 %v1911, %v1919
    %v1930 = vadd.f32 %v1920, %v1922
    %v1931 = vadd.f32 %v1921, %v1923
    %v1932 = vadd.f32 %v1924, %v1926
    %v1933 = vadd.f32 %v1925, %v1927
    %v1934 = vadd.f32 %v1930, %v1932
    %v1935 = vadd.f32 %v1931, %v1933
    %v1936 = vadd.f32 %v1934, %v1928
    %v1937 = vadd.f32 %v1935, %v1929
    %v1938 = vadd.f32 %v1936, %v923
    %v1939 = vadd.f32 %v1937, %v923
    %v1940 = vmul.f32 %v926, %v1763
    %v1941 = vmul.f32 %v926, %v1764
    %v1942 = vmul.f32 %v929, %v1938
    %v1943 = vmul.f32 %v929, %v1939
    %v1944 = vadd.f32 %v1940, %v1942
    %v1945 = vadd.f32 %v1941, %v1943
    %v1946 = vadd.f32 %v1944, %v934
    %v1947 = vadd.f32 %v1945, %v934
    %v1948 = vxor.u32 %v1946, 2147483648
    %v1949 = vxor.u32 %v1947, 2147483648
    %v1950 = vmul.f32 %v1948, 1.442695
    %v1951 = vpow.pop %v1950
    %v1952 = vmul.f32 %v1949, 1.442695
    %v1953 = vpow.pop %v1952
    %v1954 = vadd.f32 %v1951, 1.0
    %v1955 = vadd.f32 %v1953, 1.0
    %v1956 = vrcp.pop %v1954
    %v1957 = vmul.f32 1.0, %v1956
    %v1958 = vrcp.pop %v1955
    %v1959 = vmul.f32 1.0, %v1958
    %v1960 = vmul.f32 %v949, %v1763
    %v1961 = vmul.f32 %v949, %v1764
    %v1962 = vmul.f32 %v952, %v1938
    %v1963 = vmul.f32 %v952, %v1939
    %v1964 = vadd.f32 %v1960, %v1962
    %v1965 = vadd.f32 %v1961, %v1963
    %v1966 = vadd.f32 %v1964, %v957
    %v1967 = vadd.f32 %v1965, %v957
    %v1968 = vxor.u32 %v1966, 2147483648
    %v1969 = vxor.u32 %v1967, 2147483648
    %v1970 = vmul.f32 %v1968, 1.442695
    %v1971 = vpow.pop %v1970
    %v1972 = vmul.f32 %v1969, 1.442695
    %v1973 = vpow.pop %v1972
    %v1974 = vadd.f32 %v1971, 1.0
    %v1975 = vadd.f32 %v1973, 1.0
    %v1976 = vrcp.pop %v1974
    %v1977 = vmul.f32 1.0, %v1976
    %v1978 = vrcp.pop %v1975
    %v1979 = vmul.f32 1.0, %v1978
    %v1980 = vmul.f32 %v972, %v1763
    %v1981 = vmul.f32 %v972, %v1764
    %v1982 = vadd.f32 %v1980, %v975
    %v1983 = vadd.f32 %v1981, %v975
    %v1984 = vmul.f32 %v978, %v1938
    %v1985 = vmul.f32 %v978, %v1939
    %v1986 = vadd.f32 %v1984, %v981
    %v1987 = vadd.f32 %v1985, %v981
    %v1988 = vmul.f32 %v1957, %v1986
    %v1989 = vmul.f32 %v1959, %v1987
    %v1990 = vadd.f32 %v1982, %v1988
    %v1991 = vadd.f32 %v1983, %v1989
    %v1992 = vtanh.pop %v1990
    %v1993 = vtanh.pop %v1991
    %v1994 = vsub.f32 1.0, %v1977
    %v1995 = vsub.f32 1.0, %v1979
    %v1996 = vmul.f32 %v1994, %v1992
    %v1997 = vmul.f32 %v1995, %v1993
    %v1998 = vmul.f32 %v1977, %v1938
    %v1999 = vmul.f32 %v1979, %v1939
    %v2000 = vadd.f32 %v1996, %v1998
    %v2001 = vadd.f32 %v1997, %v1999
    %s2002 = sshll.u32 %s711, 4
    %2003 = dma.done %s150, %s2002
    %s2004 = sshll.u32 %s711, 4
    %2005 = dma.done %s162, %s2004
    %v2006 = vld [vmem:[#allocation3] sm:$0xff]
    %v2007 = vld [vmem:[#allocation3 + $0x8] sm:$0xff]
    %v2008 = vld [vmem:[#allocation3 + $0x10] sm:$0xff]
    %v2009 = vld [vmem:[#allocation3 + $0x18] sm:$0xff]
    %v2010 = vld [vmem:[#allocation3 + $0x20] sm:$0xff]
    %v2011 = vld [vmem:[#allocation3 + $0x28] sm:$0xff]
    %v2012 = vld [vmem:[#allocation3 + $0x30] sm:$0xff]
    %v2013 = vld [vmem:[#allocation3 + $0x38] sm:$0xff]
    %v2014 = vld [vmem:[#allocation3 + $0x40] sm:$0xff]
    %v2015 = vld [vmem:[#allocation3 + $0x48] sm:$0xff]
    %v2016 = vld [vmem:[#allocation3 + $0x50] sm:$0xff]
    %v2017 = vld [vmem:[#allocation3 + $0x58] sm:$0xff]
    %v2018 = vld [vmem:[#allocation3 + $0x60] sm:$0xff]
    %v2019 = vld [vmem:[#allocation3 + $0x68] sm:$0xff]
    %v2020 = vld [vmem:[#allocation3 + $0x70] sm:$0xff]
    %v2021 = vld [vmem:[#allocation3 + $0x78] sm:$0xff]
    %2022 = vmatprep.subr.mxu0 0.0
    %2023 = vmatpush1.msra.mxu0 %v2006
    %2024 = vmatprep.subr.mxu0 0.0
    %2025 = vmatpush1.msra.mxu0 %v2007
    %2026 = vmatprep.subr.mxu0 0.0
    %2027 = vmatpush1.msra.mxu0 %v2008
    %2028 = vmatprep.subr.mxu0 0.0
    %2029 = vmatpush1.msra.mxu0 %v2009
    %2030 = vmatprep.subr.mxu0 0.0
    %2031 = vmatpush1.msra.mxu0 %v2010
    %2032 = vmatprep.subr.mxu0 0.0
    %2033 = vmatpush1.msra.mxu0 %v2011
    %2034 = vmatprep.subr.mxu0 0.0
    %2035 = vmatpush1.msra.mxu0 %v2012
    %2036 = vmatprep.subr.mxu0 0.0
    %2037 = vmatpush1.msra.mxu0 %v2013
    %2038 = vmatprep.subr.mxu0 0.0
    %2039 = vmatpush1.msra.mxu0 %v2014
    %2040 = vmatprep.subr.mxu0 0.0
    %2041 = vmatpush1.msra.mxu0 %v2015
    %2042 = vmatprep.subr.mxu0 0.0
    %2043 = vmatpush1.msra.mxu0 %v2016
    %2044 = vmatprep.subr.mxu0 0.0
    %2045 = vmatpush1.msra.mxu0 %v2017
    %2046 = vmatprep.subr.mxu0 0.0
    %2047 = vmatpush1.msra.mxu0 %v2018
    %2048 = vmatprep.subr.mxu0 0.0
    %2049 = vmatpush1.msra.mxu0 %v2019
    %2050 = vmatprep.subr.mxu0 0.0
    %2051 = vmatpush1.msra.mxu0 %v2020
    %2052 = vmatprep.subr.mxu0 0.0
    %2053 = vmatpush1.msra.mxu0 %v2021
    %2054 = vmatprep.subr.mxu0 0.0
    %2055 = vmatpush1.msra.mxu0 0.0
    %2056 = vmatprep.subr.mxu0 0.0
    %2057 = vmatpush1.msra.mxu0 0.0
    %2058 = vmatprep.subr.mxu0 0.0
    %2059 = vmatpush1.msra.mxu0 0.0
    %2060 = vmatprep.subr.mxu0 0.0
    %2061 = vmatpush1.msra.mxu0 0.0
    %2062 = vmatprep.subr.mxu0 0.0
    %2063 = vmatpush1.msra.mxu0 0.0
    %2064 = vmatprep.subr.mxu0 0.0
    %2065 = vmatpush1.msra.mxu0 0.0
    %2066 = vmatprep.subr.mxu0 0.0
    %2067 = vmatpush1.msra.mxu0 0.0
    %2068 = vmatprep.subr.mxu0 0.0
    %2069 = vmatpush1.msra.mxu0 0.0
    %2070 = vmatprep.subr.mxu0 0.0
    %2071 = vmatpush1.msra.mxu0 0.0
    %2072 = vmatprep.subr.mxu0 0.0
    %2073 = vmatpush1.msra.mxu0 0.0
    %2074 = vmatprep.subr.mxu0 0.0
    %2075 = vmatpush1.msra.mxu0 0.0
    %2076 = vmatprep.subr.mxu0 0.0
    %2077 = vmatpush1.msra.mxu0 0.0
    %2078 = vmatprep.subr.mxu0 0.0
    %2079 = vmatpush1.msra.mxu0 0.0
    %2080 = vmatprep.subr.mxu0 0.0
    %2081 = vmatpush1.msra.mxu0 0.0
    %2082 = vmatprep.subr.mxu0 0.0
    %2083 = vmatpush1.msra.mxu0 0.0
    %2084 = vmatprep.subr.mxu0 0.0
    %2085 = vmatpush1.msra.mxu0 0.0
    %2086 = vmatprep.mubr.f32.mxu0 0.0
    %2087 = vmatmul.mubr.f32.gmra.mrb[0].mxu0 %v2000
    %v2088 = vpop.f32.mrb[0].mxu0
    %v2089 = vadd.f32 0.0, %v2088
    %v2090 = vpop.f32.mrb[0].mxu0
    %2091 = vmatprep.mubr.f32.mxu0 0.0
    %2092 = vmatmul.mubr.f32.gmra.mrb[0].mxu0 %v2001
    %v2093 = vpop.f32.mrb[0].mxu0
    %v2094 = vadd.f32 0.0, %v2093
    %v2095 = vpop.f32.mrb[0].mxu0
    %2096 = vdwg.mxu0
    %v2097 = vld [vmem:[#allocation4] sm:$0xff]
    %v2098 = vld [vmem:[#allocation4 + $0x8] sm:$0xff]
    %v2099 = vld [vmem:[#allocation4 + $0x10] sm:$0xff]
    %v2100 = vld [vmem:[#allocation4 + $0x18] sm:$0xff]
    %v2101 = vld [vmem:[#allocation4 + $0x20] sm:$0xff]
    %v2102 = vld [vmem:[#allocation4 + $0x28] sm:$0xff]
    %v2103 = vld [vmem:[#allocation4 + $0x30] sm:$0xff]
    %v2104 = vld [vmem:[#allocation4 + $0x38] sm:$0xff]
    %v2105 = vld [vmem:[#allocation4 + $0x40] sm:$0xff]
    %v2106 = vld [vmem:[#allocation4 + $0x48] sm:$0xff]
    %v2107 = vld [vmem:[#allocation4 + $0x50] sm:$0xff]
    %v2108 = vld [vmem:[#allocation4 + $0x58] sm:$0xff]
    %v2109 = vld [vmem:[#allocation4 + $0x60] sm:$0xff]
    %v2110 = vld [vmem:[#allocation4 + $0x68] sm:$0xff]
    %v2111 = vld [vmem:[#allocation4 + $0x70] sm:$0xff]
    %v2112 = vld [vmem:[#allocation4 + $0x78] sm:$0xff]
    %2113 = vmatprep.subr.mxu0 0.0
    %2114 = vmatpush1.msra.mxu0 %v2097
    %2115 = vmatprep.subr.mxu0 0.0
    %2116 = vmatpush1.msra.mxu0 %v2098
    %2117 = vmatprep.subr.mxu0 0.0
    %2118 = vmatpush1.msra.mxu0 %v2099
    %2119 = vmatprep.subr.mxu0 0.0
    %2120 = vmatpush1.msra.mxu0 %v2100
    %2121 = vmatprep.subr.mxu0 0.0
    %2122 = vmatpush1.msra.mxu0 %v2101
    %2123 = vmatprep.subr.mxu0 0.0
    %2124 = vmatpush1.msra.mxu0 %v2102
    %2125 = vmatprep.subr.mxu0 0.0
    %2126 = vmatpush1.msra.mxu0 %v2103
    %2127 = vmatprep.subr.mxu0 0.0
    %2128 = vmatpush1.msra.mxu0 %v2104
    %2129 = vmatprep.subr.mxu0 0.0
    %2130 = vmatpush1.msra.mxu0 %v2105
    %2131 = vmatprep.subr.mxu0 0.0
    %2132 = vmatpush1.msra.mxu0 %v2106
    %2133 = vmatprep.subr.mxu0 0.0
    %2134 = vmatpush1.msra.mxu0 %v2107
    %2135 = vmatprep.subr.mxu0 0.0
    %2136 = vmatpush1.msra.mxu0 %v2108
    %2137 = vmatprep.subr.mxu0 0.0
    %2138 = vmatpush1.msra.mxu0 %v2109
    %2139 = vmatprep.subr.mxu0 0.0
    %2140 = vmatpush1.msra.mxu0 %v2110
    %2141 = vmatprep.subr.mxu0 0.0
    %2142 = vmatpush1.msra.mxu0 %v2111
    %2143 = vmatprep.subr.mxu0 0.0
    %2144 = vmatpush1.msra.mxu0 %v2112
    %2145 = vmatprep.subr.mxu0 0.0
    %2146 = vmatpush1.msra.mxu0 0.0
    %2147 = vmatprep.subr.mxu0 0.0
    %2148 = vmatpush1.msra.mxu0 0.0
    %2149 = vmatprep.subr.mxu0 0.0
    %2150 = vmatpush1.msra.mxu0 0.0
    %2151 = vmatprep.subr.mxu0 0.0
    %2152 = vmatpush1.msra.mxu0 0.0
    %2153 = vmatprep.subr.mxu0 0.0
    %2154 = vmatpush1.msra.mxu0 0.0
    %2155 = vmatprep.subr.mxu0 0.0
    %2156 = vmatpush1.msra.mxu0 0.0
    %2157 = vmatprep.subr.mxu0 0.0
    %2158 = vmatpush1.msra.mxu0 0.0
    %2159 = vmatprep.subr.mxu0 0.0
    %2160 = vmatpush1.msra.mxu0 0.0
    %2161 = vmatprep.subr.mxu0 0.0
    %2162 = vmatpush1.msra.mxu0 0.0
    %2163 = vmatprep.subr.mxu0 0.0
    %2164 = vmatpush1.msra.mxu0 0.0
    %2165 = vmatprep.subr.mxu0 0.0
    %2166 = vmatpush1.msra.mxu0 0.0
    %2167 = vmatprep.subr.mxu0 0.0
    %2168 = vmatpush1.msra.mxu0 0.0
    %2169 = vmatprep.subr.mxu0 0.0
    %2170 = vmatpush1.msra.mxu0 0.0
    %2171 = vmatprep.subr.mxu0 0.0
    %2172 = vmatpush1.msra.mxu0 0.0
    %2173 = vmatprep.subr.mxu0 0.0
    %2174 = vmatpush1.msra.mxu0 0.0
    %2175 = vmatprep.subr.mxu0 0.0
    %2176 = vmatpush1.msra.mxu0 0.0
    %2177 = vmatprep.mubr.f32.mxu0 0.0
    %2178 = vmatmul.mubr.f32.gmra.mrb[0].mxu0 %v1763
    %v2179 = vpop.f32.mrb[0].mxu0
    %v2180 = vadd.f32 0.0, %v2179
    %v2181 = vpop.f32.mrb[0].mxu0
    %2182 = vmatprep.mubr.f32.mxu0 0.0
    %2183 = vmatmul.mubr.f32.gmra.mrb[0].mxu0 %v1764
    %v2184 = vpop.f32.mrb[0].mxu0
    %v2185 = vadd.f32 0.0, %v2184
    %v2186 = vpop.f32.mrb[0].mxu0
    %2187 = vdwg.mxu0
    %v2188 = vstv %s260
    %v2189 = vmul.f32 %v2188, %v2089
    %v2190 = vmul.f32 %v2188, %v2094
    %v2191 = vstv %s270
    %v2192 = vadd.f32 %v2189, %v2191
    %v2193 = vadd.f32 %v2190, %v2191
    %v2194 = vmax.f32 %v2192, 0.0
    %v2195 = vmax.f32 %v2193, 0.0
    %v2196 = vstv %s280
    %v2197 = vmul.f32 %v2196, %v2194
    %v2198 = vmul.f32 %v2196, %v2195
    %v2199 = vstv %s261
    %v2200 = vmul.f32 %v2199, %v2089
    %v2201 = vmul.f32 %v2199, %v2094
    %v2202 = vstv %s271
    %v2203 = vadd.f32 %v2200, %v2202
    %v2204 = vadd.f32 %v2201, %v2202
    %v2205 = vmax.f32 %v2203, 0.0
    %v2206 = vmax.f32 %v2204, 0.0
    %v2207 = vstv %s281
    %v2208 = vmul.f32 %v2207, %v2205
    %v2209 = vmul.f32 %v2207, %v2206
    %v2210 = vstv %s262
    %v2211 = vmul.f32 %v2210, %v2089
    %v2212 = vmul.f32 %v2210, %v2094
    %v2213 = vstv %s272
    %v2214 = vadd.f32 %v2211, %v2213
    %v2215 = vadd.f32 %v2212, %v2213
    %v2216 = vmax.f32 %v2214, 0.0
    %v2217 = vmax.f32 %v2215, 0.0
    %v2218 = vstv %s282
    %v2219 = vmul.f32 %v2218, %v2216
    %v2220 = vmul.f32 %v2218, %v2217
    %v2221 = vstv %s263
    %v2222 = vmul.f32 %v2221, %v2089
    %v2223 = vmul.f32 %v2221, %v2094
    %v2224 = vstv %s273
    %v2225 = vadd.f32 %v2222, %v2224
    %v2226 = vadd.f32 %v2223, %v2224
    %v2227 = vmax.f32 %v2225, 0.0
    %v2228 = vmax.f32 %v2226, 0.0
    %v2229 = vstv %s283
    %v2230 = vmul.f32 %v2229, %v2227
    %v2231 = vmul.f32 %v2229, %v2228
    %v2232 = vstv %s264
    %v2233 = vmul.f32 %v2232, %v2089
    %v2234 = vmul.f32 %v2232, %v2094
    %v2235 = vstv %s274
    %v2236 = vadd.f32 %v2233, %v2235
    %v2237 = vadd.f32 %v2234, %v2235
    %v2238 = vmax.f32 %v2236, 0.0
    %v2239 = vmax.f32 %v2237, 0.0
    %v2240 = vstv %s284
    %v2241 = vmul.f32 %v2240, %v2238
    %v2242 = vmul.f32 %v2240, %v2239
    %v2243 = vstv %s265
    %v2244 = vmul.f32 %v2243, %v2089
    %v2245 = vmul.f32 %v2243, %v2094
    %v2246 = vstv %s275
    %v2247 = vadd.f32 %v2244, %v2246
    %v2248 = vadd.f32 %v2245, %v2246
    %v2249 = vmax.f32 %v2247, 0.0
    %v2250 = vmax.f32 %v2248, 0.0
    %v2251 = vstv %s285
    %v2252 = vmul.f32 %v2251, %v2249
    %v2253 = vmul.f32 %v2251, %v2250
    %v2254 = vstv %s266
    %v2255 = vmul.f32 %v2254, %v2089
    %v2256 = vmul.f32 %v2254, %v2094
    %v2257 = vstv %s276
    %v2258 = vadd.f32 %v2255, %v2257
    %v2259 = vadd.f32 %v2256, %v2257
    %v2260 = vmax.f32 %v2258, 0.0
    %v2261 = vmax.f32 %v2259, 0.0
    %v2262 = vstv %s286
    %v2263 = vmul.f32 %v2262, %v2260
    %v2264 = vmul.f32 %v2262, %v2261
    %v2265 = vstv %s267
    %v2266 = vmul.f32 %v2265, %v2089
    %v2267 = vmul.f32 %v2265, %v2094
    %v2268 = vstv %s277
    %v2269 = vadd.f32 %v2266, %v2268
    %v2270 = vadd.f32 %v2267, %v2268
    %v2271 = vmax.f32 %v2269, 0.0
    %v2272 = vmax.f32 %v2270, 0.0
    %v2273 = vstv %s287
    %v2274 = vmul.f32 %v2273, %v2271
    %v2275 = vmul.f32 %v2273, %v2272
    %v2276 = vstv %s268
    %v2277 = vmul.f32 %v2276, %v2089
    %v2278 = vmul.f32 %v2276, %v2094
    %v2279 = vstv %s278
    %v2280 = vadd.f32 %v2277, %v2279
    %v2281 = vadd.f32 %v2278, %v2279
    %v2282 = vmax.f32 %v2280, 0.0
    %v2283 = vmax.f32 %v2281, 0.0
    %v2284 = vstv %s288
    %v2285 = vmul.f32 %v2284, %v2282
    %v2286 = vmul.f32 %v2284, %v2283
    %v2287 = vstv %s269
    %v2288 = vmul.f32 %v2287, %v2089
    %v2289 = vmul.f32 %v2287, %v2094
    %v2290 = vstv %s279
    %v2291 = vadd.f32 %v2288, %v2290
    %v2292 = vadd.f32 %v2289, %v2290
    %v2293 = vmax.f32 %v2291, 0.0
    %v2294 = vmax.f32 %v2292, 0.0
    %v2295 = vstv %s289
    %v2296 = vmul.f32 %v2295, %v2293
    %v2297 = vmul.f32 %v2295, %v2294
    %v2298 = vadd.f32 %v2197, %v2208
    %v2299 = vadd.f32 %v2198, %v2209
    %v2300 = vadd.f32 %v2219, %v2230
    %v2301 = vadd.f32 %v2220, %v2231
    %v2302 = vadd.f32 %v2241, %v2252
    %v2303 = vadd.f32 %v2242, %v2253
    %v2304 = vadd.f32 %v2263, %v2274
    %v2305 = vadd.f32 %v2264, %v2275
    %v2306 = vadd.f32 %v2285, %v2296
    %v2307 = vadd.f32 %v2286, %v2297
    %v2308 = vadd.f32 %v2298, %v2300
    %v2309 = vadd.f32 %v2299, %v2301
    %v2310 = vadd.f32 %v2302, %v2304
    %v2311 = vadd.f32 %v2303, %v2305
    %v2312 = vadd.f32 %v2308, %v2310
    %v2313 = vadd.f32 %v2309, %v2311
    %v2314 = vadd.f32 %v2312, %v2306
    %v2315 = vadd.f32 %v2313, %v2307
    %v2316 = vstv %s290
    %v2317 = vadd.f32 %v2314, %v2316
    %v2318 = vadd.f32 %v2315, %v2316
    %v2319 = vld [vmem:[#allocation10] sm:$0xff]
    %v2320 = vld [vmem:[#allocation10 + $0x8] sm:$0xff]
    %v2321 = vadd.f32 %v2317, %v2319
    %v2322 = vadd.f32 %v2318, %v2320
    %v2323 = vsub.f32 0.0, %v2321
    %v2324 = vsub.f32 0.0, %v2322
    %v2325 = vxor.u32 %v2323, 2147483648
    %v2326 = vxor.u32 %v2324, 2147483648
    %v2327 = vmul.f32 %v2325, 1.442695
    %v2328 = vpow.pop %v2327
    %v2329 = vmul.f32 %v2326, 1.442695
    %v2330 = vpow.pop %v2329
    %v2331 = vadd.f32 %v2328, 1.0
    %v2332 = vadd.f32 %v2330, 1.0
    %v2333 = vrcp.pop %v2331
    %v2334 = vmul.f32 1.0, %v2333
    %v2335 = vrcp.pop %v2332
    %v2336 = vmul.f32 1.0, %v2335
    %2337 = vst [vmem:[#allocation20] sm:$0xff] %v2334
    %2338 = vst [vmem:[#allocation20 + $0x8] sm:$0xff] %v2336
    %v2339 = vmul.f32 %v2188, %v2180
    %v2340 = vmul.f32 %v2188, %v2185
    %v2341 = vadd.f32 %v2339, %v2191
    %v2342 = vadd.f32 %v2340, %v2191
    %v2343 = vmax.f32 %v2341, 0.0
    %v2344 = vmax.f32 %v2342, 0.0
    %v2345 = vmul.f32 %v2196, %v2343
    %v2346 = vmul.f32 %v2196, %v2344
    %v2347 = vmul.f32 %v2199, %v2180
    %v2348 = vmul.f32 %v2199, %v2185
    %v2349 = vadd.f32 %v2347, %v2202
    %v2350 = vadd.f32 %v2348, %v2202
    %v2351 = vmax.f32 %v2349, 0.0
    %v2352 = vmax.f32 %v2350, 0.0
    %v2353 = vmul.f32 %v2207, %v2351
    %v2354 = vmul.f32 %v2207, %v2352
    %v2355 = vmul.f32 %v2210, %v2180
    %v2356 = vmul.f32 %v2210, %v2185
    %v2357 = vadd.f32 %v2355, %v2213
    %v2358 = vadd.f32 %v2356, %v2213
    %v2359 = vmax.f32 %v2357, 0.0
    %v2360 = vmax.f32 %v2358, 0.0
    %v2361 = vmul.f32 %v2218, %v2359
    %v2362 = vmul.f32 %v2218, %v2360
    %v2363 = vmul.f32 %v2221, %v2180
    %v2364 = vmul.f32 %v2221, %v2185
    %v2365 = vadd.f32 %v2363, %v2224
    %v2366 = vadd.f32 %v2364, %v2224
    %v2367 = vmax.f32 %v2365, 0.0
    %v2368 = vmax.f32 %v2366, 0.0
    %v2369 = vmul.f32 %v2229, %v2367
    %v2370 = vmul.f32 %v2229, %v2368
    %v2371 = vmul.f32 %v2232, %v2180
    %v2372 = vmul.f32 %v2232, %v2185
    %v2373 = vadd.f32 %v2371, %v2235
    %v2374 = vadd.f32 %v2372, %v2235
    %v2375 = vmax.f32 %v2373, 0.0
    %v2376 = vmax.f32 %v2374, 0.0
    %v2377 = vmul.f32 %v2240, %v2375
    %v2378 = vmul.f32 %v2240, %v2376
    %v2379 = vmul.f32 %v2243, %v2180
    %v2380 = vmul.f32 %v2243, %v2185
    %v2381 = vadd.f32 %v2379, %v2246
    %v2382 = vadd.f32 %v2380, %v2246
    %v2383 = vmax.f32 %v2381, 0.0
    %v2384 = vmax.f32 %v2382, 0.0
    %v2385 = vmul.f32 %v2251, %v2383
    %v2386 = vmul.f32 %v2251, %v2384
    %v2387 = vmul.f32 %v2254, %v2180
    %v2388 = vmul.f32 %v2254, %v2185
    %v2389 = vadd.f32 %v2387, %v2257
    %v2390 = vadd.f32 %v2388, %v2257
    %v2391 = vmax.f32 %v2389, 0.0
    %v2392 = vmax.f32 %v2390, 0.0
    %v2393 = vmul.f32 %v2262, %v2391
    %v2394 = vmul.f32 %v2262, %v2392
    %v2395 = vmul.f32 %v2265, %v2180
    %v2396 = vmul.f32 %v2265, %v2185
    %v2397 = vadd.f32 %v2395, %v2268
    %v2398 = vadd.f32 %v2396, %v2268
    %v2399 = vmax.f32 %v2397, 0.0
    %v2400 = vmax.f32 %v2398, 0.0
    %v2401 = vmul.f32 %v2273, %v2399
    %v2402 = vmul.f32 %v2273, %v2400
    %v2403 = vmul.f32 %v2276, %v2180
    %v2404 = vmul.f32 %v2276, %v2185
    %v2405 = vadd.f32 %v2403, %v2279
    %v2406 = vadd.f32 %v2404, %v2279
    %v2407 = vmax.f32 %v2405, 0.0
    %v2408 = vmax.f32 %v2406, 0.0
    %v2409 = vmul.f32 %v2284, %v2407
    %v2410 = vmul.f32 %v2284, %v2408
    %v2411 = vmul.f32 %v2287, %v2180
    %v2412 = vmul.f32 %v2287, %v2185
    %v2413 = vadd.f32 %v2411, %v2290
    %v2414 = vadd.f32 %v2412, %v2290
    %v2415 = vmax.f32 %v2413, 0.0
    %v2416 = vmax.f32 %v2414, 0.0
    %v2417 = vmul.f32 %v2295, %v2415
    %v2418 = vmul.f32 %v2295, %v2416
    %v2419 = vadd.f32 %v2345, %v2353
    %v2420 = vadd.f32 %v2346, %v2354
    %v2421 = vadd.f32 %v2361, %v2369
    %v2422 = vadd.f32 %v2362, %v2370
    %v2423 = vadd.f32 %v2377, %v2385
    %v2424 = vadd.f32 %v2378, %v2386
    %v2425 = vadd.f32 %v2393, %v2401
    %v2426 = vadd.f32 %v2394, %v2402
    %v2427 = vadd.f32 %v2409, %v2417
    %v2428 = vadd.f32 %v2410, %v2418
    %v2429 = vadd.f32 %v2419, %v2421
    %v2430 = vadd.f32 %v2420, %v2422
    %v2431 = vadd.f32 %v2423, %v2425
    %v2432 = vadd.f32 %v2424, %v2426
    %v2433 = vadd.f32 %v2429, %v2431
    %v2434 = vadd.f32 %v2430, %v2432
    %v2435 = vadd.f32 %v2433, %v2427
    %v2436 = vadd.f32 %v2434, %v2428
    %v2437 = vadd.f32 %v2435, %v2316
    %v2438 = vadd.f32 %v2436, %v2316
    %v2439 = vsub.f32 0.0, %v2437
    %v2440 = vsub.f32 0.0, %v2438
    %v2441 = vxor.u32 %v2439, 2147483648
    %v2442 = vxor.u32 %v2440, 2147483648
    %v2443 = vmul.f32 %v2441, 1.442695
    %v2444 = vpow.pop %v2443
    %v2445 = vmul.f32 %v2442, 1.442695
    %v2446 = vpow.pop %v2445
    %v2447 = vadd.f32 %v2444, 1.0
    %v2448 = vadd.f32 %v2446, 1.0
    %v2449 = vrcp.pop %v2447
    %v2450 = vmul.f32 1.0, %v2449
    %v2451 = vrcp.pop %v2448
    %v2452 = vmul.f32 1.0, %v2451
    %2453 = vst [vmem:[#allocation21] sm:$0xff] %v2450
    %2454 = vst [vmem:[#allocation21 + $0x8] sm:$0xff] %v2452
    // Predicated region
    $region89: #{tpu_custom_call.1} parent=1 // pred_check
      _
    $region90: #{tpu_custom_call.1} parent=1 // pred_check_branch
      %2456 = sbr.rel (0) target = $region92
    $region91: #{tpu_custom_call.1} parent=1 // pred_region
      %s2458 = ssub.s32 256, 256
      %2459 = vsyncadd [#allocation8], %s2458
      %s2460 = sshll.u32 [#allocation20], 4
      %s2461 = int_to_ptr.vmem [resolvable:$true] %s2460
      %2466 = dma.vmem_to_hbm [thread:$0]  %s2461, 256, %s12, [#allocation8], 128, 128, 8
    $region92: #{tpu_custom_call.1} parent=1 // pred_fallthru
      _
    // Predicated region
    $region93: #{tpu_custom_call.1} parent=1 // pred_check
      _
    $region94: #{tpu_custom_call.1} parent=1 // pred_check_branch
      %2468 = sbr.rel (0) target = $region96
    $region95: #{tpu_custom_call.1} parent=1 // pred_region
      %s2470 = ssub.s32 256, 256
      %2471 = vsyncadd [#allocation22], %s2470
      %s2472 = sshll.u32 [#allocation21], 4
      %s2473 = int_to_ptr.vmem [resolvable:$true] %s2472
      %2478 = dma.vmem_to_hbm [thread:$0]  %s2473, 256, %s13, [#allocation22], 128, 128, 8
    $region96: #{tpu_custom_call.1} parent=1 // pred_fallthru
      _
    // Predicated region
    $region97: #{tpu_custom_call.1} parent=1 // pred_check
      _
    $region98: #{tpu_custom_call.1} parent=1 // pred_check_branch
      %2480 = sbr.rel (0) target = $region100
    $region99: #{tpu_custom_call.1} parent=1 // pred_region
      %2481 = dma.done [#allocation8], 256
    $region100: #{tpu_custom_call.1} parent=1 // pred_fallthru
      _
    // Predicated region
    $region101: #{tpu_custom_call.1} parent=1 // pred_check
      _
    $region102: #{tpu_custom_call.1} parent=1 // pred_check_branch
      %2483 = sbr.rel (0) target = $region104
    $region103: #{tpu_custom_call.1} parent=1 // pred_region
      %2484 = dma.done [#allocation22], 256
    $region104: #{tpu_custom_call.1} parent=1 // pred_fallthru
      _
    %2485 = vsyncpa [#allocation7], 1
    %2486 = vsyncpa [#allocation11], 1
    %2487 = vsyncpa [#allocation8], 1
    %2488 = vsyncpa [#allocation22], 1
    %2489 = vsyncpa [#allocation9], 1
    %2490 = vsyncpa [#allocation15], 1
    %2491 = vsyncpa [#allocation18], 1
  %2492 = vsyncmov [#allocation5]
  %s2493 = vpop.sfrf %2492
  %p2494 = scmp.eq.s32.totalorder %s2493, 0
  %p2495 = pneg %p2494
  %2497 = shalt.err (%p2495)
  %s2498 = scalar_lea.sflag [#allocation5], 1
  %2499 = vsyncmov %s2498
  %s2500 = vpop.sfrf %2499
  %p2501 = scmp.eq.s32.totalorder %s2500, 0
  %p2502 = pneg %p2501
  %2504 = shalt.err (%p2502)
  %s2505 = scalar_lea.sflag [#allocation5], 2
  %2506 = vsyncmov %s2505
  %s2507 = vpop.sfrf %2506
  %p2508 = scmp.eq.s32.totalorder %s2507, 0
  %p2509 = pneg %p2508
  %2511 = shalt.err (%p2509)

</llo_original>
